<compile_context>
chip_gen: v5e
topology: v5e:2x2
jax: 0.10.0
libtpu: 0.0.40
codegen_flags: <defaults>
</compile_context>

<pallas_src>
from functools import partial

import numpy as np
import jax
import jax.numpy as jnp
from jax.experimental import pallas as pl
from jax.experimental.pallas import tpu as pltpu


ROWS_PAD = 32   # 28 input rows padded to a sublane-aligned per-image slab
P1_SLAB = 16    # pool1 / conv2 per-image slab (13 / 11 valid rows)
P2_SLAB = 8     # pool2 per-image slab (5 valid rows)


# ----------------------------------------------------------------------------
# Fused batch-blocked kernel. All activations are 2-D (B*slab_rows, lanes) with
# lanes = channel-major (c, w). Per-image padding rows carry garbage/zeros and
# are never selected by the compaction matrices.
# ----------------------------------------------------------------------------
def _lenet_kernel(x_ref,
                  w1_ref, b1_ref, sr1_ref, cc1_ref,
                  w2_ref, b2_ref, sr2_ref, cc2_ref,
                  asum_ref, rsel_ref, wf1_ref, bf1_ref,
                  wf2_ref, bf2_ref, wf3_ref, bf3_ref,
                  o_ref):
    f32 = jnp.float32

    def up(a, d):
        # rows shifted up by d (circular sublane roll on the XLU; wrapped rows only
        # ever land in per-image padding rows that are never selected downstream)
        return pltpu.roll(a, a.shape[0] - d, 0)

    def conv3x3(act, w_ref, b_ref):
        # VALID 3x3 conv as ONE wider-K matmul: lane-concat the three row-shifted
        # copies (K = 3 * lanes) against a block-Toeplitz weight built at prep time.
        wide = jnp.concatenate([act, up(act, 1), up(act, 2)], axis=1)
        out = jnp.dot(wide, w_ref[...], preferred_element_type=f32) + b_ref[...]
        return jnp.maximum(out, 0.0)

    def pool2x2(act, sr_ref, cc_ref):
        # rows: pair via sublane roll + max, then block-diagonal compaction matmul.
        rows = jnp.dot(sr_ref[...], jnp.maximum(act, up(act, 1)),
                       preferred_element_type=f32)
        # cols: ONE stacked even|odd selector matmul, odd half at lane offset 128,
        # then max of the two lane-tile-aligned halves.
        both = jnp.dot(rows, cc_ref[...], preferred_element_type=f32)
        w = cc_ref.shape[1] - 128
        return jnp.maximum(both[:, 0:w], both[:, 128:128 + w])

    a1 = conv3x3(x_ref[...], w1_ref, b1_ref)        # (B*32, 156)  6ch x 26x26
    p1 = pool2x2(a1, sr1_ref, cc1_ref)              # (B*16, 78)   6ch x 13x13
    a2 = conv3x3(p1, w2_ref, b2_ref)                # (B*16, 176)  16ch x 11x11
    p2 = pool2x2(a2, sr2_ref, cc2_ref)              # (B*8,  80)   16ch x 5x5

    # Flatten to (B, 400): tag each per-image spatial row into its own lane block
    # (cheap VPU one-hot masks), then one summing-selector matmul gathers per image.
    rsel = rsel_ref[...]                            # (B*8, 5) one-hot spatial-row id
    p2e = jnp.concatenate(
        [p2 * rsel[:, i:i + 1] for i in range(rsel.shape[1])], axis=1)   # (B*8, 400)
    flat = jnp.dot(asum_ref[...], p2e, preferred_element_type=f32)       # (B, 400)

    # fc1 / fc2 / fc3 (weights pre-transposed; torch NCHW flatten folded into wf1)
    h1 = jnp.maximum(jnp.dot(flat, wf1_ref[...], preferred_element_type=f32)
                     + bf1_ref[...], 0.0)                                # (B, 120)
    h2 = jnp.maximum(jnp.dot(h1, wf2_ref[...], preferred_element_type=f32)
                     + bf2_ref[...], 0.0)                                # (B, 240)
    logits = jnp.dot(h2, wf3_ref[...], preferred_element_type=f32) + bf3_ref[...]

    # numerically-stable log_softmax
    m = jnp.max(logits, axis=1, keepdims=True)
    z = logits - m
    lse = jnp.log(jnp.sum(jnp.exp(z), axis=1, keepdims=True))
    o_ref[...] = (z - lse).astype(o_ref.dtype)


# ----------------------------------------------------------------------------
# One-time parameter / constant preparation (all layout work done here)
# ----------------------------------------------------------------------------
def _conv_wide_weight(w, w_in):
    """(Cout, Cin, 3, 3) -> (3*Cin*w_in, Cout*w_out) block-Toeplitz RHS.
    K index = dy*Cin*w_in + ic*w_in + (j+dx), matching the in-kernel lane-concat
    of [act, act shifted up 1, act shifted up 2]."""
    w = np.asarray(w, np.float32)
    cout, cin, kh, kw = w.shape
    w_out = w_in - kw + 1
    out = np.zeros((kh * cin * w_in, cout * w_out), np.float32)
    for oc in range(cout):
        for ic in range(cin):
            for dy in range(kh):
                for dx in range(kw):
                    for j in range(w_out):
                        out[dy * cin * w_in + ic * w_in + j + dx,
                            oc * w_out + j] += w[oc, ic, dy, dx]
    return jnp.asarray(out)


def _row_pool_selector(B, slab_in, slab_out, n_valid):
    """Block-diagonal compaction: per-image row 2*i of a slab_in-row slab ->
    row i of a slab_out-row slab (padding rows get all-zero selector rows)."""
    s = np.zeros((B * slab_out, B * slab_in), np.float32)
    for b in range(B):
        for i in range(n_valid):
            s[b * slab_out + i, b * slab_in + 2 * i] = 1.0
    return jnp.asarray(s)


def _col_pool_selector(C, w_in, w_out):
    """Stacked even|odd column selector; odd half placed at lane offset 128 so the
    in-kernel max works on lane-tile-aligned halves."""
    assert C * w_out <= 128
    s = np.zeros((C * w_in, 128 + C * w_out), np.float32)
    for c in range(C):
        for j in range(w_out):
            s[c * w_in + 2 * j, c * w_out + j] = 1.0
            s[c * w_in + 2 * j + 1, 128 + c * w_out + j] = 1.0
    return jnp.asarray(s)


def prepare_params(params, block_b=8):
    B = block_b

    w1w = _conv_wide_weight(params["conv1_w"], 28)                  # (84, 156)
    b1 = jnp.repeat(params["conv1_b"], 26).reshape(1, 156)
    sr1 = _row_pool_selector(B, ROWS_PAD, P1_SLAB, 13)              # (16B, 32B)
    cc1 = _col_pool_selector(6, 26, 13)                             # (156, 206)

    w2w = _conv_wide_weight(params["conv2_w"], 13)                  # (234, 176)
    b2 = jnp.repeat(params["conv2_b"], 11).reshape(1, 176)
    sr2 = _row_pool_selector(B, P1_SLAB, P2_SLAB, 5)                # (8B, 16B)
    cc2 = _col_pool_selector(16, 11, 5)                             # (176, 208)

    # flatten helpers: per-image summing selector + one-hot spatial-row masks
    asum = np.zeros((B, B * P2_SLAB), np.float32)
    rsel = np.zeros((B * P2_SLAB, 5), np.float32)
    for b in range(B):
        for i in range(5):
            asum[b, b * P2_SLAB + i] = 1.0
            rsel[b * P2_SLAB + i, i] = 1.0

    # fc1: torch's NCHW view(-1, 400) order (c*25 + i*5 + w) folded into the weight
    # row order of the kernel's flattened layout (lane = i*80 + c*5 + w).
    g = np.asarray(params["fc1_w"], np.float32).reshape(120, 16, 5, 5)   # (o, c, i, w)
    wf1 = np.transpose(g, (2, 1, 3, 0)).reshape(400, 120)                # (i, c, w) major
    bf1 = params["fc1_b"].reshape(1, 120)
    wf2 = params["fc2_w"].T                                              # (120, 240)
    bf2 = params["fc2_b"].reshape(1, 240)
    wf3 = params["fc3_w"].T                                              # (240, 10)
    bf3 = params["fc3_b"].reshape(1, 10)

    return (w1w, b1, sr1, cc1,
            w2w, b2, sr2, cc2,
            jnp.asarray(asum), jnp.asarray(rsel),
            jnp.asarray(wf1), bf1, wf2, bf2, wf3, bf3)


# ----------------------------------------------------------------------------
# Forward pass: one fused pallas_call, grid over batch blocks of B images
# ----------------------------------------------------------------------------
@partial(jax.jit, static_argnames=("block_b",))
def forward(prep, x_nchw, block_b=8):
    n = x_nchw.shape[0]
    B = block_b
    x = x_nchw.astype(jnp.float32).reshape(n, 28, 28)

    n_pad = ((n + B - 1) // B) * B
    # pad batch to a multiple of B and rows 28 -> 32 (sublane-aligned slabs), then
    # flatten to 2-D so the kernel needs no reshapes at all.
    x = jnp.pad(x, ((0, n_pad - n), (0, ROWS_PAD - 28), (0, 0)))
    x2d = x.reshape(n_pad * ROWS_PAD, 28)

    def const_spec(a):
        nd = a.ndim
        return pl.BlockSpec(a.shape, lambda i, _nd=nd: (0,) * _nd)   # VMEM-resident

    in_specs = [pl.BlockSpec((B * ROWS_PAD, 28), lambda i: (i, 0))]
    in_specs += [const_spec(a) for a in prep]

    out = pl.pallas_call(
        _lenet_kernel,
        out_shape=jax.ShapeDtypeStruct((n_pad, 10), jnp.float32),
        grid=(n_pad // B,),
        in_specs=in_specs,
        out_specs=pl.BlockSpec((B, 10), lambda i: (i, 0)),
        compiler_params=pltpu.CompilerParams(
            dimension_semantics=("parallel",)),
    )(x2d, *prep)
    return out[:n]


# ----------------------------------------------------------------------------
# Pure-JAX reference of the PyTorch module (validation only, HIGHEST precision)
# ----------------------------------------------------------------------------
def _pool_ref(y):
    ho, wo = y.shape[2] // 2, y.shape[3] // 2
    y = y[:, :, :2 * ho, :2 * wo]
    return jnp.maximum(
        jnp.maximum(y[:, :, 0::2, 0::2], y[:, :, 0::2, 1::2]),
        jnp.maximum(y[:, :, 1::2, 0::2], y[:, :, 1::2, 1::2]))


def reference_forward(params, x_nchw):
    hp = jax.lax.Precision.HIGHEST
    x = x_nchw.astype(jnp.float32)
    y = jax.lax.conv_general_dilated(x, params["conv1_w"], (1, 1), "VALID",
                                     dimension_numbers=("NCHW", "OIHW", "NCHW"),
                                     precision=hp)
    y = jax.nn.relu(y + params["conv1_b"][None, :, None, None])
    y = _pool_ref(y)
    y = jax.lax.conv_general_dilated(y, params["conv2_w"], (1, 1), "VALID",
                                     dimension_numbers=("NCHW", "OIHW", "NCHW"),
                                     precision=hp)
    y = jax.nn.relu(y + params["conv2_b"][None, :, None, None])
    y = _pool_ref(y)
    v = y.reshape(y.shape[0], -1)                     # NCHW flatten == torch view(-1, 400)
    h1 = jax.nn.relu(jnp.dot(v, params["fc1_w"].T, precision=hp) + params["fc1_b"])
    h2 = jax.nn.relu(jnp.dot(h1, params["fc2_w"].T, precision=hp) + params["fc2_b"])
    logits = jnp.dot(h2, params["fc3_w"].T, precision=hp) + params["fc3_b"]
    return jax.nn.log_softmax(logits, axis=1)


# ----------------------------------------------------------------------------
# Deterministic parameter init (PyTorch default-init style)
# ----------------------------------------------------------------------------
def init_params(key):
    ks = jax.random.split(key, 10)

    def u(k, shape, fan_in):
        bound = 1.0 / (fan_in ** 0.5)
        return jax.random.uniform(k, shape, jnp.float32, -bound, bound)

    return {
        "conv1_w": u(ks[0], (6, 1, 3, 3), 1 * 3 * 3),
        "conv1_b": u(ks[1], (6,), 1 * 3 * 3),
        "conv2_w": u(ks[2], (16, 6, 3, 3), 6 * 3 * 3),
        "conv2_b": u(ks[3], (16,), 6 * 3 * 3),
        "fc1_w": u(ks[4], (120, 400), 400),
        "fc1_b": u(ks[5], (120,), 400),
        "fc2_w": u(ks[6], (240, 120), 120),
        "fc2_b": u(ks[7], (240,), 120),
        "fc3_w": u(ks[8], (10, 240), 240),
        "fc3_b": u(ks[9], (10,), 240),
    }


if __name__ == "__main__":
    key = jax.random.PRNGKey(0)
    pkey, xkey = jax.random.split(key)
    params = init_params(pkey)
    prep = prepare_params(params, block_b=8)

    # Module geometry forces 1x28x28 inputs (5*5*16 flatten); small batch for the demo.
    x = jax.random.normal(xkey, (2, 1, 28, 28), dtype=jnp.float32)

    out = jax.block_until_ready(forward(prep, x, block_b=8))
    assert out.shape == (2, 10), out.shape

    # log_softmax sanity: rows of exp(out) must sum to ~1
    row_sums = jnp.exp(out).sum(axis=1)
    assert bool(jnp.all(jnp.abs(row_sums - 1.0) < 1e-3)), row_sums

    # cross-check against a pure-JAX reference of the PyTorch module (tightened tol;
    # typical observed error is ~1e-5 since everything is f32 end-to-end)
    ref = jax.block_until_ready(jax.jit(reference_forward)(params, x))
    max_err = float(jnp.max(jnp.abs(out - ref)))
    assert max_err < 1e-3, max_err

    print("KERNEL_OK")
</pallas_src>

<mosaic_0001>
module attributes {stable_mosaic.version = 11 : i64} {
  func.func @_lenet_kernel(%arg0: i32, %arg1: memref<256x28xf32, #tpu.memory_space<vmem>>, %arg2: memref<84x156xf32, #tpu.memory_space<vmem>>, %arg3: memref<1x156xf32, #tpu.memory_space<vmem>>, %arg4: memref<128x256xf32, #tpu.memory_space<vmem>>, %arg5: memref<156x206xf32, #tpu.memory_space<vmem>>, %arg6: memref<234x176xf32, #tpu.memory_space<vmem>>, %arg7: memref<1x176xf32, #tpu.memory_space<vmem>>, %arg8: memref<64x128xf32, #tpu.memory_space<vmem>>, %arg9: memref<176x208xf32, #tpu.memory_space<vmem>>, %arg10: memref<8x64xf32, #tpu.memory_space<vmem>>, %arg11: memref<64x5xf32, #tpu.memory_space<vmem>>, %arg12: memref<400x120xf32, #tpu.memory_space<vmem>>, %arg13: memref<1x120xf32, #tpu.memory_space<vmem>>, %arg14: memref<120x240xf32, #tpu.memory_space<vmem>>, %arg15: memref<1x240xf32, #tpu.memory_space<vmem>>, %arg16: memref<240x10xf32, #tpu.memory_space<vmem>>, %arg17: memref<1x10xf32, #tpu.memory_space<vmem>>, %arg18: memref<8x10xf32, #tpu.memory_space<vmem>>) attributes {dimension_semantics = [#tpu.dimension_semantics<parallel>], iteration_bounds = array<i64: 1>, scalar_prefetch = 0 : i64, scratch_operands = 0 : i64, tpu.core_type = #tpu.core_type<tc>, window_params = [{transform_indices = @transform_0, window_bounds = array<i64: 256, 28>}, {pipeline_mode = #tpu.pipeline_mode<synchronous>, transform_indices = @transform_1, window_bounds = array<i64: 84, 156>}, {pipeline_mode = #tpu.pipeline_mode<synchronous>, transform_indices = @transform_2, window_bounds = array<i64: 1, 156>}, {pipeline_mode = #tpu.pipeline_mode<synchronous>, transform_indices = @transform_3, window_bounds = array<i64: 128, 256>}, {pipeline_mode = #tpu.pipeline_mode<synchronous>, transform_indices = @transform_4, window_bounds = array<i64: 156, 206>}, {pipeline_mode = #tpu.pipeline_mode<synchronous>, transform_indices = @transform_5, window_bounds = array<i64: 234, 176>}, {pipeline_mode = #tpu.pipeline_mode<synchronous>, transform_indices = @transform_6, window_bounds = array<i64: 1, 176>}, {pipeline_mode = #tpu.pipeline_mode<synchronous>, transform_indices = @transform_7, window_bounds = array<i64: 64, 128>}, {pipeline_mode = #tpu.pipeline_mode<synchronous>, transform_indices = @transform_8, window_bounds = array<i64: 176, 208>}, {pipeline_mode = #tpu.pipeline_mode<synchronous>, transform_indices = @transform_9, window_bounds = array<i64: 8, 64>}, {pipeline_mode = #tpu.pipeline_mode<synchronous>, transform_indices = @transform_10, window_bounds = array<i64: 64, 5>}, {pipeline_mode = #tpu.pipeline_mode<synchronous>, transform_indices = @transform_11, window_bounds = array<i64: 400, 120>}, {pipeline_mode = #tpu.pipeline_mode<synchronous>, transform_indices = @transform_12, window_bounds = array<i64: 1, 120>}, {pipeline_mode = #tpu.pipeline_mode<synchronous>, transform_indices = @transform_13, window_bounds = array<i64: 120, 240>}, {pipeline_mode = #tpu.pipeline_mode<synchronous>, transform_indices = @transform_14, window_bounds = array<i64: 1, 240>}, {pipeline_mode = #tpu.pipeline_mode<synchronous>, transform_indices = @transform_15, window_bounds = array<i64: 240, 10>}, {pipeline_mode = #tpu.pipeline_mode<synchronous>, transform_indices = @transform_16, window_bounds = array<i64: 1, 10>}, {transform_indices = @transform_17, window_bounds = array<i64: 8, 10>}]} {
    %c0 = arith.constant 0 : index
    %c0_0 = arith.constant 0 : index
    %0 = vector.load %arg1[%c0, %c0_0] : memref<256x28xf32, #tpu.memory_space<vmem>>, vector<256x28xf32>
    %c255_i32 = arith.constant 255 : i32
    %1 = tpu.dynamic_rotate %0 by %c255_i32 dim 0 : vector<256x28xf32>, i32 -> vector<256x28xf32>
    %c254_i32 = arith.constant 254 : i32
    %2 = tpu.dynamic_rotate %0 by %c254_i32 dim 0 : vector<256x28xf32>, i32 -> vector<256x28xf32>
    %3 = tpu.concatenate %0, %1, %2 in 1 : vector<256x28xf32>, vector<256x28xf32>, vector<256x28xf32> -> vector<256x84xf32>
    %c0_1 = arith.constant 0 : index
    %c0_2 = arith.constant 0 : index
    %4 = vector.load %arg2[%c0_1, %c0_2] : memref<84x156xf32, #tpu.memory_space<vmem>>, vector<84x156xf32>
    %cst = arith.constant dense<0.000000e+00> : vector<256x156xf32>
    %5 = tpu.matmul %3, %4, %cst {dimension_numbers = #tpu.dot_dimension_numbers<[1], [0], [0], [1], [0, 0, 1, 1], [], []>} : vector<256x84xf32>, vector<84x156xf32>, vector<256x156xf32> -> vector<256x156xf32>
    %c0_3 = arith.constant 0 : index
    %c0_4 = arith.constant 0 : index
    %6 = vector.load %arg3[%c0_3, %c0_4] : memref<1x156xf32, #tpu.memory_space<vmem>>, vector<1x156xf32>
    %7 = vector.broadcast %6 : vector<1x156xf32> to vector<256x156xf32>
    %8 = arith.addf %5, %7 : vector<256x156xf32>
    %cst_5 = arith.constant 0.000000e+00 : f32
    %9 = vector.broadcast %cst_5 : f32 to vector<256x156xf32>
    %10 = arith.maximumf %8, %9 : vector<256x156xf32>
    %c0_6 = arith.constant 0 : index
    %c0_7 = arith.constant 0 : index
    %11 = vector.load %arg4[%c0_6, %c0_7] : memref<128x256xf32, #tpu.memory_space<vmem>>, vector<128x256xf32>
    %c255_i32_8 = arith.constant 255 : i32
    %12 = tpu.dynamic_rotate %10 by %c255_i32_8 dim 0 : vector<256x156xf32>, i32 -> vector<256x156xf32>
    %13 = arith.maximumf %10, %12 : vector<256x156xf32>
    %cst_9 = arith.constant dense<0.000000e+00> : vector<128x156xf32>
    %14 = tpu.matmul %11, %13, %cst_9 {dimension_numbers = #tpu.dot_dimension_numbers<[1], [0], [0], [1], [0, 0, 1, 1], [], []>} : vector<128x256xf32>, vector<256x156xf32>, vector<128x156xf32> -> vector<128x156xf32>
    %c0_10 = arith.constant 0 : index
    %c0_11 = arith.constant 0 : index
    %15 = vector.load %arg5[%c0_10, %c0_11] : memref<156x206xf32, #tpu.memory_space<vmem>>, vector<156x206xf32>
    %cst_12 = arith.constant dense<0.000000e+00> : vector<128x206xf32>
    %16 = tpu.matmul %14, %15, %cst_12 {dimension_numbers = #tpu.dot_dimension_numbers<[1], [0], [0], [1], [0, 0, 1, 1], [], []>} : vector<128x156xf32>, vector<156x206xf32>, vector<128x206xf32> -> vector<128x206xf32>
    %17 = vector.extract_strided_slice %16 {offsets = [0, 0], sizes = [128, 78], strides = [1, 1]} : vector<128x206xf32> to vector<128x78xf32>
    %18 = vector.extract_strided_slice %16 {offsets = [0, 128], sizes = [128, 78], strides = [1, 1]} : vector<128x206xf32> to vector<128x78xf32>
    %19 = arith.maximumf %17, %18 : vector<128x78xf32>
    %c127_i32 = arith.constant 127 : i32
    %20 = tpu.dynamic_rotate %19 by %c127_i32 dim 0 : vector<128x78xf32>, i32 -> vector<128x78xf32>
    %c126_i32 = arith.constant 126 : i32
    %21 = tpu.dynamic_rotate %19 by %c126_i32 dim 0 : vector<128x78xf32>, i32 -> vector<128x78xf32>
    %22 = tpu.concatenate %19, %20, %21 in 1 : vector<128x78xf32>, vector<128x78xf32>, vector<128x78xf32> -> vector<128x234xf32>
    %c0_13 = arith.constant 0 : index
    %c0_14 = arith.constant 0 : index
    %23 = vector.load %arg6[%c0_13, %c0_14] : memref<234x176xf32, #tpu.memory_space<vmem>>, vector<234x176xf32>
    %cst_15 = arith.constant dense<0.000000e+00> : vector<128x176xf32>
    %24 = tpu.matmul %22, %23, %cst_15 {dimension_numbers = #tpu.dot_dimension_numbers<[1], [0], [0], [1], [0, 0, 1, 1], [], []>} : vector<128x234xf32>, vector<234x176xf32>, vector<128x176xf32> -> vector<128x176xf32>
    %c0_16 = arith.constant 0 : index
    %c0_17 = arith.constant 0 : index
    %25 = vector.load %arg7[%c0_16, %c0_17] : memref<1x176xf32, #tpu.memory_space<vmem>>, vector<1x176xf32>
    %26 = vector.broadcast %25 : vector<1x176xf32> to vector<128x176xf32>
    %27 = arith.addf %24, %26 : vector<128x176xf32>
    %cst_18 = arith.constant 0.000000e+00 : f32
    %28 = vector.broadcast %cst_18 : f32 to vector<128x176xf32>
    %29 = arith.maximumf %27, %28 : vector<128x176xf32>
    %c0_19 = arith.constant 0 : index
    %c0_20 = arith.constant 0 : index
    %30 = vector.load %arg8[%c0_19, %c0_20] : memref<64x128xf32, #tpu.memory_space<vmem>>, vector<64x128xf32>
    %c127_i32_21 = arith.constant 127 : i32
    %31 = tpu.dynamic_rotate %29 by %c127_i32_21 dim 0 : vector<128x176xf32>, i32 -> vector<128x176xf32>
    %32 = arith.maximumf %29, %31 : vector<128x176xf32>
    %cst_22 = arith.constant dense<0.000000e+00> : vector<64x176xf32>
    %33 = tpu.matmul %30, %32, %cst_22 {dimension_numbers = #tpu.dot_dimension_numbers<[1], [0], [0], [1], [0, 0, 1, 1], [], []>} : vector<64x128xf32>, vector<128x176xf32>, vector<64x176xf32> -> vector<64x176xf32>
    %c0_23 = arith.constant 0 : index
    %c0_24 = arith.constant 0 : index
    %34 = vector.load %arg9[%c0_23, %c0_24] : memref<176x208xf32, #tpu.memory_space<vmem>>, vector<176x208xf32>
    %cst_25 = arith.constant dense<0.000000e+00> : vector<64x208xf32>
    %35 = tpu.matmul %33, %34, %cst_25 {dimension_numbers = #tpu.dot_dimension_numbers<[1], [0], [0], [1], [0, 0, 1, 1], [], []>} : vector<64x176xf32>, vector<176x208xf32>, vector<64x208xf32> -> vector<64x208xf32>
    %36 = vector.extract_strided_slice %35 {offsets = [0, 0], sizes = [64, 80], strides = [1, 1]} : vector<64x208xf32> to vector<64x80xf32>
    %37 = vector.extract_strided_slice %35 {offsets = [0, 128], sizes = [64, 80], strides = [1, 1]} : vector<64x208xf32> to vector<64x80xf32>
    %38 = arith.maximumf %36, %37 : vector<64x80xf32>
    %c0_26 = arith.constant 0 : index
    %c0_27 = arith.constant 0 : index
    %39 = vector.load %arg11[%c0_26, %c0_27] : memref<64x5xf32, #tpu.memory_space<vmem>>, vector<64x5xf32>
    %40 = vector.extract_strided_slice %39 {offsets = [0, 0], sizes = [64, 1], strides = [1, 1]} : vector<64x5xf32> to vector<64x1xf32>
    %41 = vector.broadcast %40 : vector<64x1xf32> to vector<64x80xf32>
    %42 = arith.mulf %38, %41 : vector<64x80xf32>
    %43 = vector.extract_strided_slice %39 {offsets = [0, 1], sizes = [64, 1], strides = [1, 1]} : vector<64x5xf32> to vector<64x1xf32>
    %44 = vector.broadcast %43 : vector<64x1xf32> to vector<64x80xf32>
    %45 = arith.mulf %38, %44 : vector<64x80xf32>
    %46 = vector.extract_strided_slice %39 {offsets = [0, 2], sizes = [64, 1], strides = [1, 1]} : vector<64x5xf32> to vector<64x1xf32>
    %47 = vector.broadcast %46 : vector<64x1xf32> to vector<64x80xf32>
    %48 = arith.mulf %38, %47 : vector<64x80xf32>
    %49 = vector.extract_strided_slice %39 {offsets = [0, 3], sizes = [64, 1], strides = [1, 1]} : vector<64x5xf32> to vector<64x1xf32>
    %50 = vector.broadcast %49 : vector<64x1xf32> to vector<64x80xf32>
    %51 = arith.mulf %38, %50 : vector<64x80xf32>
    %52 = vector.extract_strided_slice %39 {offsets = [0, 4], sizes = [64, 1], strides = [1, 1]} : vector<64x5xf32> to vector<64x1xf32>
    %53 = vector.broadcast %52 : vector<64x1xf32> to vector<64x80xf32>
    %54 = arith.mulf %38, %53 : vector<64x80xf32>
    %55 = tpu.concatenate %42, %45, %48, %51, %54 in 1 : vector<64x80xf32>, vector<64x80xf32>, vector<64x80xf32>, vector<64x80xf32>, vector<64x80xf32> -> vector<64x400xf32>
    %c0_28 = arith.constant 0 : index
    %c0_29 = arith.constant 0 : index
    %56 = vector.load %arg10[%c0_28, %c0_29] : memref<8x64xf32, #tpu.memory_space<vmem>>, vector<8x64xf32>
    %cst_30 = arith.constant dense<0.000000e+00> : vector<8x400xf32>
    %57 = tpu.matmul %56, %55, %cst_30 {dimension_numbers = #tpu.dot_dimension_numbers<[1], [0], [0], [1], [0, 0, 1, 1], [], []>} : vector<8x64xf32>, vector<64x400xf32>, vector<8x400xf32> -> vector<8x400xf32>
    %c0_31 = arith.constant 0 : index
    %c0_32 = arith.constant 0 : index
    %58 = vector.load %arg12[%c0_31, %c0_32] : memref<400x120xf32, #tpu.memory_space<vmem>>, vector<400x120xf32>
    %cst_33 = arith.constant dense<0.000000e+00> : vector<8x120xf32>
    %59 = tpu.matmul %57, %58, %cst_33 {dimension_numbers = #tpu.dot_dimension_numbers<[1], [0], [0], [1], [0, 0, 1, 1], [], []>} : vector<8x400xf32>, vector<400x120xf32>, vector<8x120xf32> -> vector<8x120xf32>
    %c0_34 = arith.constant 0 : index
    %c0_35 = arith.constant 0 : index
    %60 = vector.load %arg13[%c0_34, %c0_35] : memref<1x120xf32, #tpu.memory_space<vmem>>, vector<1x120xf32>
    %61 = vector.broadcast %60 : vector<1x120xf32> to vector<8x120xf32>
    %62 = arith.addf %59, %61 : vector<8x120xf32>
    %cst_36 = arith.constant 0.000000e+00 : f32
    %63 = vector.broadcast %cst_36 : f32 to vector<8x120xf32>
    %64 = arith.maximumf %62, %63 : vector<8x120xf32>
    %c0_37 = arith.constant 0 : index
    %c0_38 = arith.constant 0 : index
    %65 = vector.load %arg14[%c0_37, %c0_38] : memref<120x240xf32, #tpu.memory_space<vmem>>, vector<120x240xf32>
    %cst_39 = arith.constant dense<0.000000e+00> : vector<8x240xf32>
    %66 = tpu.matmul %64, %65, %cst_39 {dimension_numbers = #tpu.dot_dimension_numbers<[1], [0], [0], [1], [0, 0, 1, 1], [], []>} : vector<8x120xf32>, vector<120x240xf32>, vector<8x240xf32> -> vector<8x240xf32>
    %c0_40 = arith.constant 0 : index
    %c0_41 = arith.constant 0 : index
    %67 = vector.load %arg15[%c0_40, %c0_41] : memref<1x240xf32, #tpu.memory_space<vmem>>, vector<1x240xf32>
    %68 = vector.broadcast %67 : vector<1x240xf32> to vector<8x240xf32>
    %69 = arith.addf %66, %68 : vector<8x240xf32>
    %cst_42 = arith.constant 0.000000e+00 : f32
    %70 = vector.broadcast %cst_42 : f32 to vector<8x240xf32>
    %71 = arith.maximumf %69, %70 : vector<8x240xf32>
    %c0_43 = arith.constant 0 : index
    %c0_44 = arith.constant 0 : index
    %72 = vector.load %arg16[%c0_43, %c0_44] : memref<240x10xf32, #tpu.memory_space<vmem>>, vector<240x10xf32>
    %cst_45 = arith.constant dense<0.000000e+00> : vector<8x10xf32>
    %73 = tpu.matmul %71, %72, %cst_45 {dimension_numbers = #tpu.dot_dimension_numbers<[1], [0], [0], [1], [0, 0, 1, 1], [], []>} : vector<8x240xf32>, vector<240x10xf32>, vector<8x10xf32> -> vector<8x10xf32>
    %c0_46 = arith.constant 0 : index
    %c0_47 = arith.constant 0 : index
    %74 = vector.load %arg17[%c0_46, %c0_47] : memref<1x10xf32, #tpu.memory_space<vmem>>, vector<1x10xf32>
    %75 = vector.broadcast %74 : vector<1x10xf32> to vector<8x10xf32>
    %76 = arith.addf %73, %75 : vector<8x10xf32>
    %cst_48 = arith.constant dense<0xFF800000> : vector<8xf32>
    %77 = vector.multi_reduction <maximumf>, %76, %cst_48 [1] : vector<8x10xf32> to vector<8xf32>
    %78 = vector.shape_cast %77 : vector<8xf32> to vector<8x1xf32>
    %79 = vector.broadcast %78 : vector<8x1xf32> to vector<8x10xf32>
    %80 = arith.subf %76, %79 : vector<8x10xf32>
    %81 = math.exp %80 : vector<8x10xf32>
    %cst_49 = arith.constant dense<0.000000e+00> : vector<8xf32>
    %82 = vector.multi_reduction <add>, %81, %cst_49 [1] : vector<8x10xf32> to vector<8xf32>
    %83 = vector.shape_cast %82 : vector<8xf32> to vector<8x1xf32>
    %84 = math.log %83 : vector<8x1xf32>
    %85 = vector.broadcast %84 : vector<8x1xf32> to vector<8x10xf32>
    %86 = arith.subf %80, %85 : vector<8x10xf32>
    %c0_50 = arith.constant 0 : index
    %c0_51 = arith.constant 0 : index
    %87 = vector.load %arg18[%c0_50, %c0_51] : memref<8x10xf32, #tpu.memory_space<vmem>>, vector<8x10xf32>
    tpu.vector_store %arg18[%c0_50, %c0_51], %86 {strides = array<i32>} : memref<8x10xf32, #tpu.memory_space<vmem>>, vector<8x10xf32>,
    return
  }
  func.func @transform_0(%arg0: i32) -> (i32, i32) {
    %c0_i32 = arith.constant 0 : i32
    %c0_i32_0 = arith.constant 0 : i32
    return %arg0, %c0_i32 : i32, i32
  }
  func.func @transform_1(%arg0: i32) -> (i32, i32) {
    %c0_i32 = arith.constant 0 : i32
    %c0_i32_0 = arith.constant 0 : i32
    %c0_i32_1 = arith.constant 0 : i32
    return %c0_i32, %c0_i32_0 : i32, i32
  }
  func.func @transform_2(%arg0: i32) -> (i32, i32) {
    %c0_i32 = arith.constant 0 : i32
    %c0_i32_0 = arith.constant 0 : i32
    %c0_i32_1 = arith.constant 0 : i32
    return %c0_i32, %c0_i32_0 : i32, i32
  }
  func.func @transform_3(%arg0: i32) -> (i32, i32) {
    %c0_i32 = arith.constant 0 : i32
    %c0_i32_0 = arith.constant 0 : i32
    %c0_i32_1 = arith.constant 0 : i32
    return %c0_i32, %c0_i32_0 : i32, i32
  }
  func.func @transform_4(%arg0: i32) -> (i32, i32) {
    %c0_i32 = arith.constant 0 : i32
    %c0_i32_0 = arith.constant 0 : i32
    %c0_i32_1 = arith.constant 0 : i32
    return %c0_i32, %c0_i32_0 : i32, i32
  }
  func.func @transform_5(%arg0: i32) -> (i32, i32) {
    %c0_i32 = arith.constant 0 : i32
    %c0_i32_0 = arith.constant 0 : i32
    %c0_i32_1 = arith.constant 0 : i32
    return %c0_i32, %c0_i32_0 : i32, i32
  }
  func.func @transform_6(%arg0: i32) -> (i32, i32) {
    %c0_i32 = arith.constant 0 : i32
    %c0_i32_0 = arith.constant 0 : i32
    %c0_i32_1 = arith.constant 0 : i32
    return %c0_i32, %c0_i32_0 : i32, i32
  }
  func.func @transform_7(%arg0: i32) -> (i32, i32) {
    %c0_i32 = arith.constant 0 : i32
    %c0_i32_0 = arith.constant 0 : i32
    %c0_i32_1 = arith.constant 0 : i32
    return %c0_i32, %c0_i32_0 : i32, i32
  }
  func.func @transform_8(%arg0: i32) -> (i32, i32) {
    %c0_i32 = arith.constant 0 : i32
    %c0_i32_0 = arith.constant 0 : i32
    %c0_i32_1 = arith.constant 0 : i32
    return %c0_i32, %c0_i32_0 : i32, i32
  }
  func.func @transform_9(%arg0: i32) -> (i32, i32) {
    %c0_i32 = arith.constant 0 : i32
    %c0_i32_0 = arith.constant 0 : i32
    %c0_i32_1 = arith.constant 0 : i32
    return %c0_i32, %c0_i32_0 : i32, i32
  }
  func.func @transform_10(%arg0: i32) -> (i32, i32) {
    %c0_i32 = arith.constant 0 : i32
    %c0_i32_0 = arith.constant 0 : i32
    %c0_i32_1 = arith.constant 0 : i32
    return %c0_i32, %c0_i32_0 : i32, i32
  }
  func.func @transform_11(%arg0: i32) -> (i32, i32) {
    %c0_i32 = arith.constant 0 : i32
    %c0_i32_0 = arith.constant 0 : i32
    %c0_i32_1 = arith.constant 0 : i32
    return %c0_i32, %c0_i32_0 : i32, i32
  }
  func.func @transform_12(%arg0: i32) -> (i32, i32) {
    %c0_i32 = arith.constant 0 : i32
    %c0_i32_0 = arith.constant 0 : i32
    %c0_i32_1 = arith.constant 0 : i32
    return %c0_i32, %c0_i32_0 : i32, i32
  }
  func.func @transform_13(%arg0: i32) -> (i32, i32) {
    %c0_i32 = arith.constant 0 : i32
    %c0_i32_0 = arith.constant 0 : i32
    %c0_i32_1 = arith.constant 0 : i32
    return %c0_i32, %c0_i32_0 : i32, i32
  }
  func.func @transform_14(%arg0: i32) -> (i32, i32) {
    %c0_i32 = arith.constant 0 : i32
    %c0_i32_0 = arith.constant 0 : i32
    %c0_i32_1 = arith.constant 0 : i32
    return %c0_i32, %c0_i32_0 : i32, i32
  }
  func.func @transform_15(%arg0: i32) -> (i32, i32) {
    %c0_i32 = arith.constant 0 : i32
    %c0_i32_0 = arith.constant 0 : i32
    %c0_i32_1 = arith.constant 0 : i32
    return %c0_i32, %c0_i32_0 : i32, i32
  }
  func.func @transform_16(%arg0: i32) -> (i32, i32) {
    %c0_i32 = arith.constant 0 : i32
    %c0_i32_0 = arith.constant 0 : i32
    %c0_i32_1 = arith.constant 0 : i32
    return %c0_i32, %c0_i32_0 : i32, i32
  }
  func.func @transform_17(%arg0: i32) -> (i32, i32) {
    %c0_i32 = arith.constant 0 : i32
    %c0_i32_0 = arith.constant 0 : i32
    return %arg0, %c0_i32 : i32, i32
  }
}

</mosaic_0001>

<llo_original>
// kernel: forward.1
$region0: #{forward.1}
  #allocation0 [shape = 'u32[]', space=smem, size = 0x4, offset = 0x4, fixed_abs, tag = 'smem constant byte address 0x4 - core index']
  #allocation1 [shape = 'u32[72,128]{1,0:T(1,128)}', space=vmem, size = 0x9000, scoped, tag = 'internal scratch']
  %s0 = inlined_call_operand.vmem [shape: f32[256,28], index: 0, kind: input, shape index: {}]
  %s1 = inlined_call_operand.vmem [shape: f32[84,156], index: 1, kind: input, shape index: {}]
  %s2 = inlined_call_operand.vmem [shape: f32[1,156], index: 2, kind: input, shape index: {}]
  %s3 = inlined_call_operand.vmem [shape: f32[128,256], index: 3, kind: input, shape index: {}]
  %s4 = inlined_call_operand.vmem [shape: f32[156,206], index: 4, kind: input, shape index: {}]
  %s5 = inlined_call_operand.vmem [shape: f32[234,176], index: 5, kind: input, shape index: {}]
  %s6 = inlined_call_operand.vmem [shape: f32[1,176], index: 6, kind: input, shape index: {}]
  %s7 = inlined_call_operand.vmem [shape: f32[64,128], index: 7, kind: input, shape index: {}]
  %s8 = inlined_call_operand.vmem [shape: f32[176,208], index: 8, kind: input, shape index: {}]
  %s9 = inlined_call_operand.vmem [shape: f32[8,64], index: 9, kind: input, shape index: {}]
  %s10 = inlined_call_operand.vmem [shape: f32[64,5], index: 10, kind: input, shape index: {}]
  %s11 = inlined_call_operand.vmem [shape: f32[400,120], index: 11, kind: input, shape index: {}]
  %s12 = inlined_call_operand.vmem [shape: f32[1,120], index: 12, kind: input, shape index: {}]
  %s13 = inlined_call_operand.hbm [shape: f32[120,240], index: 13, kind: input, shape index: {}]
  %s14 = inlined_call_operand.vmem [shape: f32[1,240], index: 14, kind: input, shape index: {}]
  %s15 = inlined_call_operand.vmem [shape: f32[240,10], index: 15, kind: input, shape index: {}]
  %s16 = inlined_call_operand.vmem [shape: f32[1,10], index: 16, kind: input, shape index: {}]
  %s17 = inlined_call_operand.vmem [shape: f32[8,10], index: 17, kind: output, shape index: {}]
  %s18 = sld [smem:[#allocation0]]
  $region82: #{forward.1} parent=0
    _
  %s20 = ssub.s32 1, %s18
  %s21 = scalar_select 0, %s20, %s18
  $region1: #{forward.1} parent=0
    #allocation2 [shape = 'u8[122880]{0}', space=vmem, size = 0x1e000, scoped, tag = 'input window, operand 13, single buffered']
    #allocation3 [shape = 's32[1]{0}', space=sflag, size = 0x4, scoped, tag = 'scoped memory for forward.1']
    %22 = vsyncpa [#allocation3], 0
    // Predicated region
    $region2: #{forward.1} parent=1 // pred_check
      _
    $region3: #{forward.1} parent=1 // pred_check_branch
      %24 = sbr.rel (0) target = $region5
    $region4: #{forward.1} parent=1 // pred_region
      _
    $region5: #{forward.1} parent=1 // pred_fallthru
      _
    // Predicated region
    $region6: #{forward.1} parent=1 // pred_check
      _
    $region7: #{forward.1} parent=1 // pred_check_branch
      %26 = sbr.rel (0) target = $region9
    $region8: #{forward.1} parent=1 // pred_region
      _
    $region9: #{forward.1} parent=1 // pred_fallthru
      _
    // Predicated region
    $region10: #{forward.1} parent=1 // pred_check
      _
    $region11: #{forward.1} parent=1 // pred_check_branch
      %28 = sbr.rel (0) target = $region13
    $region12: #{forward.1} parent=1 // pred_region
      _
    $region13: #{forward.1} parent=1 // pred_fallthru
      _
    // Predicated region
    $region14: #{forward.1} parent=1 // pred_check
      _
    $region15: #{forward.1} parent=1 // pred_check_branch
      %30 = sbr.rel (0) target = $region17
    $region16: #{forward.1} parent=1 // pred_region
      _
    $region17: #{forward.1} parent=1 // pred_fallthru
      _
    // Predicated region
    $region18: #{forward.1} parent=1 // pred_check
      _
    $region19: #{forward.1} parent=1 // pred_check_branch
      %32 = sbr.rel (0) target = $region21
    $region20: #{forward.1} parent=1 // pred_region
      _
    $region21: #{forward.1} parent=1 // pred_fallthru
      _
    // Predicated region
    $region22: #{forward.1} parent=1 // pred_check
      _
    $region23: #{forward.1} parent=1 // pred_check_branch
      %34 = sbr.rel (0) target = $region25
    $region24: #{forward.1} parent=1 // pred_region
      _
    $region25: #{forward.1} parent=1 // pred_fallthru
      _
    // Predicated region
    $region26: #{forward.1} parent=1 // pred_check
      _
    $region27: #{forward.1} parent=1 // pred_check_branch
      %36 = sbr.rel (0) target = $region29
    $region28: #{forward.1} parent=1 // pred_region
      _
    $region29: #{forward.1} parent=1 // pred_fallthru
      _
    // Predicated region
    $region30: #{forward.1} parent=1 // pred_check
      _
    $region31: #{forward.1} parent=1 // pred_check_branch
      %38 = sbr.rel (0) target = $region33
    $region32: #{forward.1} parent=1 // pred_region
      _
    $region33: #{forward.1} parent=1 // pred_fallthru
      _
    // Predicated region
    $region34: #{forward.1} parent=1 // pred_check
      _
    $region35: #{forward.1} parent=1 // pred_check_branch
      %40 = sbr.rel (0) target = $region37
    $region36: #{forward.1} parent=1 // pred_region
      _
    $region37: #{forward.1} parent=1 // pred_fallthru
      _
    // Predicated region
    $region38: #{forward.1} parent=1 // pred_check
      _
    $region39: #{forward.1} parent=1 // pred_check_branch
      %42 = sbr.rel (0) target = $region41
    $region40: #{forward.1} parent=1 // pred_region
      _
    $region41: #{forward.1} parent=1 // pred_fallthru
      _
    // Predicated region
    $region42: #{forward.1} parent=1 // pred_check
      _
    $region43: #{forward.1} parent=1 // pred_check_branch
      %44 = sbr.rel (0) target = $region45
    $region44: #{forward.1} parent=1 // pred_region
      _
    $region45: #{forward.1} parent=1 // pred_fallthru
      _
    // Predicated region
    $region46: #{forward.1} parent=1 // pred_check
      _
    $region47: #{forward.1} parent=1 // pred_check_branch
      %46 = sbr.rel (0) target = $region49
    $region48: #{forward.1} parent=1 // pred_region
      _
    $region49: #{forward.1} parent=1 // pred_fallthru
      _
    // Predicated region
    $region50: #{forward.1} parent=1 // pred_check
      _
    $region51: #{forward.1} parent=1 // pred_check_branch
      %48 = sbr.rel (0) target = $region53
    $region52: #{forward.1} parent=1 // pred_region
      _
    $region53: #{forward.1} parent=1 // pred_fallthru
      _
    // Predicated region
    $region54: #{forward.1} parent=1 // pred_check
      _
    $region55: #{forward.1} parent=1 // pred_check_branch
      %50 = sbr.rel (0) target = $region57
    $region56: #{forward.1} parent=1 // pred_region
      %52 = vsyncadd [#allocation3], 0
      %s53 = sshll.u32 %s13, 4
      %s54 = int_to_ptr.hbm [resolvable:$true] %s53
      %s55 = sshll.u32 [#allocation2], 4
      %s56 = int_to_ptr.vmem [resolvable:$true] %s55
      %61 = dma.hbm_to_vmem [thread:$0]  %s54, 3840, %s56, [#allocation3], 256, 256, 16
    $region57: #{forward.1} parent=1 // pred_fallthru
      _
    // Predicated region
    $region58: #{forward.1} parent=1 // pred_check
      _
    $region59: #{forward.1} parent=1 // pred_check_branch
      %63 = sbr.rel (0) target = $region61
    $region60: #{forward.1} parent=1 // pred_region
      _
    $region61: #{forward.1} parent=1 // pred_fallthru
      _
    // Predicated region
    $region62: #{forward.1} parent=1 // pred_check
      _
    $region63: #{forward.1} parent=1 // pred_check_branch
      %65 = sbr.rel (0) target = $region65
    $region64: #{forward.1} parent=1 // pred_region
      _
    $region65: #{forward.1} parent=1 // pred_fallthru
      _
    // Predicated region
    $region66: #{forward.1} parent=1 // pred_check
      _
    $region67: #{forward.1} parent=1 // pred_check_branch
      %67 = sbr.rel (0) target = $region69
    $region68: #{forward.1} parent=1 // pred_region
      _
    $region69: #{forward.1} parent=1 // pred_fallthru
      _
    // Predicated region
    $region70: #{forward.1} parent=1 // pred_check
      _
    $region71: #{forward.1} parent=1 // pred_check_branch
      %69 = sbr.rel (0) target = $region73
    $region72: #{forward.1} parent=1 // pred_region
      %71 = dma.done [#allocation3], 3840
    $region73: #{forward.1} parent=1 // pred_fallthru
      _
    %v72 = vld [vmem:[%s0] sm:$0xff]
    %v73 = vld [vmem:[%s0 + $0x8] sm:$0xff]
    %v74 = vld [vmem:[%s0 + $0x10] sm:$0xff]
    %v75 = vld [vmem:[%s0 + $0x18] sm:$0xff]
    %v76 = vld [vmem:[%s0 + $0x20] sm:$0xff]
    %v77 = vld [vmem:[%s0 + $0x28] sm:$0xff]
    %v78 = vld [vmem:[%s0 + $0x30] sm:$0xff]
    %v79 = vld [vmem:[%s0 + $0x38] sm:$0xff]
    %v80 = vld [vmem:[%s0 + $0x40] sm:$0xff]
    %v81 = vld [vmem:[%s0 + $0x48] sm:$0xff]
    %v82 = vld [vmem:[%s0 + $0x50] sm:$0xff]
    %v83 = vld [vmem:[%s0 + $0x58] sm:$0xff]
    %v84 = vld [vmem:[%s0 + $0x60] sm:$0xff]
    %v85 = vld [vmem:[%s0 + $0x68] sm:$0xff]
    %v86 = vld [vmem:[%s0 + $0x70] sm:$0xff]
    %v87 = vld [vmem:[%s0 + $0x78] sm:$0xff]
    %v88 = vld [vmem:[%s0 + $0x80] sm:$0xff]
    %v89 = vld [vmem:[%s0 + $0x88] sm:$0xff]
    %v90 = vld [vmem:[%s0 + $0x90] sm:$0xff]
    %v91 = vld [vmem:[%s0 + $0x98] sm:$0xff]
    %v92 = vld [vmem:[%s0 + $0xa0] sm:$0xff]
    %v93 = vld [vmem:[%s0 + $0xa8] sm:$0xff]
    %v94 = vld [vmem:[%s0 + $0xb0] sm:$0xff]
    %v95 = vld [vmem:[%s0 + $0xb8] sm:$0xff]
    %v96 = vld [vmem:[%s0 + $0xc0] sm:$0xff]
    %v97 = vld [vmem:[%s0 + $0xc8] sm:$0xff]
    %v98 = vld [vmem:[%s0 + $0xd0] sm:$0xff]
    %v99 = vld [vmem:[%s0 + $0xd8] sm:$0xff]
    %v100 = vld [vmem:[%s0 + $0xe0] sm:$0xff]
    %v101 = vld [vmem:[%s0 + $0xe8] sm:$0xff]
    %v102 = vld [vmem:[%s0 + $0xf0] sm:$0xff]
    %v103 = vld [vmem:[%s0 + $0xf8] sm:$0xff]
    %v104 = vrot.slane %v72, 1
    %v105 = vrot.slane %v73, 1
    %v106 = vrot.slane %v74, 1
    %v107 = vrot.slane %v75, 1
    %v108 = vrot.slane %v76, 1
    %v109 = vrot.slane %v77, 1
    %v110 = vrot.slane %v78, 1
    %v111 = vrot.slane %v79, 1
    %v112 = vrot.slane %v80, 1
    %v113 = vrot.slane %v81, 1
    %v114 = vrot.slane %v82, 1
    %v115 = vrot.slane %v83, 1
    %v116 = vrot.slane %v84, 1
    %v117 = vrot.slane %v85, 1
    %v118 = vrot.slane %v86, 1
    %v119 = vrot.slane %v87, 1
    %v120 = vrot.slane %v88, 1
    %v121 = vrot.slane %v89, 1
    %v122 = vrot.slane %v90, 1
    %v123 = vrot.slane %v91, 1
    %v124 = vrot.slane %v92, 1
    %v125 = vrot.slane %v93, 1
    %v126 = vrot.slane %v94, 1
    %v127 = vrot.slane %v95, 1
    %v128 = vrot.slane %v96, 1
    %v129 = vrot.slane %v97, 1
    %v130 = vrot.slane %v98, 1
    %v131 = vrot.slane %v99, 1
    %v132 = vrot.slane %v100, 1
    %v133 = vrot.slane %v101, 1
    %v134 = vrot.slane %v102, 1
    %v135 = vrot.slane %v103, 1
    %v136 = vlaneseq
    %v137 = vshrl.u32 %v136, 7
    %vm138 = vcmp.lt.s32.totalorder %v137, 7
    %v139 = vsel %vm138, %v134, %v135
    %v140 = vsel %vm138, %v133, %v134
    %v141 = vsel %vm138, %v132, %v133
    %v142 = vsel %vm138, %v131, %v132
    %v143 = vsel %vm138, %v130, %v131
    %v144 = vsel %vm138, %v129, %v130
    %v145 = vsel %vm138, %v128, %v129
    %v146 = vsel %vm138, %v127, %v128
    %v147 = vsel %vm138, %v126, %v127
    %v148 = vsel %vm138, %v125, %v126
    %v149 = vsel %vm138, %v124, %v125
    %v150 = vsel %vm138, %v123, %v124
    %v151 = vsel %vm138, %v122, %v123
    %v152 = vsel %vm138, %v121, %v122
    %v153 = vsel %vm138, %v120, %v121
    %v154 = vsel %vm138, %v119, %v120
    %v155 = vsel %vm138, %v118, %v119
    %v156 = vsel %vm138, %v117, %v118
    %v157 = vsel %vm138, %v116, %v117
    %v158 = vsel %vm138, %v115, %v116
    %v159 = vsel %vm138, %v114, %v115
    %v160 = vsel %vm138, %v113, %v114
    %v161 = vsel %vm138, %v112, %v113
    %v162 = vsel %vm138, %v111, %v112
    %v163 = vsel %vm138, %v110, %v111
    %v164 = vsel %vm138, %v109, %v110
    %v165 = vsel %vm138, %v108, %v109
    %v166 = vsel %vm138, %v107, %v108
    %v167 = vsel %vm138, %v106, %v107
    %v168 = vsel %vm138, %v105, %v106
    %v169 = vsel %vm138, %v104, %v105
    %v170 = vsel %vm138, %v135, %v104
    %v171 = vrot.slane %v72, 2
    %v172 = vrot.slane %v73, 2
    %v173 = vrot.slane %v74, 2
    %v174 = vrot.slane %v75, 2
    %v175 = vrot.slane %v76, 2
    %v176 = vrot.slane %v77, 2
    %v177 = vrot.slane %v78, 2
    %v178 = vrot.slane %v79, 2
    %v179 = vrot.slane %v80, 2
    %v180 = vrot.slane %v81, 2
    %v181 = vrot.slane %v82, 2
    %v182 = vrot.slane %v83, 2
    %v183 = vrot.slane %v84, 2
    %v184 = vrot.slane %v85, 2
    %v185 = vrot.slane %v86, 2
    %v186 = vrot.slane %v87, 2
    %v187 = vrot.slane %v88, 2
    %v188 = vrot.slane %v89, 2
    %v189 = vrot.slane %v90, 2
    %v190 = vrot.slane %v91, 2
    %v191 = vrot.slane %v92, 2
    %v192 = vrot.slane %v93, 2
    %v193 = vrot.slane %v94, 2
    %v194 = vrot.slane %v95, 2
    %v195 = vrot.slane %v96, 2
    %v196 = vrot.slane %v97, 2
    %v197 = vrot.slane %v98, 2
    %v198 = vrot.slane %v99, 2
    %v199 = vrot.slane %v100, 2
    %v200 = vrot.slane %v101, 2
    %v201 = vrot.slane %v102, 2
    %v202 = vrot.slane %v103, 2
    %vm203 = vcmp.lt.s32.totalorder %v137, 6
    %v204 = vsel %vm203, %v201, %v202
    %v205 = vsel %vm203, %v200, %v201
    %v206 = vsel %vm203, %v199, %v200
    %v207 = vsel %vm203, %v198, %v199
    %v208 = vsel %vm203, %v197, %v198
    %v209 = vsel %vm203, %v196, %v197
    %v210 = vsel %vm203, %v195, %v196
    %v211 = vsel %vm203, %v194, %v195
    %v212 = vsel %vm203, %v193, %v194
    %v213 = vsel %vm203, %v192, %v193
    %v214 = vsel %vm203, %v191, %v192
    %v215 = vsel %vm203, %v190, %v191
    %v216 = vsel %vm203, %v189, %v190
    %v217 = vsel %vm203, %v188, %v189
    %v218 = vsel %vm203, %v187, %v188
    %v219 = vsel %vm203, %v186, %v187
    %v220 = vsel %vm203, %v185, %v186
    %v221 = vsel %vm203, %v184, %v185
    %v222 = vsel %vm203, %v183, %v184
    %v223 = vsel %vm203, %v182, %v183
    %v224 = vsel %vm203, %v181, %v182
    %v225 = vsel %vm203, %v180, %v181
    %v226 = vsel %vm203, %v179, %v180
    %v227 = vsel %vm203, %v178, %v179
    %v228 = vsel %vm203, %v177, %v178
    %v229 = vsel %vm203, %v176, %v177
    %v230 = vsel %vm203, %v175, %v176
    %v231 = vsel %vm203, %v174, %v175
    %v232 = vsel %vm203, %v173, %v174
    %v233 = vsel %vm203, %v172, %v173
    %v234 = vsel %vm203, %v171, %v172
    %v235 = vsel %vm203, %v202, %v171
    %268 = vrot.lane.b32.xlu0 %v169, 28
    %v269 = vpop.permute.xlu0 %268
    %270 = vrot.lane.b32.xlu0 %v168, 28
    %v271 = vpop.permute.xlu0 %270
    %272 = vrot.lane.b32.xlu0 %v167, 28
    %v273 = vpop.permute.xlu0 %272
    %274 = vrot.lane.b32.xlu0 %v166, 28
    %v275 = vpop.permute.xlu0 %274
    %276 = vrot.lane.b32.xlu0 %v165, 28
    %v277 = vpop.permute.xlu0 %276
    %278 = vrot.lane.b32.xlu0 %v164, 28
    %v279 = vpop.permute.xlu0 %278
    %280 = vrot.lane.b32.xlu0 %v163, 28
    %v281 = vpop.permute.xlu0 %280
    %282 = vrot.lane.b32.xlu0 %v162, 28
    %v283 = vpop.permute.xlu0 %282
    %284 = vrot.lane.b32.xlu0 %v161, 28
    %v285 = vpop.permute.xlu0 %284
    %286 = vrot.lane.b32.xlu0 %v160, 28
    %v287 = vpop.permute.xlu0 %286
    %288 = vrot.lane.b32.xlu0 %v159, 28
    %v289 = vpop.permute.xlu0 %288
    %290 = vrot.lane.b32.xlu0 %v158, 28
    %v291 = vpop.permute.xlu0 %290
    %292 = vrot.lane.b32.xlu0 %v157, 28
    %v293 = vpop.permute.xlu0 %292
    %294 = vrot.lane.b32.xlu0 %v156, 28
    %v295 = vpop.permute.xlu0 %294
    %296 = vrot.lane.b32.xlu0 %v155, 28
    %v297 = vpop.permute.xlu0 %296
    %298 = vrot.lane.b32.xlu0 %v154, 28
    %v299 = vpop.permute.xlu0 %298
    %300 = vrot.lane.b32.xlu0 %v153, 28
    %v301 = vpop.permute.xlu0 %300
    %302 = vrot.lane.b32.xlu0 %v152, 28
    %v303 = vpop.permute.xlu0 %302
    %304 = vrot.lane.b32.xlu0 %v151, 28
    %v305 = vpop.permute.xlu0 %304
    %306 = vrot.lane.b32.xlu0 %v150, 28
    %v307 = vpop.permute.xlu0 %306
    %308 = vrot.lane.b32.xlu0 %v149, 28
    %v309 = vpop.permute.xlu0 %308
    %310 = vrot.lane.b32.xlu0 %v148, 28
    %v311 = vpop.permute.xlu0 %310
    %312 = vrot.lane.b32.xlu0 %v147, 28
    %v313 = vpop.permute.xlu0 %312
    %314 = vrot.lane.b32.xlu0 %v146, 28
    %v315 = vpop.permute.xlu0 %314
    %316 = vrot.lane.b32.xlu0 %v145, 28
    %v317 = vpop.permute.xlu0 %316
    %318 = vrot.lane.b32.xlu0 %v144, 28
    %v319 = vpop.permute.xlu0 %318
    %320 = vrot.lane.b32.xlu0 %v143, 28
    %v321 = vpop.permute.xlu0 %320
    %322 = vrot.lane.b32.xlu0 %v142, 28
    %v323 = vpop.permute.xlu0 %322
    %324 = vrot.lane.b32.xlu0 %v141, 28
    %v325 = vpop.permute.xlu0 %324
    %326 = vrot.lane.b32.xlu0 %v140, 28
    %v327 = vpop.permute.xlu0 %326
    %328 = vrot.lane.b32.xlu0 %v139, 28
    %v329 = vpop.permute.xlu0 %328
    %330 = vrot.lane.b32.xlu0 %v170, 28
    %v331 = vpop.permute.xlu0 %330
    %396 = vrot.lane.b32.xlu0 %v234, 56
    %v397 = vpop.permute.xlu0 %396
    %398 = vrot.lane.b32.xlu0 %v233, 56
    %v399 = vpop.permute.xlu0 %398
    %400 = vrot.lane.b32.xlu0 %v232, 56
    %v401 = vpop.permute.xlu0 %400
    %402 = vrot.lane.b32.xlu0 %v231, 56
    %v403 = vpop.permute.xlu0 %402
    %404 = vrot.lane.b32.xlu0 %v230, 56
    %v405 = vpop.permute.xlu0 %404
    %406 = vrot.lane.b32.xlu0 %v229, 56
    %v407 = vpop.permute.xlu0 %406
    %408 = vrot.lane.b32.xlu0 %v228, 56
    %v409 = vpop.permute.xlu0 %408
    %410 = vrot.lane.b32.xlu0 %v227, 56
    %v411 = vpop.permute.xlu0 %410
    %412 = vrot.lane.b32.xlu0 %v226, 56
    %v413 = vpop.permute.xlu0 %412
    %414 = vrot.lane.b32.xlu0 %v225, 56
    %v415 = vpop.permute.xlu0 %414
    %416 = vrot.lane.b32.xlu0 %v224, 56
    %v417 = vpop.permute.xlu0 %416
    %418 = vrot.lane.b32.xlu0 %v223, 56
    %v419 = vpop.permute.xlu0 %418
    %420 = vrot.lane.b32.xlu0 %v222, 56
    %v421 = vpop.permute.xlu0 %420
    %422 = vrot.lane.b32.xlu0 %v221, 56
    %v423 = vpop.permute.xlu0 %422
    %424 = vrot.lane.b32.xlu0 %v220, 56
    %v425 = vpop.permute.xlu0 %424
    %426 = vrot.lane.b32.xlu0 %v219, 56
    %v427 = vpop.permute.xlu0 %426
    %428 = vrot.lane.b32.xlu0 %v218, 56
    %v429 = vpop.permute.xlu0 %428
    %430 = vrot.lane.b32.xlu0 %v217, 56
    %v431 = vpop.permute.xlu0 %430
    %432 = vrot.lane.b32.xlu0 %v216, 56
    %v433 = vpop.permute.xlu0 %432
    %434 = vrot.lane.b32.xlu0 %v215, 56
    %v435 = vpop.permute.xlu0 %434
    %436 = vrot.lane.b32.xlu0 %v214, 56
    %v437 = vpop.permute.xlu0 %436
    %438 = vrot.lane.b32.xlu0 %v213, 56
    %v439 = vpop.permute.xlu0 %438
    %440 = vrot.lane.b32.xlu0 %v212, 56
    %v441 = vpop.permute.xlu0 %440
    %442 = vrot.lane.b32.xlu0 %v211, 56
    %v443 = vpop.permute.xlu0 %442
    %444 = vrot.lane.b32.xlu0 %v210, 56
    %v445 = vpop.permute.xlu0 %444
    %446 = vrot.lane.b32.xlu0 %v209, 56
    %v447 = vpop.permute.xlu0 %446
    %448 = vrot.lane.b32.xlu0 %v208, 56
    %v449 = vpop.permute.xlu0 %448
    %450 = vrot.lane.b32.xlu0 %v207, 56
    %v451 = vpop.permute.xlu0 %450
    %452 = vrot.lane.b32.xlu0 %v206, 56
    %v453 = vpop.permute.xlu0 %452
    %454 = vrot.lane.b32.xlu0 %v205, 56
    %v455 = vpop.permute.xlu0 %454
    %456 = vrot.lane.b32.xlu0 %v204, 56
    %v457 = vpop.permute.xlu0 %456
    %458 = vrot.lane.b32.xlu0 %v235, 56
    %v459 = vpop.permute.xlu0 %458
    %vm492 = vcmask 228352
    %v493 = vsel %vm492, %v72, %v269
    %v494 = vsel %vm492, %v73, %v271
    %v495 = vsel %vm492, %v74, %v273
    %v496 = vsel %vm492, %v75, %v275
    %v497 = vsel %vm492, %v76, %v277
    %v498 = vsel %vm492, %v77, %v279
    %v499 = vsel %vm492, %v78, %v281
    %v500 = vsel %vm492, %v79, %v283
    %v501 = vsel %vm492, %v80, %v285
    %v502 = vsel %vm492, %v81, %v287
    %v503 = vsel %vm492, %v82, %v289
    %v504 = vsel %vm492, %v83, %v291
    %v505 = vsel %vm492, %v84, %v293
    %v506 = vsel %vm492, %v85, %v295
    %v507 = vsel %vm492, %v86, %v297
    %v508 = vsel %vm492, %v87, %v299
    %v509 = vsel %vm492, %v88, %v301
    %v510 = vsel %vm492, %v89, %v303
    %v511 = vsel %vm492, %v90, %v305
    %v512 = vsel %vm492, %v91, %v307
    %v513 = vsel %vm492, %v92, %v309
    %v514 = vsel %vm492, %v93, %v311
    %v515 = vsel %vm492, %v94, %v313
    %v516 = vsel %vm492, %v95, %v315
    %v517 = vsel %vm492, %v96, %v317
    %v518 = vsel %vm492, %v97, %v319
    %v519 = vsel %vm492, %v98, %v321
    %v520 = vsel %vm492, %v99, %v323
    %v521 = vsel %vm492, %v100, %v325
    %v522 = vsel %vm492, %v101, %v327
    %v523 = vsel %vm492, %v102, %v329
    %v524 = vsel %vm492, %v103, %v331
    %vm525 = vcmask 457728
    %v526 = vsel %vm525, %v493, %v397
    %v527 = vsel %vm525, %v494, %v399
    %v528 = vsel %vm525, %v495, %v401
    %v529 = vsel %vm525, %v496, %v403
    %v530 = vsel %vm525, %v497, %v405
    %v531 = vsel %vm525, %v498, %v407
    %v532 = vsel %vm525, %v499, %v409
    %v533 = vsel %vm525, %v500, %v411
    %v534 = vsel %vm525, %v501, %v413
    %v535 = vsel %vm525, %v502, %v415
    %v536 = vsel %vm525, %v503, %v417
    %v537 = vsel %vm525, %v504, %v419
    %v538 = vsel %vm525, %v505, %v421
    %v539 = vsel %vm525, %v506, %v423
    %v540 = vsel %vm525, %v507, %v425
    %v541 = vsel %vm525, %v508, %v427
    %v542 = vsel %vm525, %v509, %v429
    %v543 = vsel %vm525, %v510, %v431
    %v544 = vsel %vm525, %v511, %v433
    %v545 = vsel %vm525, %v512, %v435
    %v546 = vsel %vm525, %v513, %v437
    %v547 = vsel %vm525, %v514, %v439
    %v548 = vsel %vm525, %v515, %v441
    %v549 = vsel %vm525, %v516, %v443
    %v550 = vsel %vm525, %v517, %v445
    %v551 = vsel %vm525, %v518, %v447
    %v552 = vsel %vm525, %v519, %v449
    %v553 = vsel %vm525, %v520, %v451
    %v554 = vsel %vm525, %v521, %v453
    %v555 = vsel %vm525, %v522, %v455
    %v556 = vsel %vm525, %v523, %v457
    %v557 = vsel %vm525, %v524, %v459
    %v558 = vld [vmem:[%s1] sm:$0xff]
    %v559 = vld [vmem:[%s1 + $0x8] sm:$0xff]
    %v560 = vld [vmem:[%s1 + $0x10] sm:$0xff]
    %v561 = vld [vmem:[%s1 + $0x18] sm:$0xff]
    %v562 = vld [vmem:[%s1 + $0x20] sm:$0xff]
    %v563 = vld [vmem:[%s1 + $0x28] sm:$0xff]
    %v564 = vld [vmem:[%s1 + $0x30] sm:$0xff]
    %v565 = vld [vmem:[%s1 + $0x38] sm:$0xff]
    %v566 = vld [vmem:[%s1 + $0x40] sm:$0xff]
    %v567 = vld [vmem:[%s1 + $0x48] sm:$0xff]
    %v568 = vld [vmem:[%s1 + $0x50] sm:$0xff]
    %v569 = vld [vmem:[%s1 + $0x58] sm:$0xff]
    %v570 = vld [vmem:[%s1 + $0x60] sm:$0xff]
    %v571 = vld [vmem:[%s1 + $0x68] sm:$0xff]
    %v572 = vld [vmem:[%s1 + $0x70] sm:$0xff]
    %v573 = vld [vmem:[%s1 + $0x78] sm:$0xff]
    %v574 = vld [vmem:[%s1 + $0x80] sm:$0xff]
    %v575 = vld [vmem:[%s1 + $0x88] sm:$0xff]
    %v576 = vld [vmem:[%s1 + $0x90] sm:$0xff]
    %v577 = vld [vmem:[%s1 + $0x98] sm:$0xff]
    %v578 = vld [vmem:[%s1 + $0xa0] sm:$0xf]
    %v579 = vld [vmem:[%s1 + $0xa8] sm:$0xf]
    %v580 = vld [vmem:[%s2] sm:$0x3]
    %v582 = vperm.slane %v580, 0
    %v583 = vperm.slane %v580, 1
    %vm586 = vcmask 687104
    %v588 = vsel %vm586, %v526, 0
    %v591 = vsel %vm586, %v527, 0
    %v594 = vsel %vm586, %v528, 0
    %v597 = vsel %vm586, %v529, 0
    %v600 = vsel %vm586, %v530, 0
    %v603 = vsel %vm586, %v531, 0
    %v606 = vsel %vm586, %v532, 0
    %v609 = vsel %vm586, %v533, 0
    %v612 = vsel %vm586, %v534, 0
    %v615 = vsel %vm586, %v535, 0
    %v618 = vsel %vm586, %v536, 0
    %v621 = vsel %vm586, %v537, 0
    %v624 = vsel %vm586, %v538, 0
    %v627 = vsel %vm586, %v539, 0
    %v630 = vsel %vm586, %v540, 0
    %v633 = vsel %vm586, %v541, 0
    %v636 = vsel %vm586, %v542, 0
    %v639 = vsel %vm586, %v543, 0
    %v642 = vsel %vm586, %v544, 0
    %v645 = vsel %vm586, %v545, 0
    %v648 = vsel %vm586, %v546, 0
    %v651 = vsel %vm586, %v547, 0
    %v654 = vsel %vm586, %v548, 0
    %v657 = vsel %vm586, %v549, 0
    %v660 = vsel %vm586, %v550, 0
    %v663 = vsel %vm586, %v551, 0
    %v666 = vsel %vm586, %v552, 0
    %v669 = vsel %vm586, %v553, 0
    %v672 = vsel %vm586, %v554, 0
    %v675 = vsel %vm586, %v555, 0
    %v678 = vsel %vm586, %v556, 0
    %v681 = vsel %vm586, %v557, 0
    %vm683 = vcmask 1043456
    %v685 = vsel %vm683, %v578, 0
    %v688 = vsel %vm683, %v579, 0
    %690 = vmatpush.msra.mxu0 0.0
    %691 = vmatpush.msra.mxu0 0.0
    %692 = vmatpush.msra.mxu0 0.0
    %693 = vmatpush.msra.mxu0 0.0
    %694 = vmatpush.msra.mxu0 0.0
    %695 = vmatpush.msra.mxu0 %v685
    %696 = vmatpush.msra.mxu0 %v576
    %697 = vmatpush.msra.mxu0 %v574
    %698 = vmatpush.msra.mxu0 %v572
    %699 = vmatpush.msra.mxu0 %v570
    %700 = vmatpush.msra.mxu0 %v568
    %701 = vmatpush.msra.mxu0 %v566
    %702 = vmatpush.msra.mxu0 %v564
    %703 = vmatpush.msra.mxu0 %v562
    %704 = vmatpush.msra.mxu0 %v560
    %705 = vmatpush.msra.mxu0 %v558
    %706 = vmatmul.f32.gmra.mxu0 %v588
    %v707 = vpop.f32.mrf.mxu0
    %v708 = vadd.f32 %v582, %v707
    %709 = vmatmul.f32.gmra.mxu0 %v591
    %v710 = vpop.f32.mrf.mxu0
    %v711 = vadd.f32 %v582, %v710
    %712 = vmatmul.f32.gmra.mxu0 %v594
    %v713 = vpop.f32.mrf.mxu0
    %v714 = vadd.f32 %v582, %v713
    %715 = vmatmul.f32.gmra.mxu0 %v597
    %v716 = vpop.f32.mrf.mxu0
    %v717 = vadd.f32 %v582, %v716
    %718 = vmatmul.f32.gmra.mxu0 %v600
    %v719 = vpop.f32.mrf.mxu0
    %v720 = vadd.f32 %v582, %v719
    %721 = vmatmul.f32.gmra.mxu0 %v603
    %v722 = vpop.f32.mrf.mxu0
    %v723 = vadd.f32 %v582, %v722
    %724 = vmatmul.f32.gmra.mxu0 %v606
    %v725 = vpop.f32.mrf.mxu0
    %v726 = vadd.f32 %v582, %v725
    %727 = vmatmul.f32.gmra.mxu0 %v609
    %v728 = vpop.f32.mrf.mxu0
    %v729 = vadd.f32 %v582, %v728
    %730 = vmatmul.f32.gmra.mxu0 %v612
    %v731 = vpop.f32.mrf.mxu0
    %v732 = vadd.f32 %v582, %v731
    %733 = vmatmul.f32.gmra.mxu0 %v615
    %v734 = vpop.f32.mrf.mxu0
    %v735 = vadd.f32 %v582, %v734
    %736 = vmatmul.f32.gmra.mxu0 %v618
    %v737 = vpop.f32.mrf.mxu0
    %v738 = vadd.f32 %v582, %v737
    %739 = vmatmul.f32.gmra.mxu0 %v621
    %v740 = vpop.f32.mrf.mxu0
    %v741 = vadd.f32 %v582, %v740
    %742 = vmatmul.f32.gmra.mxu0 %v624
    %v743 = vpop.f32.mrf.mxu0
    %v744 = vadd.f32 %v582, %v743
    %745 = vmatmul.f32.gmra.mxu0 %v627
    %v746 = vpop.f32.mrf.mxu0
    %v747 = vadd.f32 %v582, %v746
    %748 = vmatmul.f32.gmra.mxu0 %v630
    %v749 = vpop.f32.mrf.mxu0
    %v750 = vadd.f32 %v582, %v749
    %751 = vmatmul.f32.gmra.mxu0 %v633
    %v752 = vpop.f32.mrf.mxu0
    %v753 = vadd.f32 %v582, %v752
    %754 = vmatmul.f32.gmra.mxu0 %v636
    %v755 = vpop.f32.mrf.mxu0
    %v756 = vadd.f32 %v582, %v755
    %757 = vmatmul.f32.gmra.mxu0 %v639
    %v758 = vpop.f32.mrf.mxu0
    %v759 = vadd.f32 %v582, %v758
    %760 = vmatmul.f32.gmra.mxu0 %v642
    %v761 = vpop.f32.mrf.mxu0
    %v762 = vadd.f32 %v582, %v761
    %763 = vmatmul.f32.gmra.mxu0 %v645
    %v764 = vpop.f32.mrf.mxu0
    %v765 = vadd.f32 %v582, %v764
    %766 = vmatmul.f32.gmra.mxu0 %v648
    %v767 = vpop.f32.mrf.mxu0
    %v768 = vadd.f32 %v582, %v767
    %769 = vmatmul.f32.gmra.mxu0 %v651
    %v770 = vpop.f32.mrf.mxu0
    %v771 = vadd.f32 %v582, %v770
    %772 = vmatmul.f32.gmra.mxu0 %v654
    %v773 = vpop.f32.mrf.mxu0
    %v774 = vadd.f32 %v582, %v773
    %775 = vmatmul.f32.gmra.mxu0 %v657
    %v776 = vpop.f32.mrf.mxu0
    %v777 = vadd.f32 %v582, %v776
    %778 = vmatmul.f32.gmra.mxu0 %v660
    %v779 = vpop.f32.mrf.mxu0
    %v780 = vadd.f32 %v582, %v779
    %781 = vmatmul.f32.gmra.mxu0 %v663
    %v782 = vpop.f32.mrf.mxu0
    %v783 = vadd.f32 %v582, %v782
    %784 = vmatmul.f32.gmra.mxu0 %v666
    %v785 = vpop.f32.mrf.mxu0
    %v786 = vadd.f32 %v582, %v785
    %787 = vmatmul.f32.gmra.mxu0 %v669
    %v788 = vpop.f32.mrf.mxu0
    %v789 = vadd.f32 %v582, %v788
    %790 = vmatmul.f32.gmra.mxu0 %v672
    %v791 = vpop.f32.mrf.mxu0
    %v792 = vadd.f32 %v582, %v791
    %793 = vmatmul.f32.gmra.mxu0 %v675
    %v794 = vpop.f32.mrf.mxu0
    %v795 = vadd.f32 %v582, %v794
    %796 = vmatmul.f32.gmra.mxu0 %v678
    %v797 = vpop.f32.mrf.mxu0
    %v798 = vadd.f32 %v582, %v797
    %799 = vmatmul.f32.gmra.mxu0 %v681
    %v800 = vpop.f32.mrf.mxu0
    %v801 = vadd.f32 %v582, %v800
    %802 = vdwg.mxu0
    %803 = vmatpush.msra.mxu0 0.0
    %804 = vmatpush.msra.mxu0 0.0
    %805 = vmatpush.msra.mxu0 0.0
    %806 = vmatpush.msra.mxu0 0.0
    %807 = vmatpush.msra.mxu0 0.0
    %808 = vmatpush.msra.mxu0 %v688
    %809 = vmatpush.msra.mxu0 %v577
    %810 = vmatpush.msra.mxu0 %v575
    %811 = vmatpush.msra.mxu0 %v573
    %812 = vmatpush.msra.mxu0 %v571
    %813 = vmatpush.msra.mxu0 %v569
    %814 = vmatpush.msra.mxu0 %v567
    %815 = vmatpush.msra.mxu0 %v565
    %816 = vmatpush.msra.mxu0 %v563
    %817 = vmatpush.msra.mxu0 %v561
    %818 = vmatpush.msra.mxu0 %v559
    %819 = vmatmul.f32.gmra.mxu0 %v588
    %v820 = vpop.f32.mrf.mxu0
    %v821 = vadd.f32 %v583, %v820
    %822 = vmatmul.f32.gmra.mxu0 %v591
    %v823 = vpop.f32.mrf.mxu0
    %v824 = vadd.f32 %v583, %v823
    %825 = vmatmul.f32.gmra.mxu0 %v594
    %v826 = vpop.f32.mrf.mxu0
    %v827 = vadd.f32 %v583, %v826
    %828 = vmatmul.f32.gmra.mxu0 %v597
    %v829 = vpop.f32.mrf.mxu0
    %v830 = vadd.f32 %v583, %v829
    %831 = vmatmul.f32.gmra.mxu0 %v600
    %v832 = vpop.f32.mrf.mxu0
    %v833 = vadd.f32 %v583, %v832
    %834 = vmatmul.f32.gmra.mxu0 %v603
    %v835 = vpop.f32.mrf.mxu0
    %v836 = vadd.f32 %v583, %v835
    %837 = vmatmul.f32.gmra.mxu0 %v606
    %v838 = vpop.f32.mrf.mxu0
    %v839 = vadd.f32 %v583, %v838
    %840 = vmatmul.f32.gmra.mxu0 %v609
    %v841 = vpop.f32.mrf.mxu0
    %v842 = vadd.f32 %v583, %v841
    %843 = vmatmul.f32.gmra.mxu0 %v612
    %v844 = vpop.f32.mrf.mxu0
    %v845 = vadd.f32 %v583, %v844
    %846 = vmatmul.f32.gmra.mxu0 %v615
    %v847 = vpop.f32.mrf.mxu0
    %v848 = vadd.f32 %v583, %v847
    %849 = vmatmul.f32.gmra.mxu0 %v618
    %v850 = vpop.f32.mrf.mxu0
    %v851 = vadd.f32 %v583, %v850
    %852 = vmatmul.f32.gmra.mxu0 %v621
    %v853 = vpop.f32.mrf.mxu0
    %v854 = vadd.f32 %v583, %v853
    %855 = vmatmul.f32.gmra.mxu0 %v624
    %v856 = vpop.f32.mrf.mxu0
    %v857 = vadd.f32 %v583, %v856
    %858 = vmatmul.f32.gmra.mxu0 %v627
    %v859 = vpop.f32.mrf.mxu0
    %v860 = vadd.f32 %v583, %v859
    %861 = vmatmul.f32.gmra.mxu0 %v630
    %v862 = vpop.f32.mrf.mxu0
    %v863 = vadd.f32 %v583, %v862
    %864 = vmatmul.f32.gmra.mxu0 %v633
    %v865 = vpop.f32.mrf.mxu0
    %v866 = vadd.f32 %v583, %v865
    %867 = vmatmul.f32.gmra.mxu0 %v636
    %v868 = vpop.f32.mrf.mxu0
    %v869 = vadd.f32 %v583, %v868
    %870 = vmatmul.f32.gmra.mxu0 %v639
    %v871 = vpop.f32.mrf.mxu0
    %v872 = vadd.f32 %v583, %v871
    %873 = vmatmul.f32.gmra.mxu0 %v642
    %v874 = vpop.f32.mrf.mxu0
    %v875 = vadd.f32 %v583, %v874
    %876 = vmatmul.f32.gmra.mxu0 %v645
    %v877 = vpop.f32.mrf.mxu0
    %v878 = vadd.f32 %v583, %v877
    %879 = vmatmul.f32.gmra.mxu0 %v648
    %v880 = vpop.f32.mrf.mxu0
    %v881 = vadd.f32 %v583, %v880
    %882 = vmatmul.f32.gmra.mxu0 %v651
    %v883 = vpop.f32.mrf.mxu0
    %v884 = vadd.f32 %v583, %v883
    %885 = vmatmul.f32.gmra.mxu0 %v654
    %v886 = vpop.f32.mrf.mxu0
    %v887 = vadd.f32 %v583, %v886
    %888 = vmatmul.f32.gmra.mxu0 %v657
    %v889 = vpop.f32.mrf.mxu0
    %v890 = vadd.f32 %v583, %v889
    %891 = vmatmul.f32.gmra.mxu0 %v660
    %v892 = vpop.f32.mrf.mxu0
    %v893 = vadd.f32 %v583, %v892
    %894 = vmatmul.f32.gmra.mxu0 %v663
    %v895 = vpop.f32.mrf.mxu0
    %v896 = vadd.f32 %v583, %v895
    %897 = vmatmul.f32.gmra.mxu0 %v666
    %v898 = vpop.f32.mrf.mxu0
    %v899 = vadd.f32 %v583, %v898
    %900 = vmatmul.f32.gmra.mxu0 %v669
    %v901 = vpop.f32.mrf.mxu0
    %v902 = vadd.f32 %v583, %v901
    %903 = vmatmul.f32.gmra.mxu0 %v672
    %v904 = vpop.f32.mrf.mxu0
    %v905 = vadd.f32 %v583, %v904
    %906 = vmatmul.f32.gmra.mxu0 %v675
    %v907 = vpop.f32.mrf.mxu0
    %v908 = vadd.f32 %v583, %v907
    %909 = vmatmul.f32.gmra.mxu0 %v678
    %v910 = vpop.f32.mrf.mxu0
    %v911 = vadd.f32 %v583, %v910
    %912 = vmatmul.f32.gmra.mxu0 %v681
    %v913 = vpop.f32.mrf.mxu0
    %v914 = vadd.f32 %v583, %v913
    %915 = vdwg.mxu0
    %v916 = vmax.f32 %v708, 0.0
    %v917 = vmax.f32 %v821, 0.0
    %v918 = vmax.f32 %v711, 0.0
    %v919 = vmax.f32 %v824, 0.0
    %v920 = vmax.f32 %v714, 0.0
    %v921 = vmax.f32 %v827, 0.0
    %v922 = vmax.f32 %v717, 0.0
    %v923 = vmax.f32 %v830, 0.0
    %v924 = vmax.f32 %v720, 0.0
    %v925 = vmax.f32 %v833, 0.0
    %v926 = vmax.f32 %v723, 0.0
    %v927 = vmax.f32 %v836, 0.0
    %v928 = vmax.f32 %v726, 0.0
    %v929 = vmax.f32 %v839, 0.0
    %v930 = vmax.f32 %v729, 0.0
    %v931 = vmax.f32 %v842, 0.0
    %v932 = vmax.f32 %v732, 0.0
    %v933 = vmax.f32 %v845, 0.0
    %v934 = vmax.f32 %v735, 0.0
    %v935 = vmax.f32 %v848, 0.0
    %v936 = vmax.f32 %v738, 0.0
    %v937 = vmax.f32 %v851, 0.0
    %v938 = vmax.f32 %v741, 0.0
    %v939 = vmax.f32 %v854, 0.0
    %v940 = vmax.f32 %v744, 0.0
    %v941 = vmax.f32 %v857, 0.0
    %v942 = vmax.f32 %v747, 0.0
    %v943 = vmax.f32 %v860, 0.0
    %v944 = vmax.f32 %v750, 0.0
    %v945 = vmax.f32 %v863, 0.0
    %v946 = vmax.f32 %v753, 0.0
    %v947 = vmax.f32 %v866, 0.0
    %v948 = vmax.f32 %v756, 0.0
    %v949 = vmax.f32 %v869, 0.0
    %v950 = vmax.f32 %v759, 0.0
    %v951 = vmax.f32 %v872, 0.0
    %v952 = vmax.f32 %v762, 0.0
    %v953 = vmax.f32 %v875, 0.0
    %v954 = vmax.f32 %v765, 0.0
    %v955 = vmax.f32 %v878, 0.0
    %v956 = vmax.f32 %v768, 0.0
    %v957 = vmax.f32 %v881, 0.0
    %v958 = vmax.f32 %v771, 0.0
    %v959 = vmax.f32 %v884, 0.0
    %v960 = vmax.f32 %v774, 0.0
    %v961 = vmax.f32 %v887, 0.0
    %v962 = vmax.f32 %v777, 0.0
    %v963 = vmax.f32 %v890, 0.0
    %v964 = vmax.f32 %v780, 0.0
    %v965 = vmax.f32 %v893, 0.0
    %v966 = vmax.f32 %v783, 0.0
    %v967 = vmax.f32 %v896, 0.0
    %v968 = vmax.f32 %v786, 0.0
    %v969 = vmax.f32 %v899, 0.0
    %v970 = vmax.f32 %v789, 0.0
    %v971 = vmax.f32 %v902, 0.0
    %v972 = vmax.f32 %v792, 0.0
    %v973 = vmax.f32 %v905, 0.0
    %v974 = vmax.f32 %v795, 0.0
    %v975 = vmax.f32 %v908, 0.0
    %v976 = vmax.f32 %v798, 0.0
    %v977 = vmax.f32 %v911, 0.0
    %v978 = vmax.f32 %v801, 0.0
    %v979 = vmax.f32 %v914, 0.0
    %v980 = vld [vmem:[%s3] sm:$0xff]
    %v981 = vld [vmem:[%s3 + $0x8] sm:$0xff]
    %v982 = vld [vmem:[%s3 + $0x10] sm:$0xff]
    %v983 = vld [vmem:[%s3 + $0x18] sm:$0xff]
    %v984 = vld [vmem:[%s3 + $0x20] sm:$0xff]
    %v985 = vld [vmem:[%s3 + $0x28] sm:$0xff]
    %v986 = vld [vmem:[%s3 + $0x30] sm:$0xff]
    %v987 = vld [vmem:[%s3 + $0x38] sm:$0xff]
    %v988 = vld [vmem:[%s3 + $0x40] sm:$0xff]
    %v989 = vld [vmem:[%s3 + $0x48] sm:$0xff]
    %v990 = vld [vmem:[%s3 + $0x50] sm:$0xff]
    %v991 = vld [vmem:[%s3 + $0x58] sm:$0xff]
    %v992 = vld [vmem:[%s3 + $0x60] sm:$0xff]
    %v993 = vld [vmem:[%s3 + $0x68] sm:$0xff]
    %v994 = vld [vmem:[%s3 + $0x70] sm:$0xff]
    %v995 = vld [vmem:[%s3 + $0x78] sm:$0xff]
    %v996 = vld [vmem:[%s3 + $0x80] sm:$0xff]
    %v997 = vld [vmem:[%s3 + $0x88] sm:$0xff]
    %v998 = vld [vmem:[%s3 + $0x90] sm:$0xff]
    %v999 = vld [vmem:[%s3 + $0x98] sm:$0xff]
    %v1000 = vld [vmem:[%s3 + $0xa0] sm:$0xff]
    %v1001 = vld [vmem:[%s3 + $0xa8] sm:$0xff]
    %v1002 = vld [vmem:[%s3 + $0xb0] sm:$0xff]
    %v1003 = vld [vmem:[%s3 + $0xb8] sm:$0xff]
    %v1004 = vld [vmem:[%s3 + $0xc0] sm:$0xff]
    %v1005 = vld [vmem:[%s3 + $0xc8] sm:$0xff]
    %v1006 = vld [vmem:[%s3 + $0xd0] sm:$0xff]
    %v1007 = vld [vmem:[%s3 + $0xd8] sm:$0xff]
    %v1008 = vld [vmem:[%s3 + $0xe0] sm:$0xff]
    %v1009 = vld [vmem:[%s3 + $0xe8] sm:$0xff]
    %v1010 = vld [vmem:[%s3 + $0xf0] sm:$0xff]
    %v1011 = vld [vmem:[%s3 + $0xf8] sm:$0xff]
    %v1012 = vrot.slane %v916, 1
    %v1013 = vrot.slane %v917, 1
    %v1014 = vrot.slane %v918, 1
    %v1015 = vrot.slane %v919, 1
    %v1016 = vrot.slane %v920, 1
    %v1017 = vrot.slane %v921, 1
    %v1018 = vrot.slane %v922, 1
    %v1019 = vrot.slane %v923, 1
    %v1020 = vrot.slane %v924, 1
    %v1021 = vrot.slane %v925, 1
    %v1022 = vrot.slane %v926, 1
    %v1023 = vrot.slane %v927, 1
    %v1024 = vrot.slane %v928, 1
    %v1025 = vrot.slane %v929, 1
    %v1026 = vrot.slane %v930, 1
    %v1027 = vrot.slane %v931, 1
    %v1028 = vrot.slane %v932, 1
    %v1029 = vrot.slane %v933, 1
    %v1030 = vrot.slane %v934, 1
    %v1031 = vrot.slane %v935, 1
    %v1032 = vrot.slane %v936, 1
    %v1033 = vrot.slane %v937, 1
    %v1034 = vrot.slane %v938, 1
    %v1035 = vrot.slane %v939, 1
    %v1036 = vrot.slane %v940, 1
    %v1037 = vrot.slane %v941, 1
    %v1038 = vrot.slane %v942, 1
    %v1039 = vrot.slane %v943, 1
    %v1040 = vrot.slane %v944, 1
    %v1041 = vrot.slane %v945, 1
    %v1042 = vrot.slane %v946, 1
    %v1043 = vrot.slane %v947, 1
    %v1044 = vrot.slane %v948, 1
    %v1045 = vrot.slane %v949, 1
    %v1046 = vrot.slane %v950, 1
    %v1047 = vrot.slane %v951, 1
    %v1048 = vrot.slane %v952, 1
    %v1049 = vrot.slane %v953, 1
    %v1050 = vrot.slane %v954, 1
    %v1051 = vrot.slane %v955, 1
    %v1052 = vrot.slane %v956, 1
    %v1053 = vrot.slane %v957, 1
    %v1054 = vrot.slane %v958, 1
    %v1055 = vrot.slane %v959, 1
    %v1056 = vrot.slane %v960, 1
    %v1057 = vrot.slane %v961, 1
    %v1058 = vrot.slane %v962, 1
    %v1059 = vrot.slane %v963, 1
    %v1060 = vrot.slane %v964, 1
    %v1061 = vrot.slane %v965, 1
    %v1062 = vrot.slane %v966, 1
    %v1063 = vrot.slane %v967, 1
    %v1064 = vrot.slane %v968, 1
    %v1065 = vrot.slane %v969, 1
    %v1066 = vrot.slane %v970, 1
    %v1067 = vrot.slane %v971, 1
    %v1068 = vrot.slane %v972, 1
    %v1069 = vrot.slane %v973, 1
    %v1070 = vrot.slane %v974, 1
    %v1071 = vrot.slane %v975, 1
    %v1072 = vrot.slane %v976, 1
    %v1073 = vrot.slane %v977, 1
    %v1074 = vrot.slane %v978, 1
    %v1075 = vrot.slane %v979, 1
    %v1076 = vsel %vm138, %v1072, %v1074
    %v1077 = vsel %vm138, %v1073, %v1075
    %v1078 = vsel %vm138, %v1070, %v1072
    %v1079 = vsel %vm138, %v1071, %v1073
    %v1080 = vsel %vm138, %v1068, %v1070
    %v1081 = vsel %vm138, %v1069, %v1071
    %v1082 = vsel %vm138, %v1066, %v1068
    %v1083 = vsel %vm138, %v1067, %v1069
    %v1084 = vsel %vm138, %v1064, %v1066
    %v1085 = vsel %vm138, %v1065, %v1067
    %v1086 = vsel %vm138, %v1062, %v1064
    %v1087 = vsel %vm138, %v1063, %v1065
    %v1088 = vsel %vm138, %v1060, %v1062
    %v1089 = vsel %vm138, %v1061, %v1063
    %v1090 = vsel %vm138, %v1058, %v1060
    %v1091 = vsel %vm138, %v1059, %v1061
    %v1092 = vsel %vm138, %v1056, %v1058
    %v1093 = vsel %vm138, %v1057, %v1059
    %v1094 = vsel %vm138, %v1054, %v1056
    %v1095 = vsel %vm138, %v1055, %v1057
    %v1096 = vsel %vm138, %v1052, %v1054
    %v1097 = vsel %vm138, %v1053, %v1055
    %v1098 = vsel %vm138, %v1050, %v1052
    %v1099 = vsel %vm138, %v1051, %v1053
    %v1100 = vsel %vm138, %v1048, %v1050
    %v1101 = vsel %vm138, %v1049, %v1051
    %v1102 = vsel %vm138, %v1046, %v1048
    %v1103 = vsel %vm138, %v1047, %v1049
    %v1104 = vsel %vm138, %v1044, %v1046
    %v1105 = vsel %vm138, %v1045, %v1047
    %v1106 = vsel %vm138, %v1042, %v1044
    %v1107 = vsel %vm138, %v1043, %v1045
    %v1108 = vsel %vm138, %v1040, %v1042
    %v1109 = vsel %vm138, %v1041, %v1043
    %v1110 = vsel %vm138, %v1038, %v1040
    %v1111 = vsel %vm138, %v1039, %v1041
    %v1112 = vsel %vm138, %v1036, %v1038
    %v1113 = vsel %vm138, %v1037, %v1039
    %v1114 = vsel %vm138, %v1034, %v1036
    %v1115 = vsel %vm138, %v1035, %v1037
    %v1116 = vsel %vm138, %v1032, %v1034
    %v1117 = vsel %vm138, %v1033, %v1035
    %v1118 = vsel %vm138, %v1030, %v1032
    %v1119 = vsel %vm138, %v1031, %v1033
    %v1120 = vsel %vm138, %v1028, %v1030
    %v1121 = vsel %vm138, %v1029, %v1031
    %v1122 = vsel %vm138, %v1026, %v1028
    %v1123 = vsel %vm138, %v1027, %v1029
    %v1124 = vsel %vm138, %v1024, %v1026
    %v1125 = vsel %vm138, %v1025, %v1027
    %v1126 = vsel %vm138, %v1022, %v1024
    %v1127 = vsel %vm138, %v1023, %v1025
    %v1128 = vsel %vm138, %v1020, %v1022
    %v1129 = vsel %vm138, %v1021, %v1023
    %v1130 = vsel %vm138, %v1018, %v1020
    %v1131 = vsel %vm138, %v1019, %v1021
    %v1132 = vsel %vm138, %v1016, %v1018
    %v1133 = vsel %vm138, %v1017, %v1019
    %v1134 = vsel %vm138, %v1014, %v1016
    %v1135 = vsel %vm138, %v1015, %v1017
    %v1136 = vsel %vm138, %v1012, %v1014
    %v1137 = vsel %vm138, %v1013, %v1015
    %v1138 = vsel %vm138, %v1074, %v1012
    %v1139 = vsel %vm138, %v1075, %v1013
    %v1140 = vmax.f32 %v916, %v1136
    %v1141 = vmax.f32 %v917, %v1137
    %v1142 = vmax.f32 %v918, %v1134
    %v1143 = vmax.f32 %v919, %v1135
    %v1144 = vmax.f32 %v920, %v1132
    %v1145 = vmax.f32 %v921, %v1133
    %v1146 = vmax.f32 %v922, %v1130
    %v1147 = vmax.f32 %v923, %v1131
    %v1148 = vmax.f32 %v924, %v1128
    %v1149 = vmax.f32 %v925, %v1129
    %v1150 = vmax.f32 %v926, %v1126
    %v1151 = vmax.f32 %v927, %v1127
    %v1152 = vmax.f32 %v928, %v1124
    %v1153 = vmax.f32 %v929, %v1125
    %v1154 = vmax.f32 %v930, %v1122
    %v1155 = vmax.f32 %v931, %v1123
    %v1156 = vmax.f32 %v932, %v1120
    %v1157 = vmax.f32 %v933, %v1121
    %v1158 = vmax.f32 %v934, %v1118
    %v1159 = vmax.f32 %v935, %v1119
    %v1160 = vmax.f32 %v936, %v1116
    %v1161 = vmax.f32 %v937, %v1117
    %v1162 = vmax.f32 %v938, %v1114
    %v1163 = vmax.f32 %v939, %v1115
    %v1164 = vmax.f32 %v940, %v1112
    %v1165 = vmax.f32 %v941, %v1113
    %v1166 = vmax.f32 %v942, %v1110
    %v1167 = vmax.f32 %v943, %v1111
    %v1168 = vmax.f32 %v944, %v1108
    %v1169 = vmax.f32 %v945, %v1109
    %v1170 = vmax.f32 %v946, %v1106
    %v1171 = vmax.f32 %v947, %v1107
    %v1172 = vmax.f32 %v948, %v1104
    %v1173 = vmax.f32 %v949, %v1105
    %v1174 = vmax.f32 %v950, %v1102
    %v1175 = vmax.f32 %v951, %v1103
    %v1176 = vmax.f32 %v952, %v1100
    %v1177 = vmax.f32 %v953, %v1101
    %v1178 = vmax.f32 %v954, %v1098
    %v1179 = vmax.f32 %v955, %v1099
    %v1180 = vmax.f32 %v956, %v1096
    %v1181 = vmax.f32 %v957, %v1097
    %v1182 = vmax.f32 %v958, %v1094
    %v1183 = vmax.f32 %v959, %v1095
    %v1184 = vmax.f32 %v960, %v1092
    %v1185 = vmax.f32 %v961, %v1093
    %v1186 = vmax.f32 %v962, %v1090
    %v1187 = vmax.f32 %v963, %v1091
    %v1188 = vmax.f32 %v964, %v1088
    %v1189 = vmax.f32 %v965, %v1089
    %v1190 = vmax.f32 %v966, %v1086
    %v1191 = vmax.f32 %v967, %v1087
    %v1192 = vmax.f32 %v968, %v1084
    %v1193 = vmax.f32 %v969, %v1085
    %v1194 = vmax.f32 %v970, %v1082
    %v1195 = vmax.f32 %v971, %v1083
    %v1196 = vmax.f32 %v972, %v1080
    %v1197 = vmax.f32 %v973, %v1081
    %v1198 = vmax.f32 %v974, %v1078
    %v1199 = vmax.f32 %v975, %v1079
    %v1200 = vmax.f32 %v976, %v1076
    %v1201 = vmax.f32 %v977, %v1077
    %v1202 = vmax.f32 %v978, %v1138
    %v1203 = vmax.f32 %v979, %v1139
    %1204 = vmatpush.msra.mxu0 %v1170
    %1205 = vmatpush.msra.mxu0 %v1168
    %1206 = vmatpush.msra.mxu0 %v1166
    %1207 = vmatpush.msra.mxu0 %v1164
    %1208 = vmatpush.msra.mxu0 %v1162
    %1209 = vmatpush.msra.mxu0 %v1160
    %1210 = vmatpush.msra.mxu0 %v1158
    %1211 = vmatpush.msra.mxu0 %v1156
    %1212 = vmatpush.msra.mxu0 %v1154
    %1213 = vmatpush.msra.mxu0 %v1152
    %1214 = vmatpush.msra.mxu0 %v1150
    %1215 = vmatpush.msra.mxu0 %v1148
    %1216 = vmatpush.msra.mxu0 %v1146
    %1217 = vmatpush.msra.mxu0 %v1144
    %1218 = vmatpush.msra.mxu0 %v1142
    %1219 = vmatpush.msra.mxu0 %v1140
    %1220 = vmatmul.f32.gmra.mxu0 %v980
    %v1221 = vpop.f32.mrf.mxu0
    %v1222 = vadd.f32 0.0, %v1221
    %1223 = vmatmul.f32.gmra.mxu0 %v982
    %v1224 = vpop.f32.mrf.mxu0
    %v1225 = vadd.f32 0.0, %v1224
    %1226 = vmatmul.f32.gmra.mxu0 %v984
    %v1227 = vpop.f32.mrf.mxu0
    %v1228 = vadd.f32 0.0, %v1227
    %1229 = vmatmul.f32.gmra.mxu0 %v986
    %v1230 = vpop.f32.mrf.mxu0
    %v1231 = vadd.f32 0.0, %v1230
    %1232 = vmatmul.f32.gmra.mxu0 %v988
    %v1233 = vpop.f32.mrf.mxu0
    %v1234 = vadd.f32 0.0, %v1233
    %1235 = vmatmul.f32.gmra.mxu0 %v990
    %v1236 = vpop.f32.mrf.mxu0
    %v1237 = vadd.f32 0.0, %v1236
    %1238 = vmatmul.f32.gmra.mxu0 %v992
    %v1239 = vpop.f32.mrf.mxu0
    %v1240 = vadd.f32 0.0, %v1239
    %1241 = vmatmul.f32.gmra.mxu0 %v994
    %v1242 = vpop.f32.mrf.mxu0
    %v1243 = vadd.f32 0.0, %v1242
    %1244 = vmatmul.f32.gmra.mxu0 %v996
    %v1245 = vpop.f32.mrf.mxu0
    %v1246 = vadd.f32 0.0, %v1245
    %1247 = vmatmul.f32.gmra.mxu0 %v998
    %v1248 = vpop.f32.mrf.mxu0
    %v1249 = vadd.f32 0.0, %v1248
    %1250 = vmatmul.f32.gmra.mxu0 %v1000
    %v1251 = vpop.f32.mrf.mxu0
    %v1252 = vadd.f32 0.0, %v1251
    %1253 = vmatmul.f32.gmra.mxu0 %v1002
    %v1254 = vpop.f32.mrf.mxu0
    %v1255 = vadd.f32 0.0, %v1254
    %1256 = vmatmul.f32.gmra.mxu0 %v1004
    %v1257 = vpop.f32.mrf.mxu0
    %v1258 = vadd.f32 0.0, %v1257
    %1259 = vmatmul.f32.gmra.mxu0 %v1006
    %v1260 = vpop.f32.mrf.mxu0
    %v1261 = vadd.f32 0.0, %v1260
    %1262 = vmatmul.f32.gmra.mxu0 %v1008
    %v1263 = vpop.f32.mrf.mxu0
    %v1264 = vadd.f32 0.0, %v1263
    %1265 = vmatmul.f32.gmra.mxu0 %v1010
    %v1266 = vpop.f32.mrf.mxu0
    %v1267 = vadd.f32 0.0, %v1266
    %1268 = vdwg.mxu0
    %1269 = vmatpush.msra.mxu0 %v1202
    %1270 = vmatpush.msra.mxu0 %v1200
    %1271 = vmatpush.msra.mxu0 %v1198
    %1272 = vmatpush.msra.mxu0 %v1196
    %1273 = vmatpush.msra.mxu0 %v1194
    %1274 = vmatpush.msra.mxu0 %v1192
    %1275 = vmatpush.msra.mxu0 %v1190
    %1276 = vmatpush.msra.mxu0 %v1188
    %1277 = vmatpush.msra.mxu0 %v1186
    %1278 = vmatpush.msra.mxu0 %v1184
    %1279 = vmatpush.msra.mxu0 %v1182
    %1280 = vmatpush.msra.mxu0 %v1180
    %1281 = vmatpush.msra.mxu0 %v1178
    %1282 = vmatpush.msra.mxu0 %v1176
    %1283 = vmatpush.msra.mxu0 %v1174
    %1284 = vmatpush.msra.mxu0 %v1172
    %1285 = vmatmul.f32.gmra.mxu0 %v981
    %v1286 = vpop.f32.mrf.mxu0
    %v1287 = vadd.f32 %v1222, %v1286
    %1288 = vmatmul.f32.gmra.mxu0 %v983
    %v1289 = vpop.f32.mrf.mxu0
    %v1290 = vadd.f32 %v1225, %v1289
    %1291 = vmatmul.f32.gmra.mxu0 %v985
    %v1292 = vpop.f32.mrf.mxu0
    %v1293 = vadd.f32 %v1228, %v1292
    %1294 = vmatmul.f32.gmra.mxu0 %v987
    %v1295 = vpop.f32.mrf.mxu0
    %v1296 = vadd.f32 %v1231, %v1295
    %1297 = vmatmul.f32.gmra.mxu0 %v989
    %v1298 = vpop.f32.mrf.mxu0
    %v1299 = vadd.f32 %v1234, %v1298
    %1300 = vmatmul.f32.gmra.mxu0 %v991
    %v1301 = vpop.f32.mrf.mxu0
    %v1302 = vadd.f32 %v1237, %v1301
    %1303 = vmatmul.f32.gmra.mxu0 %v993
    %v1304 = vpop.f32.mrf.mxu0
    %v1305 = vadd.f32 %v1240, %v1304
    %1306 = vmatmul.f32.gmra.mxu0 %v995
    %v1307 = vpop.f32.mrf.mxu0
    %v1308 = vadd.f32 %v1243, %v1307
    %1309 = vmatmul.f32.gmra.mxu0 %v997
    %v1310 = vpop.f32.mrf.mxu0
    %v1311 = vadd.f32 %v1246, %v1310
    %1312 = vmatmul.f32.gmra.mxu0 %v999
    %v1313 = vpop.f32.mrf.mxu0
    %v1314 = vadd.f32 %v1249, %v1313
    %1315 = vmatmul.f32.gmra.mxu0 %v1001
    %v1316 = vpop.f32.mrf.mxu0
    %v1317 = vadd.f32 %v1252, %v1316
    %1318 = vmatmul.f32.gmra.mxu0 %v1003
    %v1319 = vpop.f32.mrf.mxu0
    %v1320 = vadd.f32 %v1255, %v1319
    %1321 = vmatmul.f32.gmra.mxu0 %v1005
    %v1322 = vpop.f32.mrf.mxu0
    %v1323 = vadd.f32 %v1258, %v1322
    %1324 = vmatmul.f32.gmra.mxu0 %v1007
    %v1325 = vpop.f32.mrf.mxu0
    %v1326 = vadd.f32 %v1261, %v1325
    %1327 = vmatmul.f32.gmra.mxu0 %v1009
    %v1328 = vpop.f32.mrf.mxu0
    %v1329 = vadd.f32 %v1264, %v1328
    %1330 = vmatmul.f32.gmra.mxu0 %v1011
    %v1331 = vpop.f32.mrf.mxu0
    %v1332 = vadd.f32 %v1267, %v1331
    %1333 = vdwg.mxu0
    %1334 = vmatpush.msra.mxu0 %v1171
    %1335 = vmatpush.msra.mxu0 %v1169
    %1336 = vmatpush.msra.mxu0 %v1167
    %1337 = vmatpush.msra.mxu0 %v1165
    %1338 = vmatpush.msra.mxu0 %v1163
    %1339 = vmatpush.msra.mxu0 %v1161
    %1340 = vmatpush.msra.mxu0 %v1159
    %1341 = vmatpush.msra.mxu0 %v1157
    %1342 = vmatpush.msra.mxu0 %v1155
    %1343 = vmatpush.msra.mxu0 %v1153
    %1344 = vmatpush.msra.mxu0 %v1151
    %1345 = vmatpush.msra.mxu0 %v1149
    %1346 = vmatpush.msra.mxu0 %v1147
    %1347 = vmatpush.msra.mxu0 %v1145
    %1348 = vmatpush.msra.mxu0 %v1143
    %1349 = vmatpush.msra.mxu0 %v1141
    %1350 = vmatmul.f32.gmra.mxu0 %v980
    %v1351 = vpop.f32.mrf.mxu0
    %v1352 = vadd.f32 0.0, %v1351
    %1353 = vmatmul.f32.gmra.mxu0 %v982
    %v1354 = vpop.f32.mrf.mxu0
    %v1355 = vadd.f32 0.0, %v1354
    %1356 = vmatmul.f32.gmra.mxu0 %v984
    %v1357 = vpop.f32.mrf.mxu0
    %v1358 = vadd.f32 0.0, %v1357
    %1359 = vmatmul.f32.gmra.mxu0 %v986
    %v1360 = vpop.f32.mrf.mxu0
    %v1361 = vadd.f32 0.0, %v1360
    %1362 = vmatmul.f32.gmra.mxu0 %v988
    %v1363 = vpop.f32.mrf.mxu0
    %v1364 = vadd.f32 0.0, %v1363
    %1365 = vmatmul.f32.gmra.mxu0 %v990
    %v1366 = vpop.f32.mrf.mxu0
    %v1367 = vadd.f32 0.0, %v1366
    %1368 = vmatmul.f32.gmra.mxu0 %v992
    %v1369 = vpop.f32.mrf.mxu0
    %v1370 = vadd.f32 0.0, %v1369
    %1371 = vmatmul.f32.gmra.mxu0 %v994
    %v1372 = vpop.f32.mrf.mxu0
    %v1373 = vadd.f32 0.0, %v1372
    %1374 = vmatmul.f32.gmra.mxu0 %v996
    %v1375 = vpop.f32.mrf.mxu0
    %v1376 = vadd.f32 0.0, %v1375
    %1377 = vmatmul.f32.gmra.mxu0 %v998
    %v1378 = vpop.f32.mrf.mxu0
    %v1379 = vadd.f32 0.0, %v1378
    %1380 = vmatmul.f32.gmra.mxu0 %v1000
    %v1381 = vpop.f32.mrf.mxu0
    %v1382 = vadd.f32 0.0, %v1381
    %1383 = vmatmul.f32.gmra.mxu0 %v1002
    %v1384 = vpop.f32.mrf.mxu0
    %v1385 = vadd.f32 0.0, %v1384
    %1386 = vmatmul.f32.gmra.mxu0 %v1004
    %v1387 = vpop.f32.mrf.mxu0
    %v1388 = vadd.f32 0.0, %v1387
    %1389 = vmatmul.f32.gmra.mxu0 %v1006
    %v1390 = vpop.f32.mrf.mxu0
    %v1391 = vadd.f32 0.0, %v1390
    %1392 = vmatmul.f32.gmra.mxu0 %v1008
    %v1393 = vpop.f32.mrf.mxu0
    %v1394 = vadd.f32 0.0, %v1393
    %1395 = vmatmul.f32.gmra.mxu0 %v1010
    %v1396 = vpop.f32.mrf.mxu0
    %v1397 = vadd.f32 0.0, %v1396
    %1398 = vdwg.mxu0
    %1399 = vmatpush.msra.mxu0 %v1203
    %1400 = vmatpush.msra.mxu0 %v1201
    %1401 = vmatpush.msra.mxu0 %v1199
    %1402 = vmatpush.msra.mxu0 %v1197
    %1403 = vmatpush.msra.mxu0 %v1195
    %1404 = vmatpush.msra.mxu0 %v1193
    %1405 = vmatpush.msra.mxu0 %v1191
    %1406 = vmatpush.msra.mxu0 %v1189
    %1407 = vmatpush.msra.mxu0 %v1187
    %1408 = vmatpush.msra.mxu0 %v1185
    %1409 = vmatpush.msra.mxu0 %v1183
    %1410 = vmatpush.msra.mxu0 %v1181
    %1411 = vmatpush.msra.mxu0 %v1179
    %1412 = vmatpush.msra.mxu0 %v1177
    %1413 = vmatpush.msra.mxu0 %v1175
    %1414 = vmatpush.msra.mxu0 %v1173
    %1415 = vmatmul.f32.gmra.mxu0 %v981
    %v1416 = vpop.f32.mrf.mxu0
    %v1417 = vadd.f32 %v1352, %v1416
    %1418 = vmatmul.f32.gmra.mxu0 %v983
    %v1419 = vpop.f32.mrf.mxu0
    %v1420 = vadd.f32 %v1355, %v1419
    %1421 = vmatmul.f32.gmra.mxu0 %v985
    %v1422 = vpop.f32.mrf.mxu0
    %v1423 = vadd.f32 %v1358, %v1422
    %1424 = vmatmul.f32.gmra.mxu0 %v987
    %v1425 = vpop.f32.mrf.mxu0
    %v1426 = vadd.f32 %v1361, %v1425
    %1427 = vmatmul.f32.gmra.mxu0 %v989
    %v1428 = vpop.f32.mrf.mxu0
    %v1429 = vadd.f32 %v1364, %v1428
    %1430 = vmatmul.f32.gmra.mxu0 %v991
    %v1431 = vpop.f32.mrf.mxu0
    %v1432 = vadd.f32 %v1367, %v1431
    %1433 = vmatmul.f32.gmra.mxu0 %v993
    %v1434 = vpop.f32.mrf.mxu0
    %v1435 = vadd.f32 %v1370, %v1434
    %1436 = vmatmul.f32.gmra.mxu0 %v995
    %v1437 = vpop.f32.mrf.mxu0
    %v1438 = vadd.f32 %v1373, %v1437
    %1439 = vmatmul.f32.gmra.mxu0 %v997
    %v1440 = vpop.f32.mrf.mxu0
    %v1441 = vadd.f32 %v1376, %v1440
    %1442 = vmatmul.f32.gmra.mxu0 %v999
    %v1443 = vpop.f32.mrf.mxu0
    %v1444 = vadd.f32 %v1379, %v1443
    %1445 = vmatmul.f32.gmra.mxu0 %v1001
    %v1446 = vpop.f32.mrf.mxu0
    %v1447 = vadd.f32 %v1382, %v1446
    %1448 = vmatmul.f32.gmra.mxu0 %v1003
    %v1449 = vpop.f32.mrf.mxu0
    %v1450 = vadd.f32 %v1385, %v1449
    %1451 = vmatmul.f32.gmra.mxu0 %v1005
    %v1452 = vpop.f32.mrf.mxu0
    %v1453 = vadd.f32 %v1388, %v1452
    %1454 = vmatmul.f32.gmra.mxu0 %v1007
    %v1455 = vpop.f32.mrf.mxu0
    %v1456 = vadd.f32 %v1391, %v1455
    %1457 = vmatmul.f32.gmra.mxu0 %v1009
    %v1458 = vpop.f32.mrf.mxu0
    %v1459 = vadd.f32 %v1394, %v1458
    %1460 = vmatmul.f32.gmra.mxu0 %v1011
    %v1461 = vpop.f32.mrf.mxu0
    %v1462 = vadd.f32 %v1397, %v1461
    %1463 = vdwg.mxu0
    %v1464 = vld [vmem:[%s4] sm:$0xff]
    %v1465 = vld [vmem:[%s4 + $0x8] sm:$0xff]
    %v1466 = vld [vmem:[%s4 + $0x10] sm:$0xff]
    %v1467 = vld [vmem:[%s4 + $0x18] sm:$0xff]
    %v1468 = vld [vmem:[%s4 + $0x20] sm:$0xff]
    %v1469 = vld [vmem:[%s4 + $0x28] sm:$0xff]
    %v1470 = vld [vmem:[%s4 + $0x30] sm:$0xff]
    %v1471 = vld [vmem:[%s4 + $0x38] sm:$0xff]
    %v1472 = vld [vmem:[%s4 + $0x40] sm:$0xff]
    %v1473 = vld [vmem:[%s4 + $0x48] sm:$0xff]
    %v1474 = vld [vmem:[%s4 + $0x50] sm:$0xff]
    %v1475 = vld [vmem:[%s4 + $0x58] sm:$0xff]
    %v1476 = vld [vmem:[%s4 + $0x60] sm:$0xff]
    %v1477 = vld [vmem:[%s4 + $0x68] sm:$0xff]
    %v1478 = vld [vmem:[%s4 + $0x70] sm:$0xff]
    %v1479 = vld [vmem:[%s4 + $0x78] sm:$0xff]
    %v1480 = vld [vmem:[%s4 + $0x80] sm:$0xff]
    %v1481 = vld [vmem:[%s4 + $0x88] sm:$0xff]
    %v1482 = vld [vmem:[%s4 + $0x90] sm:$0xff]
    %v1483 = vld [vmem:[%s4 + $0x98] sm:$0xff]
    %v1484 = vld [vmem:[%s4 + $0xa0] sm:$0xff]
    %v1485 = vld [vmem:[%s4 + $0xa8] sm:$0xff]
    %v1486 = vld [vmem:[%s4 + $0xb0] sm:$0xff]
    %v1487 = vld [vmem:[%s4 + $0xb8] sm:$0xff]
    %v1488 = vld [vmem:[%s4 + $0xc0] sm:$0xff]
    %v1489 = vld [vmem:[%s4 + $0xc8] sm:$0xff]
    %v1490 = vld [vmem:[%s4 + $0xd0] sm:$0xff]
    %v1491 = vld [vmem:[%s4 + $0xd8] sm:$0xff]
    %v1492 = vld [vmem:[%s4 + $0xe0] sm:$0xff]
    %v1493 = vld [vmem:[%s4 + $0xe8] sm:$0xff]
    %v1494 = vld [vmem:[%s4 + $0xf0] sm:$0xff]
    %v1495 = vld [vmem:[%s4 + $0xf8] sm:$0xff]
    %v1496 = vld [vmem:[%s4 + $0x100] sm:$0xff]
    %v1497 = vld [vmem:[%s4 + $0x108] sm:$0xff]
    %v1498 = vld [vmem:[%s4 + $0x110] sm:$0xff]
    %v1499 = vld [vmem:[%s4 + $0x118] sm:$0xff]
    %v1500 = vld [vmem:[%s4 + $0x120] sm:$0xff]
    %v1501 = vld [vmem:[%s4 + $0x128] sm:$0xff]
    %v1502 = vld [vmem:[%s4 + $0x130] sm:$0xf]
    %v1503 = vld [vmem:[%s4 + $0x138] sm:$0xf]
    %v1505 = vsel %vm492, %v1417, 0
    %v1508 = vsel %vm492, %v1420, 0
    %v1511 = vsel %vm492, %v1423, 0
    %v1514 = vsel %vm492, %v1426, 0
    %v1517 = vsel %vm492, %v1429, 0
    %v1520 = vsel %vm492, %v1432, 0
    %v1523 = vsel %vm492, %v1435, 0
    %v1526 = vsel %vm492, %v1438, 0
    %v1529 = vsel %vm492, %v1441, 0
    %v1532 = vsel %vm492, %v1444, 0
    %v1535 = vsel %vm492, %v1447, 0
    %v1538 = vsel %vm492, %v1450, 0
    %v1541 = vsel %vm492, %v1453, 0
    %v1544 = vsel %vm492, %v1456, 0
    %v1547 = vsel %vm492, %v1459, 0
    %v1550 = vsel %vm492, %v1462, 0
    %v1553 = vsel %vm683, %v1502, 0
    %v1556 = vsel %vm683, %v1503, 0
    %1558 = vmatpush.msra.mxu0 %v1494
    %1559 = vmatpush.msra.mxu0 %v1492
    %1560 = vmatpush.msra.mxu0 %v1490
    %1561 = vmatpush.msra.mxu0 %v1488
    %1562 = vmatpush.msra.mxu0 %v1486
    %1563 = vmatpush.msra.mxu0 %v1484
    %1564 = vmatpush.msra.mxu0 %v1482
    %1565 = vmatpush.msra.mxu0 %v1480
    %1566 = vmatpush.msra.mxu0 %v1478
    %1567 = vmatpush.msra.mxu0 %v1476
    %1568 = vmatpush.msra.mxu0 %v1474
    %1569 = vmatpush.msra.mxu0 %v1472
    %1570 = vmatpush.msra.mxu0 %v1470
    %1571 = vmatpush.msra.mxu0 %v1468
    %1572 = vmatpush.msra.mxu0 %v1466
    %1573 = vmatpush.msra.mxu0 %v1464
    %1574 = vmatmul.f32.gmra.mxu0 %v1287
    %v1575 = vpop.f32.mrf.mxu0
    %v1576 = vadd.f32 0.0, %v1575
    %1577 = vmatmul.f32.gmra.mxu0 %v1290
    %v1578 = vpop.f32.mrf.mxu0
    %v1579 = vadd.f32 0.0, %v1578
    %1580 = vmatmul.f32.gmra.mxu0 %v1293
    %v1581 = vpop.f32.mrf.mxu0
    %v1582 = vadd.f32 0.0, %v1581
    %1583 = vmatmul.f32.gmra.mxu0 %v1296
    %v1584 = vpop.f32.mrf.mxu0
    %v1585 = vadd.f32 0.0, %v1584
    %1586 = vmatmul.f32.gmra.mxu0 %v1299
    %v1587 = vpop.f32.mrf.mxu0
    %v1588 = vadd.f32 0.0, %v1587
    %1589 = vmatmul.f32.gmra.mxu0 %v1302
    %v1590 = vpop.f32.mrf.mxu0
    %v1591 = vadd.f32 0.0, %v1590
    %1592 = vmatmul.f32.gmra.mxu0 %v1305
    %v1593 = vpop.f32.mrf.mxu0
    %v1594 = vadd.f32 0.0, %v1593
    %1595 = vmatmul.f32.gmra.mxu0 %v1308
    %v1596 = vpop.f32.mrf.mxu0
    %v1597 = vadd.f32 0.0, %v1596
    %1598 = vmatmul.f32.gmra.mxu0 %v1311
    %v1599 = vpop.f32.mrf.mxu0
    %v1600 = vadd.f32 0.0, %v1599
    %1601 = vmatmul.f32.gmra.mxu0 %v1314
    %v1602 = vpop.f32.mrf.mxu0
    %v1603 = vadd.f32 0.0, %v1602
    %1604 = vmatmul.f32.gmra.mxu0 %v1317
    %v1605 = vpop.f32.mrf.mxu0
    %v1606 = vadd.f32 0.0, %v1605
    %1607 = vmatmul.f32.gmra.mxu0 %v1320
    %v1608 = vpop.f32.mrf.mxu0
    %v1609 = vadd.f32 0.0, %v1608
    %1610 = vmatmul.f32.gmra.mxu0 %v1323
    %v1611 = vpop.f32.mrf.mxu0
    %v1612 = vadd.f32 0.0, %v1611
    %1613 = vmatmul.f32.gmra.mxu0 %v1326
    %v1614 = vpop.f32.mrf.mxu0
    %v1615 = vadd.f32 0.0, %v1614
    %1616 = vmatmul.f32.gmra.mxu0 %v1329
    %v1617 = vpop.f32.mrf.mxu0
    %v1618 = vadd.f32 0.0, %v1617
    %1619 = vmatmul.f32.gmra.mxu0 %v1332
    %v1620 = vpop.f32.mrf.mxu0
    %v1621 = vadd.f32 0.0, %v1620
    %1622 = vdwg.mxu0
    %1623 = vmatpush.msra.mxu0 0.0
    %1624 = vmatpush.msra.mxu0 0.0
    %1625 = vmatpush.msra.mxu0 0.0
    %1626 = vmatpush.msra.mxu0 0.0
    %1627 = vmatpush.msra.mxu0 0.0
    %1628 = vmatpush.msra.mxu0 0.0
    %1629 = vmatpush.msra.mxu0 0.0
    %1630 = vmatpush.msra.mxu0 0.0
    %1631 = vmatpush.msra.mxu0 0.0
    %1632 = vmatpush.msra.mxu0 0.0
    %1633 = vmatpush.msra.mxu0 0.0
    %1634 = vmatpush.msra.mxu0 0.0
    %1635 = vmatpush.msra.mxu0 %v1553
    %1636 = vmatpush.msra.mxu0 %v1500
    %1637 = vmatpush.msra.mxu0 %v1498
    %1638 = vmatpush.msra.mxu0 %v1496
    %1639 = vmatmul.f32.gmra.mxu0 %v1505
    %v1640 = vpop.f32.mrf.mxu0
    %v1641 = vadd.f32 %v1576, %v1640
    %1642 = vmatmul.f32.gmra.mxu0 %v1508
    %v1643 = vpop.f32.mrf.mxu0
    %v1644 = vadd.f32 %v1579, %v1643
    %1645 = vmatmul.f32.gmra.mxu0 %v1511
    %v1646 = vpop.f32.mrf.mxu0
    %v1647 = vadd.f32 %v1582, %v1646
    %1648 = vmatmul.f32.gmra.mxu0 %v1514
    %v1649 = vpop.f32.mrf.mxu0
    %v1650 = vadd.f32 %v1585, %v1649
    %1651 = vmatmul.f32.gmra.mxu0 %v1517
    %v1652 = vpop.f32.mrf.mxu0
    %v1653 = vadd.f32 %v1588, %v1652
    %1654 = vmatmul.f32.gmra.mxu0 %v1520
    %v1655 = vpop.f32.mrf.mxu0
    %v1656 = vadd.f32 %v1591, %v1655
    %1657 = vmatmul.f32.gmra.mxu0 %v1523
    %v1658 = vpop.f32.mrf.mxu0
    %v1659 = vadd.f32 %v1594, %v1658
    %1660 = vmatmul.f32.gmra.mxu0 %v1526
    %v1661 = vpop.f32.mrf.mxu0
    %v1662 = vadd.f32 %v1597, %v1661
    %1663 = vmatmul.f32.gmra.mxu0 %v1529
    %v1664 = vpop.f32.mrf.mxu0
    %v1665 = vadd.f32 %v1600, %v1664
    %1666 = vmatmul.f32.gmra.mxu0 %v1532
    %v1667 = vpop.f32.mrf.mxu0
    %v1668 = vadd.f32 %v1603, %v1667
    %1669 = vmatmul.f32.gmra.mxu0 %v1535
    %v1670 = vpop.f32.mrf.mxu0
    %v1671 = vadd.f32 %v1606, %v1670
    %1672 = vmatmul.f32.gmra.mxu0 %v1538
    %v1673 = vpop.f32.mrf.mxu0
    %v1674 = vadd.f32 %v1609, %v1673
    %1675 = vmatmul.f32.gmra.mxu0 %v1541
    %v1676 = vpop.f32.mrf.mxu0
    %v1677 = vadd.f32 %v1612, %v1676
    %1678 = vmatmul.f32.gmra.mxu0 %v1544
    %v1679 = vpop.f32.mrf.mxu0
    %v1680 = vadd.f32 %v1615, %v1679
    %1681 = vmatmul.f32.gmra.mxu0 %v1547
    %v1682 = vpop.f32.mrf.mxu0
    %v1683 = vadd.f32 %v1618, %v1682
    %1684 = vmatmul.f32.gmra.mxu0 %v1550
    %v1685 = vpop.f32.mrf.mxu0
    %v1686 = vadd.f32 %v1621, %v1685
    %1687 = vdwg.mxu0
    %1688 = vmatpush.msra.mxu0 %v1495
    %1689 = vmatpush.msra.mxu0 %v1493
    %1690 = vmatpush.msra.mxu0 %v1491
    %1691 = vmatpush.msra.mxu0 %v1489
    %1692 = vmatpush.msra.mxu0 %v1487
    %1693 = vmatpush.msra.mxu0 %v1485
    %1694 = vmatpush.msra.mxu0 %v1483
    %1695 = vmatpush.msra.mxu0 %v1481
    %1696 = vmatpush.msra.mxu0 %v1479
    %1697 = vmatpush.msra.mxu0 %v1477
    %1698 = vmatpush.msra.mxu0 %v1475
    %1699 = vmatpush.msra.mxu0 %v1473
    %1700 = vmatpush.msra.mxu0 %v1471
    %1701 = vmatpush.msra.mxu0 %v1469
    %1702 = vmatpush.msra.mxu0 %v1467
    %1703 = vmatpush.msra.mxu0 %v1465
    %1704 = vmatmul.f32.gmra.mxu0 %v1287
    %v1705 = vpop.f32.mrf.mxu0
    %v1706 = vadd.f32 0.0, %v1705
    %1707 = vmatmul.f32.gmra.mxu0 %v1290
    %v1708 = vpop.f32.mrf.mxu0
    %v1709 = vadd.f32 0.0, %v1708
    %1710 = vmatmul.f32.gmra.mxu0 %v1293
    %v1711 = vpop.f32.mrf.mxu0
    %v1712 = vadd.f32 0.0, %v1711
    %1713 = vmatmul.f32.gmra.mxu0 %v1296
    %v1714 = vpop.f32.mrf.mxu0
    %v1715 = vadd.f32 0.0, %v1714
    %1716 = vmatmul.f32.gmra.mxu0 %v1299
    %v1717 = vpop.f32.mrf.mxu0
    %v1718 = vadd.f32 0.0, %v1717
    %1719 = vmatmul.f32.gmra.mxu0 %v1302
    %v1720 = vpop.f32.mrf.mxu0
    %v1721 = vadd.f32 0.0, %v1720
    %1722 = vmatmul.f32.gmra.mxu0 %v1305
    %v1723 = vpop.f32.mrf.mxu0
    %v1724 = vadd.f32 0.0, %v1723
    %1725 = vmatmul.f32.gmra.mxu0 %v1308
    %v1726 = vpop.f32.mrf.mxu0
    %v1727 = vadd.f32 0.0, %v1726
    %1728 = vmatmul.f32.gmra.mxu0 %v1311
    %v1729 = vpop.f32.mrf.mxu0
    %v1730 = vadd.f32 0.0, %v1729
    %1731 = vmatmul.f32.gmra.mxu0 %v1314
    %v1732 = vpop.f32.mrf.mxu0
    %v1733 = vadd.f32 0.0, %v1732
    %1734 = vmatmul.f32.gmra.mxu0 %v1317
    %v1735 = vpop.f32.mrf.mxu0
    %v1736 = vadd.f32 0.0, %v1735
    %1737 = vmatmul.f32.gmra.mxu0 %v1320
    %v1738 = vpop.f32.mrf.mxu0
    %v1739 = vadd.f32 0.0, %v1738
    %1740 = vmatmul.f32.gmra.mxu0 %v1323
    %v1741 = vpop.f32.mrf.mxu0
    %v1742 = vadd.f32 0.0, %v1741
    %1743 = vmatmul.f32.gmra.mxu0 %v1326
    %v1744 = vpop.f32.mrf.mxu0
    %v1745 = vadd.f32 0.0, %v1744
    %1746 = vmatmul.f32.gmra.mxu0 %v1329
    %v1747 = vpop.f32.mrf.mxu0
    %v1748 = vadd.f32 0.0, %v1747
    %1749 = vmatmul.f32.gmra.mxu0 %v1332
    %v1750 = vpop.f32.mrf.mxu0
    %v1751 = vadd.f32 0.0, %v1750
    %1752 = vdwg.mxu0
    %1753 = vmatpush.msra.mxu0 0.0
    %1754 = vmatpush.msra.mxu0 0.0
    %1755 = vmatpush.msra.mxu0 0.0
    %1756 = vmatpush.msra.mxu0 0.0
    %1757 = vmatpush.msra.mxu0 0.0
    %1758 = vmatpush.msra.mxu0 0.0
    %1759 = vmatpush.msra.mxu0 0.0
    %1760 = vmatpush.msra.mxu0 0.0
    %1761 = vmatpush.msra.mxu0 0.0
    %1762 = vmatpush.msra.mxu0 0.0
    %1763 = vmatpush.msra.mxu0 0.0
    %1764 = vmatpush.msra.mxu0 0.0
    %1765 = vmatpush.msra.mxu0 %v1556
    %1766 = vmatpush.msra.mxu0 %v1501
    %1767 = vmatpush.msra.mxu0 %v1499
    %1768 = vmatpush.msra.mxu0 %v1497
    %1769 = vmatmul.f32.gmra.mxu0 %v1505
    %v1770 = vpop.f32.mrf.mxu0
    %v1771 = vadd.f32 %v1706, %v1770
    %1772 = vmatmul.f32.gmra.mxu0 %v1508
    %v1773 = vpop.f32.mrf.mxu0
    %v1774 = vadd.f32 %v1709, %v1773
    %1775 = vmatmul.f32.gmra.mxu0 %v1511
    %v1776 = vpop.f32.mrf.mxu0
    %v1777 = vadd.f32 %v1712, %v1776
    %1778 = vmatmul.f32.gmra.mxu0 %v1514
    %v1779 = vpop.f32.mrf.mxu0
    %v1780 = vadd.f32 %v1715, %v1779
    %1781 = vmatmul.f32.gmra.mxu0 %v1517
    %v1782 = vpop.f32.mrf.mxu0
    %v1783 = vadd.f32 %v1718, %v1782
    %1784 = vmatmul.f32.gmra.mxu0 %v1520
    %v1785 = vpop.f32.mrf.mxu0
    %v1786 = vadd.f32 %v1721, %v1785
    %1787 = vmatmul.f32.gmra.mxu0 %v1523
    %v1788 = vpop.f32.mrf.mxu0
    %v1789 = vadd.f32 %v1724, %v1788
    %1790 = vmatmul.f32.gmra.mxu0 %v1526
    %v1791 = vpop.f32.mrf.mxu0
    %v1792 = vadd.f32 %v1727, %v1791
    %1793 = vmatmul.f32.gmra.mxu0 %v1529
    %v1794 = vpop.f32.mrf.mxu0
    %v1795 = vadd.f32 %v1730, %v1794
    %1796 = vmatmul.f32.gmra.mxu0 %v1532
    %v1797 = vpop.f32.mrf.mxu0
    %v1798 = vadd.f32 %v1733, %v1797
    %1799 = vmatmul.f32.gmra.mxu0 %v1535
    %v1800 = vpop.f32.mrf.mxu0
    %v1801 = vadd.f32 %v1736, %v1800
    %1802 = vmatmul.f32.gmra.mxu0 %v1538
    %v1803 = vpop.f32.mrf.mxu0
    %v1804 = vadd.f32 %v1739, %v1803
    %1805 = vmatmul.f32.gmra.mxu0 %v1541
    %v1806 = vpop.f32.mrf.mxu0
    %v1807 = vadd.f32 %v1742, %v1806
    %1808 = vmatmul.f32.gmra.mxu0 %v1544
    %v1809 = vpop.f32.mrf.mxu0
    %v1810 = vadd.f32 %v1745, %v1809
    %1811 = vmatmul.f32.gmra.mxu0 %v1547
    %v1812 = vpop.f32.mrf.mxu0
    %v1813 = vadd.f32 %v1748, %v1812
    %1814 = vmatmul.f32.gmra.mxu0 %v1550
    %v1815 = vpop.f32.mrf.mxu0
    %v1816 = vadd.f32 %v1751, %v1815
    %1817 = vdwg.mxu0
    %v1818 = vmax.f32 %v1641, %v1771
    %v1819 = vmax.f32 %v1644, %v1774
    %v1820 = vmax.f32 %v1647, %v1777
    %v1821 = vmax.f32 %v1650, %v1780
    %v1822 = vmax.f32 %v1653, %v1783
    %v1823 = vmax.f32 %v1656, %v1786
    %v1824 = vmax.f32 %v1659, %v1789
    %v1825 = vmax.f32 %v1662, %v1792
    %v1826 = vmax.f32 %v1665, %v1795
    %v1827 = vmax.f32 %v1668, %v1798
    %v1828 = vmax.f32 %v1671, %v1801
    %v1829 = vmax.f32 %v1674, %v1804
    %v1830 = vmax.f32 %v1677, %v1807
    %v1831 = vmax.f32 %v1680, %v1810
    %v1832 = vmax.f32 %v1683, %v1813
    %v1833 = vmax.f32 %v1686, %v1816
    %v1834 = vrot.slane %v1818, 1
    %v1835 = vrot.slane %v1819, 1
    %v1836 = vrot.slane %v1820, 1
    %v1837 = vrot.slane %v1821, 1
    %v1838 = vrot.slane %v1822, 1
    %v1839 = vrot.slane %v1823, 1
    %v1840 = vrot.slane %v1824, 1
    %v1841 = vrot.slane %v1825, 1
    %v1842 = vrot.slane %v1826, 1
    %v1843 = vrot.slane %v1827, 1
    %v1844 = vrot.slane %v1828, 1
    %v1845 = vrot.slane %v1829, 1
    %v1846 = vrot.slane %v1830, 1
    %v1847 = vrot.slane %v1831, 1
    %v1848 = vrot.slane %v1832, 1
    %v1849 = vrot.slane %v1833, 1
    %v1850 = vsel %vm138, %v1848, %v1849
    %v1851 = vsel %vm138, %v1847, %v1848
    %v1852 = vsel %vm138, %v1846, %v1847
    %v1853 = vsel %vm138, %v1845, %v1846
    %v1854 = vsel %vm138, %v1844, %v1845
    %v1855 = vsel %vm138, %v1843, %v1844
    %v1856 = vsel %vm138, %v1842, %v1843
    %v1857 = vsel %vm138, %v1841, %v1842
    %v1858 = vsel %vm138, %v1840, %v1841
    %v1859 = vsel %vm138, %v1839, %v1840
    %v1860 = vsel %vm138, %v1838, %v1839
    %v1861 = vsel %vm138, %v1837, %v1838
    %v1862 = vsel %vm138, %v1836, %v1837
    %v1863 = vsel %vm138, %v1835, %v1836
    %v1864 = vsel %vm138, %v1834, %v1835
    %v1865 = vsel %vm138, %v1849, %v1834
    %v1866 = vrot.slane %v1818, 2
    %v1867 = vrot.slane %v1819, 2
    %v1868 = vrot.slane %v1820, 2
    %v1869 = vrot.slane %v1821, 2
    %v1870 = vrot.slane %v1822, 2
    %v1871 = vrot.slane %v1823, 2
    %v1872 = vrot.slane %v1824, 2
    %v1873 = vrot.slane %v1825, 2
    %v1874 = vrot.slane %v1826, 2
    %v1875 = vrot.slane %v1827, 2
    %v1876 = vrot.slane %v1828, 2
    %v1877 = vrot.slane %v1829, 2
    %v1878 = vrot.slane %v1830, 2
    %v1879 = vrot.slane %v1831, 2
    %v1880 = vrot.slane %v1832, 2
    %v1881 = vrot.slane %v1833, 2
    %v1882 = vsel %vm203, %v1880, %v1881
    %v1883 = vsel %vm203, %v1879, %v1880
    %v1884 = vsel %vm203, %v1878, %v1879
    %v1885 = vsel %vm203, %v1877, %v1878
    %v1886 = vsel %vm203, %v1876, %v1877
    %v1887 = vsel %vm203, %v1875, %v1876
    %v1888 = vsel %vm203, %v1874, %v1875
    %v1889 = vsel %vm203, %v1873, %v1874
    %v1890 = vsel %vm203, %v1872, %v1873
    %v1891 = vsel %vm203, %v1871, %v1872
    %v1892 = vsel %vm203, %v1870, %v1871
    %v1893 = vsel %vm203, %v1869, %v1870
    %v1894 = vsel %vm203, %v1868, %v1869
    %v1895 = vsel %vm203, %v1867, %v1868
    %v1896 = vsel %vm203, %v1866, %v1867
    %v1897 = vsel %vm203, %v1881, %v1866
    %1914 = vrot.lane.b32.xlu0 %v1864, 78
    %v1915 = vpop.permute.xlu0 %1914
    %1916 = vrot.lane.b32.xlu0 %v1863, 78
    %v1917 = vpop.permute.xlu0 %1916
    %1918 = vrot.lane.b32.xlu0 %v1862, 78
    %v1919 = vpop.permute.xlu0 %1918
    %1920 = vrot.lane.b32.xlu0 %v1861, 78
    %v1921 = vpop.permute.xlu0 %1920
    %1922 = vrot.lane.b32.xlu0 %v1860, 78
    %v1923 = vpop.permute.xlu0 %1922
    %1924 = vrot.lane.b32.xlu0 %v1859, 78
    %v1925 = vpop.permute.xlu0 %1924
    %1926 = vrot.lane.b32.xlu0 %v1858, 78
    %v1927 = vpop.permute.xlu0 %1926
    %1928 = vrot.lane.b32.xlu0 %v1857, 78
    %v1929 = vpop.permute.xlu0 %1928
    %1930 = vrot.lane.b32.xlu0 %v1856, 78
    %v1931 = vpop.permute.xlu0 %1930
    %1932 = vrot.lane.b32.xlu0 %v1855, 78
    %v1933 = vpop.permute.xlu0 %1932
    %1934 = vrot.lane.b32.xlu0 %v1854, 78
    %v1935 = vpop.permute.xlu0 %1934
    %1936 = vrot.lane.b32.xlu0 %v1853, 78
    %v1937 = vpop.permute.xlu0 %1936
    %1938 = vrot.lane.b32.xlu0 %v1852, 78
    %v1939 = vpop.permute.xlu0 %1938
    %1940 = vrot.lane.b32.xlu0 %v1851, 78
    %v1941 = vpop.permute.xlu0 %1940
    %1942 = vrot.lane.b32.xlu0 %v1850, 78
    %v1943 = vpop.permute.xlu0 %1942
    %1944 = vrot.lane.b32.xlu0 %v1865, 78
    %v1945 = vpop.permute.xlu0 %1944
    %1978 = vrot.lane.b32.xlu0 %v1896, 28
    %v1979 = vpop.permute.xlu0 %1978
    %1980 = vrot.lane.b32.xlu0 %v1895, 28
    %v1981 = vpop.permute.xlu0 %1980
    %1982 = vrot.lane.b32.xlu0 %v1894, 28
    %v1983 = vpop.permute.xlu0 %1982
    %1984 = vrot.lane.b32.xlu0 %v1893, 28
    %v1985 = vpop.permute.xlu0 %1984
    %1986 = vrot.lane.b32.xlu0 %v1892, 28
    %v1987 = vpop.permute.xlu0 %1986
    %1988 = vrot.lane.b32.xlu0 %v1891, 28
    %v1989 = vpop.permute.xlu0 %1988
    %1990 = vrot.lane.b32.xlu0 %v1890, 28
    %v1991 = vpop.permute.xlu0 %1990
    %1992 = vrot.lane.b32.xlu0 %v1889, 28
    %v1993 = vpop.permute.xlu0 %1992
    %1994 = vrot.lane.b32.xlu0 %v1888, 28
    %v1995 = vpop.permute.xlu0 %1994
    %1996 = vrot.lane.b32.xlu0 %v1887, 28
    %v1997 = vpop.permute.xlu0 %1996
    %1998 = vrot.lane.b32.xlu0 %v1886, 28
    %v1999 = vpop.permute.xlu0 %1998
    %2000 = vrot.lane.b32.xlu0 %v1885, 28
    %v2001 = vpop.permute.xlu0 %2000
    %2002 = vrot.lane.b32.xlu0 %v1884, 28
    %v2003 = vpop.permute.xlu0 %2002
    %2004 = vrot.lane.b32.xlu0 %v1883, 28
    %v2005 = vpop.permute.xlu0 %2004
    %2006 = vrot.lane.b32.xlu0 %v1882, 28
    %v2007 = vpop.permute.xlu0 %2006
    %2008 = vrot.lane.b32.xlu0 %v1897, 28
    %v2009 = vpop.permute.xlu0 %2008
    %vm2026 = vcmask 637952
    %v2027 = vsel %vm2026, %v1818, %v1915
    %v2028 = vsel %vm2026, %v1819, %v1917
    %v2029 = vsel %vm2026, %v1820, %v1919
    %v2030 = vsel %vm2026, %v1821, %v1921
    %v2031 = vsel %vm2026, %v1822, %v1923
    %v2032 = vsel %vm2026, %v1823, %v1925
    %v2033 = vsel %vm2026, %v1824, %v1927
    %v2034 = vsel %vm2026, %v1825, %v1929
    %v2035 = vsel %vm2026, %v1826, %v1931
    %v2036 = vsel %vm2026, %v1827, %v1933
    %v2037 = vsel %vm2026, %v1828, %v1935
    %v2038 = vsel %vm2026, %v1829, %v1937
    %v2039 = vsel %vm2026, %v1830, %v1939
    %v2040 = vsel %vm2026, %v1831, %v1941
    %v2041 = vsel %vm2026, %v1832, %v1943
    %v2042 = vsel %vm2026, %v1833, %v1945
    %v2043 = vsel %vm492, %v1915, %v1979
    %v2044 = vsel %vm492, %v1917, %v1981
    %v2045 = vsel %vm492, %v1919, %v1983
    %v2046 = vsel %vm492, %v1921, %v1985
    %v2047 = vsel %vm492, %v1923, %v1987
    %v2048 = vsel %vm492, %v1925, %v1989
    %v2049 = vsel %vm492, %v1927, %v1991
    %v2050 = vsel %vm492, %v1929, %v1993
    %v2051 = vsel %vm492, %v1931, %v1995
    %v2052 = vsel %vm492, %v1933, %v1997
    %v2053 = vsel %vm492, %v1935, %v1999
    %v2054 = vsel %vm492, %v1937, %v2001
    %v2055 = vsel %vm492, %v1939, %v2003
    %v2056 = vsel %vm492, %v1941, %v2005
    %v2057 = vsel %vm492, %v1943, %v2007
    %v2058 = vsel %vm492, %v1945, %v2009
    %v2059 = vld [vmem:[%s5] sm:$0xff]
    %v2060 = vld [vmem:[%s5 + $0x8] sm:$0xff]
    %v2061 = vld [vmem:[%s5 + $0x10] sm:$0xff]
    %v2062 = vld [vmem:[%s5 + $0x18] sm:$0xff]
    %v2063 = vld [vmem:[%s5 + $0x20] sm:$0xff]
    %v2064 = vld [vmem:[%s5 + $0x28] sm:$0xff]
    %v2065 = vld [vmem:[%s5 + $0x30] sm:$0xff]
    %v2066 = vld [vmem:[%s5 + $0x38] sm:$0xff]
    %v2067 = vld [vmem:[%s5 + $0x40] sm:$0xff]
    %v2068 = vld [vmem:[%s5 + $0x48] sm:$0xff]
    %v2069 = vld [vmem:[%s5 + $0x50] sm:$0xff]
    %v2070 = vld [vmem:[%s5 + $0x58] sm:$0xff]
    %v2071 = vld [vmem:[%s5 + $0x60] sm:$0xff]
    %v2072 = vld [vmem:[%s5 + $0x68] sm:$0xff]
    %v2073 = vld [vmem:[%s5 + $0x70] sm:$0xff]
    %v2074 = vld [vmem:[%s5 + $0x78] sm:$0xff]
    %v2075 = vld [vmem:[%s5 + $0x80] sm:$0xff]
    %v2076 = vld [vmem:[%s5 + $0x88] sm:$0xff]
    %v2077 = vld [vmem:[%s5 + $0x90] sm:$0xff]
    %v2078 = vld [vmem:[%s5 + $0x98] sm:$0xff]
    %v2079 = vld [vmem:[%s5 + $0xa0] sm:$0xff]
    %v2080 = vld [vmem:[%s5 + $0xa8] sm:$0xff]
    %v2081 = vld [vmem:[%s5 + $0xb0] sm:$0xff]
    %v2082 = vld [vmem:[%s5 + $0xb8] sm:$0xff]
    %v2083 = vld [vmem:[%s5 + $0xc0] sm:$0xff]
    %v2084 = vld [vmem:[%s5 + $0xc8] sm:$0xff]
    %v2085 = vld [vmem:[%s5 + $0xd0] sm:$0xff]
    %v2086 = vld [vmem:[%s5 + $0xd8] sm:$0xff]
    %v2087 = vld [vmem:[%s5 + $0xe0] sm:$0xff]
    %v2088 = vld [vmem:[%s5 + $0xe8] sm:$0xff]
    %v2089 = vld [vmem:[%s5 + $0xf0] sm:$0xff]
    %v2090 = vld [vmem:[%s5 + $0xf8] sm:$0xff]
    %v2091 = vld [vmem:[%s5 + $0x100] sm:$0xff]
    %v2092 = vld [vmem:[%s5 + $0x108] sm:$0xff]
    %v2093 = vld [vmem:[%s5 + $0x110] sm:$0xff]
    %v2094 = vld [vmem:[%s5 + $0x118] sm:$0xff]
    %v2095 = vld [vmem:[%s5 + $0x120] sm:$0xff]
    %v2096 = vld [vmem:[%s5 + $0x128] sm:$0xff]
    %v2097 = vld [vmem:[%s5 + $0x130] sm:$0xff]
    %v2098 = vld [vmem:[%s5 + $0x138] sm:$0xff]
    %v2099 = vld [vmem:[%s5 + $0x140] sm:$0xff]
    %v2100 = vld [vmem:[%s5 + $0x148] sm:$0xff]
    %v2101 = vld [vmem:[%s5 + $0x150] sm:$0xff]
    %v2102 = vld [vmem:[%s5 + $0x158] sm:$0xff]
    %v2103 = vld [vmem:[%s5 + $0x160] sm:$0xff]
    %v2104 = vld [vmem:[%s5 + $0x168] sm:$0xff]
    %v2105 = vld [vmem:[%s5 + $0x170] sm:$0xff]
    %v2106 = vld [vmem:[%s5 + $0x178] sm:$0xff]
    %v2107 = vld [vmem:[%s5 + $0x180] sm:$0xff]
    %v2108 = vld [vmem:[%s5 + $0x188] sm:$0xff]
    %v2109 = vld [vmem:[%s5 + $0x190] sm:$0xff]
    %v2110 = vld [vmem:[%s5 + $0x198] sm:$0xff]
    %v2111 = vld [vmem:[%s5 + $0x1a0] sm:$0xff]
    %v2112 = vld [vmem:[%s5 + $0x1a8] sm:$0xff]
    %v2113 = vld [vmem:[%s5 + $0x1b0] sm:$0xff]
    %v2114 = vld [vmem:[%s5 + $0x1b8] sm:$0xff]
    %v2115 = vld [vmem:[%s5 + $0x1c0] sm:$0xff]
    %v2116 = vld [vmem:[%s5 + $0x1c8] sm:$0xff]
    %v2117 = vld [vmem:[%s5 + $0x1d0] sm:$0x3]
    %v2118 = vld [vmem:[%s5 + $0x1d8] sm:$0x3]
    %v2119 = vld [vmem:[%s6] sm:$0x3]
    %v2121 = vperm.slane %v2119, 0
    %v2122 = vperm.slane %v2119, 1
    %vm2125 = vcmask 867328
    %v2127 = vsel %vm2125, %v2043, 0
    %v2130 = vsel %vm2125, %v2044, 0
    %v2133 = vsel %vm2125, %v2045, 0
    %v2136 = vsel %vm2125, %v2046, 0
    %v2139 = vsel %vm2125, %v2047, 0
    %v2142 = vsel %vm2125, %v2048, 0
    %v2145 = vsel %vm2125, %v2049, 0
    %v2148 = vsel %vm2125, %v2050, 0
    %v2151 = vsel %vm2125, %v2051, 0
    %v2154 = vsel %vm2125, %v2052, 0
    %v2157 = vsel %vm2125, %v2053, 0
    %v2160 = vsel %vm2125, %v2054, 0
    %v2163 = vsel %vm2125, %v2055, 0
    %v2166 = vsel %vm2125, %v2056, 0
    %v2169 = vsel %vm2125, %v2057, 0
    %v2172 = vsel %vm2125, %v2058, 0
    %vm2174 = vcmask 1041408
    %v2176 = vsel %vm2174, %v2117, 0
    %v2179 = vsel %vm2174, %v2118, 0
    %2181 = vmatpush.msra.mxu0 %v2089
    %2182 = vmatpush.msra.mxu0 %v2087
    %2183 = vmatpush.msra.mxu0 %v2085
    %2184 = vmatpush.msra.mxu0 %v2083
    %2185 = vmatpush.msra.mxu0 %v2081
    %2186 = vmatpush.msra.mxu0 %v2079
    %2187 = vmatpush.msra.mxu0 %v2077
    %2188 = vmatpush.msra.mxu0 %v2075
    %2189 = vmatpush.msra.mxu0 %v2073
    %2190 = vmatpush.msra.mxu0 %v2071
    %2191 = vmatpush.msra.mxu0 %v2069
    %2192 = vmatpush.msra.mxu0 %v2067
    %2193 = vmatpush.msra.mxu0 %v2065
    %2194 = vmatpush.msra.mxu0 %v2063
    %2195 = vmatpush.msra.mxu0 %v2061
    %2196 = vmatpush.msra.mxu0 %v2059
    %2197 = vmatmul.f32.gmra.mxu0 %v2027
    %v2198 = vpop.f32.mrf.mxu0
    %v2199 = vadd.f32 %v2121, %v2198
    %2200 = vmatmul.f32.gmra.mxu0 %v2028
    %v2201 = vpop.f32.mrf.mxu0
    %v2202 = vadd.f32 %v2121, %v2201
    %2203 = vmatmul.f32.gmra.mxu0 %v2029
    %v2204 = vpop.f32.mrf.mxu0
    %v2205 = vadd.f32 %v2121, %v2204
    %2206 = vmatmul.f32.gmra.mxu0 %v2030
    %v2207 = vpop.f32.mrf.mxu0
    %v2208 = vadd.f32 %v2121, %v2207
    %2209 = vmatmul.f32.gmra.mxu0 %v2031
    %v2210 = vpop.f32.mrf.mxu0
    %v2211 = vadd.f32 %v2121, %v2210
    %2212 = vmatmul.f32.gmra.mxu0 %v2032
    %v2213 = vpop.f32.mrf.mxu0
    %v2214 = vadd.f32 %v2121, %v2213
    %2215 = vmatmul.f32.gmra.mxu0 %v2033
    %v2216 = vpop.f32.mrf.mxu0
    %v2217 = vadd.f32 %v2121, %v2216
    %2218 = vmatmul.f32.gmra.mxu0 %v2034
    %v2219 = vpop.f32.mrf.mxu0
    %v2220 = vadd.f32 %v2121, %v2219
    %2221 = vmatmul.f32.gmra.mxu0 %v2035
    %v2222 = vpop.f32.mrf.mxu0
    %v2223 = vadd.f32 %v2121, %v2222
    %2224 = vmatmul.f32.gmra.mxu0 %v2036
    %v2225 = vpop.f32.mrf.mxu0
    %v2226 = vadd.f32 %v2121, %v2225
    %2227 = vmatmul.f32.gmra.mxu0 %v2037
    %v2228 = vpop.f32.mrf.mxu0
    %v2229 = vadd.f32 %v2121, %v2228
    %2230 = vmatmul.f32.gmra.mxu0 %v2038
    %v2231 = vpop.f32.mrf.mxu0
    %v2232 = vadd.f32 %v2121, %v2231
    %2233 = vmatmul.f32.gmra.mxu0 %v2039
    %v2234 = vpop.f32.mrf.mxu0
    %v2235 = vadd.f32 %v2121, %v2234
    %2236 = vmatmul.f32.gmra.mxu0 %v2040
    %v2237 = vpop.f32.mrf.mxu0
    %v2238 = vadd.f32 %v2121, %v2237
    %2239 = vmatmul.f32.gmra.mxu0 %v2041
    %v2240 = vpop.f32.mrf.mxu0
    %v2241 = vadd.f32 %v2121, %v2240
    %2242 = vmatmul.f32.gmra.mxu0 %v2042
    %v2243 = vpop.f32.mrf.mxu0
    %v2244 = vadd.f32 %v2121, %v2243
    %2245 = vdwg.mxu0
    %2246 = vmatpush.msra.mxu0 0.0
    %2247 = vmatpush.msra.mxu0 0.0
    %2248 = vmatpush.msra.mxu0 %v2176
    %2249 = vmatpush.msra.mxu0 %v2115
    %2250 = vmatpush.msra.mxu0 %v2113
    %2251 = vmatpush.msra.mxu0 %v2111
    %2252 = vmatpush.msra.mxu0 %v2109
    %2253 = vmatpush.msra.mxu0 %v2107
    %2254 = vmatpush.msra.mxu0 %v2105
    %2255 = vmatpush.msra.mxu0 %v2103
    %2256 = vmatpush.msra.mxu0 %v2101
    %2257 = vmatpush.msra.mxu0 %v2099
    %2258 = vmatpush.msra.mxu0 %v2097
    %2259 = vmatpush.msra.mxu0 %v2095
    %2260 = vmatpush.msra.mxu0 %v2093
    %2261 = vmatpush.msra.mxu0 %v2091
    %2262 = vmatmul.f32.gmra.mxu0 %v2127
    %v2263 = vpop.f32.mrf.mxu0
    %v2264 = vadd.f32 %v2199, %v2263
    %2265 = vmatmul.f32.gmra.mxu0 %v2130
    %v2266 = vpop.f32.mrf.mxu0
    %v2267 = vadd.f32 %v2202, %v2266
    %2268 = vmatmul.f32.gmra.mxu0 %v2133
    %v2269 = vpop.f32.mrf.mxu0
    %v2270 = vadd.f32 %v2205, %v2269
    %2271 = vmatmul.f32.gmra.mxu0 %v2136
    %v2272 = vpop.f32.mrf.mxu0
    %v2273 = vadd.f32 %v2208, %v2272
    %2274 = vmatmul.f32.gmra.mxu0 %v2139
    %v2275 = vpop.f32.mrf.mxu0
    %v2276 = vadd.f32 %v2211, %v2275
    %2277 = vmatmul.f32.gmra.mxu0 %v2142
    %v2278 = vpop.f32.mrf.mxu0
    %v2279 = vadd.f32 %v2214, %v2278
    %2280 = vmatmul.f32.gmra.mxu0 %v2145
    %v2281 = vpop.f32.mrf.mxu0
    %v2282 = vadd.f32 %v2217, %v2281
    %2283 = vmatmul.f32.gmra.mxu0 %v2148
    %v2284 = vpop.f32.mrf.mxu0
    %v2285 = vadd.f32 %v2220, %v2284
    %2286 = vmatmul.f32.gmra.mxu0 %v2151
    %v2287 = vpop.f32.mrf.mxu0
    %v2288 = vadd.f32 %v2223, %v2287
    %2289 = vmatmul.f32.gmra.mxu0 %v2154
    %v2290 = vpop.f32.mrf.mxu0
    %v2291 = vadd.f32 %v2226, %v2290
    %2292 = vmatmul.f32.gmra.mxu0 %v2157
    %v2293 = vpop.f32.mrf.mxu0
    %v2294 = vadd.f32 %v2229, %v2293
    %2295 = vmatmul.f32.gmra.mxu0 %v2160
    %v2296 = vpop.f32.mrf.mxu0
    %v2297 = vadd.f32 %v2232, %v2296
    %2298 = vmatmul.f32.gmra.mxu0 %v2163
    %v2299 = vpop.f32.mrf.mxu0
    %v2300 = vadd.f32 %v2235, %v2299
    %2301 = vmatmul.f32.gmra.mxu0 %v2166
    %v2302 = vpop.f32.mrf.mxu0
    %v2303 = vadd.f32 %v2238, %v2302
    %2304 = vmatmul.f32.gmra.mxu0 %v2169
    %v2305 = vpop.f32.mrf.mxu0
    %v2306 = vadd.f32 %v2241, %v2305
    %2307 = vmatmul.f32.gmra.mxu0 %v2172
    %v2308 = vpop.f32.mrf.mxu0
    %v2309 = vadd.f32 %v2244, %v2308
    %2310 = vdwg.mxu0
    %2311 = vmatpush.msra.mxu0 %v2090
    %2312 = vmatpush.msra.mxu0 %v2088
    %2313 = vmatpush.msra.mxu0 %v2086
    %2314 = vmatpush.msra.mxu0 %v2084
    %2315 = vmatpush.msra.mxu0 %v2082
    %2316 = vmatpush.msra.mxu0 %v2080
    %2317 = vmatpush.msra.mxu0 %v2078
    %2318 = vmatpush.msra.mxu0 %v2076
    %2319 = vmatpush.msra.mxu0 %v2074
    %2320 = vmatpush.msra.mxu0 %v2072
    %2321 = vmatpush.msra.mxu0 %v2070
    %2322 = vmatpush.msra.mxu0 %v2068
    %2323 = vmatpush.msra.mxu0 %v2066
    %2324 = vmatpush.msra.mxu0 %v2064
    %2325 = vmatpush.msra.mxu0 %v2062
    %2326 = vmatpush.msra.mxu0 %v2060
    %2327 = vmatmul.f32.gmra.mxu0 %v2027
    %v2328 = vpop.f32.mrf.mxu0
    %v2329 = vadd.f32 %v2122, %v2328
    %2330 = vmatmul.f32.gmra.mxu0 %v2028
    %v2331 = vpop.f32.mrf.mxu0
    %v2332 = vadd.f32 %v2122, %v2331
    %2333 = vmatmul.f32.gmra.mxu0 %v2029
    %v2334 = vpop.f32.mrf.mxu0
    %v2335 = vadd.f32 %v2122, %v2334
    %2336 = vmatmul.f32.gmra.mxu0 %v2030
    %v2337 = vpop.f32.mrf.mxu0
    %v2338 = vadd.f32 %v2122, %v2337
    %2339 = vmatmul.f32.gmra.mxu0 %v2031
    %v2340 = vpop.f32.mrf.mxu0
    %v2341 = vadd.f32 %v2122, %v2340
    %2342 = vmatmul.f32.gmra.mxu0 %v2032
    %v2343 = vpop.f32.mrf.mxu0
    %v2344 = vadd.f32 %v2122, %v2343
    %2345 = vmatmul.f32.gmra.mxu0 %v2033
    %v2346 = vpop.f32.mrf.mxu0
    %v2347 = vadd.f32 %v2122, %v2346
    %2348 = vmatmul.f32.gmra.mxu0 %v2034
    %v2349 = vpop.f32.mrf.mxu0
    %v2350 = vadd.f32 %v2122, %v2349
    %2351 = vmatmul.f32.gmra.mxu0 %v2035
    %v2352 = vpop.f32.mrf.mxu0
    %v2353 = vadd.f32 %v2122, %v2352
    %2354 = vmatmul.f32.gmra.mxu0 %v2036
    %v2355 = vpop.f32.mrf.mxu0
    %v2356 = vadd.f32 %v2122, %v2355
    %2357 = vmatmul.f32.gmra.mxu0 %v2037
    %v2358 = vpop.f32.mrf.mxu0
    %v2359 = vadd.f32 %v2122, %v2358
    %2360 = vmatmul.f32.gmra.mxu0 %v2038
    %v2361 = vpop.f32.mrf.mxu0
    %v2362 = vadd.f32 %v2122, %v2361
    %2363 = vmatmul.f32.gmra.mxu0 %v2039
    %v2364 = vpop.f32.mrf.mxu0
    %v2365 = vadd.f32 %v2122, %v2364
    %2366 = vmatmul.f32.gmra.mxu0 %v2040
    %v2367 = vpop.f32.mrf.mxu0
    %v2368 = vadd.f32 %v2122, %v2367
    %2369 = vmatmul.f32.gmra.mxu0 %v2041
    %v2370 = vpop.f32.mrf.mxu0
    %v2371 = vadd.f32 %v2122, %v2370
    %2372 = vmatmul.f32.gmra.mxu0 %v2042
    %v2373 = vpop.f32.mrf.mxu0
    %v2374 = vadd.f32 %v2122, %v2373
    %2375 = vdwg.mxu0
    %2376 = vmatpush.msra.mxu0 0.0
    %2377 = vmatpush.msra.mxu0 0.0
    %2378 = vmatpush.msra.mxu0 %v2179
    %2379 = vmatpush.msra.mxu0 %v2116
    %2380 = vmatpush.msra.mxu0 %v2114
    %2381 = vmatpush.msra.mxu0 %v2112
    %2382 = vmatpush.msra.mxu0 %v2110
    %2383 = vmatpush.msra.mxu0 %v2108
    %2384 = vmatpush.msra.mxu0 %v2106
    %2385 = vmatpush.msra.mxu0 %v2104
    %2386 = vmatpush.msra.mxu0 %v2102
    %2387 = vmatpush.msra.mxu0 %v2100
    %2388 = vmatpush.msra.mxu0 %v2098
    %2389 = vmatpush.msra.mxu0 %v2096
    %2390 = vmatpush.msra.mxu0 %v2094
    %2391 = vmatpush.msra.mxu0 %v2092
    %2392 = vmatmul.f32.gmra.mxu0 %v2127
    %v2393 = vpop.f32.mrf.mxu0
    %v2394 = vadd.f32 %v2329, %v2393
    %2395 = vmatmul.f32.gmra.mxu0 %v2130
    %v2396 = vpop.f32.mrf.mxu0
    %v2397 = vadd.f32 %v2332, %v2396
    %2398 = vmatmul.f32.gmra.mxu0 %v2133
    %v2399 = vpop.f32.mrf.mxu0
    %v2400 = vadd.f32 %v2335, %v2399
    %2401 = vmatmul.f32.gmra.mxu0 %v2136
    %v2402 = vpop.f32.mrf.mxu0
    %v2403 = vadd.f32 %v2338, %v2402
    %2404 = vmatmul.f32.gmra.mxu0 %v2139
    %v2405 = vpop.f32.mrf.mxu0
    %v2406 = vadd.f32 %v2341, %v2405
    %2407 = vmatmul.f32.gmra.mxu0 %v2142
    %v2408 = vpop.f32.mrf.mxu0
    %v2409 = vadd.f32 %v2344, %v2408
    %2410 = vmatmul.f32.gmra.mxu0 %v2145
    %v2411 = vpop.f32.mrf.mxu0
    %v2412 = vadd.f32 %v2347, %v2411
    %2413 = vmatmul.f32.gmra.mxu0 %v2148
    %v2414 = vpop.f32.mrf.mxu0
    %v2415 = vadd.f32 %v2350, %v2414
    %2416 = vmatmul.f32.gmra.mxu0 %v2151
    %v2417 = vpop.f32.mrf.mxu0
    %v2418 = vadd.f32 %v2353, %v2417
    %2419 = vmatmul.f32.gmra.mxu0 %v2154
    %v2420 = vpop.f32.mrf.mxu0
    %v2421 = vadd.f32 %v2356, %v2420
    %2422 = vmatmul.f32.gmra.mxu0 %v2157
    %v2423 = vpop.f32.mrf.mxu0
    %v2424 = vadd.f32 %v2359, %v2423
    %2425 = vmatmul.f32.gmra.mxu0 %v2160
    %v2426 = vpop.f32.mrf.mxu0
    %v2427 = vadd.f32 %v2362, %v2426
    %2428 = vmatmul.f32.gmra.mxu0 %v2163
    %v2429 = vpop.f32.mrf.mxu0
    %v2430 = vadd.f32 %v2365, %v2429
    %2431 = vmatmul.f32.gmra.mxu0 %v2166
    %v2432 = vpop.f32.mrf.mxu0
    %v2433 = vadd.f32 %v2368, %v2432
    %2434 = vmatmul.f32.gmra.mxu0 %v2169
    %v2435 = vpop.f32.mrf.mxu0
    %v2436 = vadd.f32 %v2371, %v2435
    %2437 = vmatmul.f32.gmra.mxu0 %v2172
    %v2438 = vpop.f32.mrf.mxu0
    %v2439 = vadd.f32 %v2374, %v2438
    %2440 = vdwg.mxu0
    %v2441 = vmax.f32 %v2264, 0.0
    %v2442 = vmax.f32 %v2394, 0.0
    %v2443 = vmax.f32 %v2267, 0.0
    %v2444 = vmax.f32 %v2397, 0.0
    %v2445 = vmax.f32 %v2270, 0.0
    %v2446 = vmax.f32 %v2400, 0.0
    %v2447 = vmax.f32 %v2273, 0.0
    %v2448 = vmax.f32 %v2403, 0.0
    %v2449 = vmax.f32 %v2276, 0.0
    %v2450 = vmax.f32 %v2406, 0.0
    %v2451 = vmax.f32 %v2279, 0.0
    %v2452 = vmax.f32 %v2409, 0.0
    %v2453 = vmax.f32 %v2282, 0.0
    %v2454 = vmax.f32 %v2412, 0.0
    %v2455 = vmax.f32 %v2285, 0.0
    %v2456 = vmax.f32 %v2415, 0.0
    %v2457 = vmax.f32 %v2288, 0.0
    %v2458 = vmax.f32 %v2418, 0.0
    %v2459 = vmax.f32 %v2291, 0.0
    %v2460 = vmax.f32 %v2421, 0.0
    %v2461 = vmax.f32 %v2294, 0.0
    %v2462 = vmax.f32 %v2424, 0.0
    %v2463 = vmax.f32 %v2297, 0.0
    %v2464 = vmax.f32 %v2427, 0.0
    %v2465 = vmax.f32 %v2300, 0.0
    %v2466 = vmax.f32 %v2430, 0.0
    %v2467 = vmax.f32 %v2303, 0.0
    %v2468 = vmax.f32 %v2433, 0.0
    %v2469 = vmax.f32 %v2306, 0.0
    %v2470 = vmax.f32 %v2436, 0.0
    %v2471 = vmax.f32 %v2309, 0.0
    %v2472 = vmax.f32 %v2439, 0.0
    %v2473 = vld [vmem:[%s7] sm:$0xff]
    %v2474 = vld [vmem:[%s7 + $0x8] sm:$0xff]
    %v2475 = vld [vmem:[%s7 + $0x10] sm:$0xff]
    %v2476 = vld [vmem:[%s7 + $0x18] sm:$0xff]
    %v2477 = vld [vmem:[%s7 + $0x20] sm:$0xff]
    %v2478 = vld [vmem:[%s7 + $0x28] sm:$0xff]
    %v2479 = vld [vmem:[%s7 + $0x30] sm:$0xff]
    %v2480 = vld [vmem:[%s7 + $0x38] sm:$0xff]
    %v2481 = vrot.slane %v2441, 1
    %v2482 = vrot.slane %v2442, 1
    %v2483 = vrot.slane %v2443, 1
    %v2484 = vrot.slane %v2444, 1
    %v2485 = vrot.slane %v2445, 1
    %v2486 = vrot.slane %v2446, 1
    %v2487 = vrot.slane %v2447, 1
    %v2488 = vrot.slane %v2448, 1
    %v2489 = vrot.slane %v2449, 1
    %v2490 = vrot.slane %v2450, 1
    %v2491 = vrot.slane %v2451, 1
    %v2492 = vrot.slane %v2452, 1
    %v2493 = vrot.slane %v2453, 1
    %v2494 = vrot.slane %v2454, 1
    %v2495 = vrot.slane %v2455, 1
    %v2496 = vrot.slane %v2456, 1
    %v2497 = vrot.slane %v2457, 1
    %v2498 = vrot.slane %v2458, 1
    %v2499 = vrot.slane %v2459, 1
    %v2500 = vrot.slane %v2460, 1
    %v2501 = vrot.slane %v2461, 1
    %v2502 = vrot.slane %v2462, 1
    %v2503 = vrot.slane %v2463, 1
    %v2504 = vrot.slane %v2464, 1
    %v2505 = vrot.slane %v2465, 1
    %v2506 = vrot.slane %v2466, 1
    %v2507 = vrot.slane %v2467, 1
    %v2508 = vrot.slane %v2468, 1
    %v2509 = vrot.slane %v2469, 1
    %v2510 = vrot.slane %v2470, 1
    %v2511 = vrot.slane %v2471, 1
    %v2512 = vrot.slane %v2472, 1
    %v2513 = vsel %vm138, %v2509, %v2511
    %v2514 = vsel %vm138, %v2510, %v2512
    %v2515 = vsel %vm138, %v2507, %v2509
    %v2516 = vsel %vm138, %v2508, %v2510
    %v2517 = vsel %vm138, %v2505, %v2507
    %v2518 = vsel %vm138, %v2506, %v2508
    %v2519 = vsel %vm138, %v2503, %v2505
    %v2520 = vsel %vm138, %v2504, %v2506
    %v2521 = vsel %vm138, %v2501, %v2503
    %v2522 = vsel %vm138, %v2502, %v2504
    %v2523 = vsel %vm138, %v2499, %v2501
    %v2524 = vsel %vm138, %v2500, %v2502
    %v2525 = vsel %vm138, %v2497, %v2499
    %v2526 = vsel %vm138, %v2498, %v2500
    %v2527 = vsel %vm138, %v2495, %v2497
    %v2528 = vsel %vm138, %v2496, %v2498
    %v2529 = vsel %vm138, %v2493, %v2495
    %v2530 = vsel %vm138, %v2494, %v2496
    %v2531 = vsel %vm138, %v2491, %v2493
    %v2532 = vsel %vm138, %v2492, %v2494
    %v2533 = vsel %vm138, %v2489, %v2491
    %v2534 = vsel %vm138, %v2490, %v2492
    %v2535 = vsel %vm138, %v2487, %v2489
    %v2536 = vsel %vm138, %v2488, %v2490
    %v2537 = vsel %vm138, %v2485, %v2487
    %v2538 = vsel %vm138, %v2486, %v2488
    %v2539 = vsel %vm138, %v2483, %v2485
    %v2540 = vsel %vm138, %v2484, %v2486
    %v2541 = vsel %vm138, %v2481, %v2483
    %v2542 = vsel %vm138, %v2482, %v2484
    %v2543 = vsel %vm138, %v2511, %v2481
    %v2544 = vsel %vm138, %v2512, %v2482
    %v2545 = vmax.f32 %v2441, %v2541
    %v2546 = vmax.f32 %v2442, %v2542
    %v2547 = vmax.f32 %v2443, %v2539
    %v2548 = vmax.f32 %v2444, %v2540
    %v2549 = vmax.f32 %v2445, %v2537
    %v2550 = vmax.f32 %v2446, %v2538
    %v2551 = vmax.f32 %v2447, %v2535
    %v2552 = vmax.f32 %v2448, %v2536
    %v2553 = vmax.f32 %v2449, %v2533
    %v2554 = vmax.f32 %v2450, %v2534
    %v2555 = vmax.f32 %v2451, %v2531
    %v2556 = vmax.f32 %v2452, %v2532
    %v2557 = vmax.f32 %v2453, %v2529
    %v2558 = vmax.f32 %v2454, %v2530
    %v2559 = vmax.f32 %v2455, %v2527
    %v2560 = vmax.f32 %v2456, %v2528
    %v2561 = vmax.f32 %v2457, %v2525
    %v2562 = vmax.f32 %v2458, %v2526
    %v2563 = vmax.f32 %v2459, %v2523
    %v2564 = vmax.f32 %v2460, %v2524
    %v2565 = vmax.f32 %v2461, %v2521
    %v2566 = vmax.f32 %v2462, %v2522
    %v2567 = vmax.f32 %v2463, %v2519
    %v2568 = vmax.f32 %v2464, %v2520
    %v2569 = vmax.f32 %v2465, %v2517
    %v2570 = vmax.f32 %v2466, %v2518
    %v2571 = vmax.f32 %v2467, %v2515
    %v2572 = vmax.f32 %v2468, %v2516
    %v2573 = vmax.f32 %v2469, %v2513
    %v2574 = vmax.f32 %v2470, %v2514
    %v2575 = vmax.f32 %v2471, %v2543
    %v2576 = vmax.f32 %v2472, %v2544
    %2577 = vmatpush.msra.mxu0 %v2575
    %2578 = vmatpush.msra.mxu0 %v2573
    %2579 = vmatpush.msra.mxu0 %v2571
    %2580 = vmatpush.msra.mxu0 %v2569
    %2581 = vmatpush.msra.mxu0 %v2567
    %2582 = vmatpush.msra.mxu0 %v2565
    %2583 = vmatpush.msra.mxu0 %v2563
    %2584 = vmatpush.msra.mxu0 %v2561
    %2585 = vmatpush.msra.mxu0 %v2559
    %2586 = vmatpush.msra.mxu0 %v2557
    %2587 = vmatpush.msra.mxu0 %v2555
    %2588 = vmatpush.msra.mxu0 %v2553
    %2589 = vmatpush.msra.mxu0 %v2551
    %2590 = vmatpush.msra.mxu0 %v2549
    %2591 = vmatpush.msra.mxu0 %v2547
    %2592 = vmatpush.msra.mxu0 %v2545
    %2593 = vmatmul.f32.gmra.mxu0 %v2473
    %v2594 = vpop.f32.mrf.mxu0
    %v2595 = vadd.f32 0.0, %v2594
    %2596 = vmatmul.f32.gmra.mxu0 %v2474
    %v2597 = vpop.f32.mrf.mxu0
    %v2598 = vadd.f32 0.0, %v2597
    %2599 = vmatmul.f32.gmra.mxu0 %v2475
    %v2600 = vpop.f32.mrf.mxu0
    %v2601 = vadd.f32 0.0, %v2600
    %2602 = vmatmul.f32.gmra.mxu0 %v2476
    %v2603 = vpop.f32.mrf.mxu0
    %v2604 = vadd.f32 0.0, %v2603
    %2605 = vmatmul.f32.gmra.mxu0 %v2477
    %v2606 = vpop.f32.mrf.mxu0
    %v2607 = vadd.f32 0.0, %v2606
    %2608 = vmatmul.f32.gmra.mxu0 %v2478
    %v2609 = vpop.f32.mrf.mxu0
    %v2610 = vadd.f32 0.0, %v2609
    %2611 = vmatmul.f32.gmra.mxu0 %v2479
    %v2612 = vpop.f32.mrf.mxu0
    %v2613 = vadd.f32 0.0, %v2612
    %2614 = vmatmul.f32.gmra.mxu0 %v2480
    %v2615 = vpop.f32.mrf.mxu0
    %v2616 = vadd.f32 0.0, %v2615
    %2617 = vdwg.mxu0
    %2618 = vmatpush.msra.mxu0 %v2576
    %2619 = vmatpush.msra.mxu0 %v2574
    %2620 = vmatpush.msra.mxu0 %v2572
    %2621 = vmatpush.msra.mxu0 %v2570
    %2622 = vmatpush.msra.mxu0 %v2568
    %2623 = vmatpush.msra.mxu0 %v2566
    %2624 = vmatpush.msra.mxu0 %v2564
    %2625 = vmatpush.msra.mxu0 %v2562
    %2626 = vmatpush.msra.mxu0 %v2560
    %2627 = vmatpush.msra.mxu0 %v2558
    %2628 = vmatpush.msra.mxu0 %v2556
    %2629 = vmatpush.msra.mxu0 %v2554
    %2630 = vmatpush.msra.mxu0 %v2552
    %2631 = vmatpush.msra.mxu0 %v2550
    %2632 = vmatpush.msra.mxu0 %v2548
    %2633 = vmatpush.msra.mxu0 %v2546
    %2634 = vmatmul.f32.gmra.mxu0 %v2473
    %v2635 = vpop.f32.mrf.mxu0
    %v2636 = vadd.f32 0.0, %v2635
    %2637 = vmatmul.f32.gmra.mxu0 %v2474
    %v2638 = vpop.f32.mrf.mxu0
    %v2639 = vadd.f32 0.0, %v2638
    %2640 = vmatmul.f32.gmra.mxu0 %v2475
    %v2641 = vpop.f32.mrf.mxu0
    %v2642 = vadd.f32 0.0, %v2641
    %2643 = vmatmul.f32.gmra.mxu0 %v2476
    %v2644 = vpop.f32.mrf.mxu0
    %v2645 = vadd.f32 0.0, %v2644
    %2646 = vmatmul.f32.gmra.mxu0 %v2477
    %v2647 = vpop.f32.mrf.mxu0
    %v2648 = vadd.f32 0.0, %v2647
    %2649 = vmatmul.f32.gmra.mxu0 %v2478
    %v2650 = vpop.f32.mrf.mxu0
    %v2651 = vadd.f32 0.0, %v2650
    %2652 = vmatmul.f32.gmra.mxu0 %v2479
    %v2653 = vpop.f32.mrf.mxu0
    %v2654 = vadd.f32 0.0, %v2653
    %2655 = vmatmul.f32.gmra.mxu0 %v2480
    %v2656 = vpop.f32.mrf.mxu0
    %v2657 = vadd.f32 0.0, %v2656
    %2658 = vdwg.mxu0
    %v2659 = vld [vmem:[%s8] sm:$0xff]
    %v2660 = vld [vmem:[%s8 + $0x8] sm:$0xff]
    %v2661 = vld [vmem:[%s8 + $0x10] sm:$0xff]
    %v2662 = vld [vmem:[%s8 + $0x18] sm:$0xff]
    %v2663 = vld [vmem:[%s8 + $0x20] sm:$0xff]
    %v2664 = vld [vmem:[%s8 + $0x28] sm:$0xff]
    %v2665 = vld [vmem:[%s8 + $0x30] sm:$0xff]
    %v2666 = vld [vmem:[%s8 + $0x38] sm:$0xff]
    %v2667 = vld [vmem:[%s8 + $0x40] sm:$0xff]
    %v2668 = vld [vmem:[%s8 + $0x48] sm:$0xff]
    %v2669 = vld [vmem:[%s8 + $0x50] sm:$0xff]
    %v2670 = vld [vmem:[%s8 + $0x58] sm:$0xff]
    %v2671 = vld [vmem:[%s8 + $0x60] sm:$0xff]
    %v2672 = vld [vmem:[%s8 + $0x68] sm:$0xff]
    %v2673 = vld [vmem:[%s8 + $0x70] sm:$0xff]
    %v2674 = vld [vmem:[%s8 + $0x78] sm:$0xff]
    %v2675 = vld [vmem:[%s8 + $0x80] sm:$0xff]
    %v2676 = vld [vmem:[%s8 + $0x88] sm:$0xff]
    %v2677 = vld [vmem:[%s8 + $0x90] sm:$0xff]
    %v2678 = vld [vmem:[%s8 + $0x98] sm:$0xff]
    %v2679 = vld [vmem:[%s8 + $0xa0] sm:$0xff]
    %v2680 = vld [vmem:[%s8 + $0xa8] sm:$0xff]
    %v2681 = vld [vmem:[%s8 + $0xb0] sm:$0xff]
    %v2682 = vld [vmem:[%s8 + $0xb8] sm:$0xff]
    %v2683 = vld [vmem:[%s8 + $0xc0] sm:$0xff]
    %v2684 = vld [vmem:[%s8 + $0xc8] sm:$0xff]
    %v2685 = vld [vmem:[%s8 + $0xd0] sm:$0xff]
    %v2686 = vld [vmem:[%s8 + $0xd8] sm:$0xff]
    %v2687 = vld [vmem:[%s8 + $0xe0] sm:$0xff]
    %v2688 = vld [vmem:[%s8 + $0xe8] sm:$0xff]
    %v2689 = vld [vmem:[%s8 + $0xf0] sm:$0xff]
    %v2690 = vld [vmem:[%s8 + $0xf8] sm:$0xff]
    %v2691 = vld [vmem:[%s8 + $0x100] sm:$0xff]
    %v2692 = vld [vmem:[%s8 + $0x108] sm:$0xff]
    %v2693 = vld [vmem:[%s8 + $0x110] sm:$0xff]
    %v2694 = vld [vmem:[%s8 + $0x118] sm:$0xff]
    %v2695 = vld [vmem:[%s8 + $0x120] sm:$0xff]
    %v2696 = vld [vmem:[%s8 + $0x128] sm:$0xff]
    %v2697 = vld [vmem:[%s8 + $0x130] sm:$0xff]
    %v2698 = vld [vmem:[%s8 + $0x138] sm:$0xff]
    %v2699 = vld [vmem:[%s8 + $0x140] sm:$0xff]
    %v2700 = vld [vmem:[%s8 + $0x148] sm:$0xff]
    %v2701 = vld [vmem:[%s8 + $0x150] sm:$0xff]
    %v2702 = vld [vmem:[%s8 + $0x158] sm:$0xff]
    %vm2703 = vcmask 392192
    %v2705 = vsel %vm2703, %v2636, 0
    %v2708 = vsel %vm2703, %v2639, 0
    %v2711 = vsel %vm2703, %v2642, 0
    %v2714 = vsel %vm2703, %v2645, 0
    %v2717 = vsel %vm2703, %v2648, 0
    %v2720 = vsel %vm2703, %v2651, 0
    %v2723 = vsel %vm2703, %v2654, 0
    %v2726 = vsel %vm2703, %v2657, 0
    %2728 = vmatpush.msra.mxu0 %v2689
    %2729 = vmatpush.msra.mxu0 %v2687
    %2730 = vmatpush.msra.mxu0 %v2685
    %2731 = vmatpush.msra.mxu0 %v2683
    %2732 = vmatpush.msra.mxu0 %v2681
    %2733 = vmatpush.msra.mxu0 %v2679
    %2734 = vmatpush.msra.mxu0 %v2677
    %2735 = vmatpush.msra.mxu0 %v2675
    %2736 = vmatpush.msra.mxu0 %v2673
    %2737 = vmatpush.msra.mxu0 %v2671
    %2738 = vmatpush.msra.mxu0 %v2669
    %2739 = vmatpush.msra.mxu0 %v2667
    %2740 = vmatpush.msra.mxu0 %v2665
    %2741 = vmatpush.msra.mxu0 %v2663
    %2742 = vmatpush.msra.mxu0 %v2661
    %2743 = vmatpush.msra.mxu0 %v2659
    %2744 = vmatmul.f32.gmra.mxu0 %v2595
    %v2745 = vpop.f32.mrf.mxu0
    %v2746 = vadd.f32 0.0, %v2745
    %2747 = vmatmul.f32.gmra.mxu0 %v2598
    %v2748 = vpop.f32.mrf.mxu0
    %v2749 = vadd.f32 0.0, %v2748
    %2750 = vmatmul.f32.gmra.mxu0 %v2601
    %v2751 = vpop.f32.mrf.mxu0
    %v2752 = vadd.f32 0.0, %v2751
    %2753 = vmatmul.f32.gmra.mxu0 %v2604
    %v2754 = vpop.f32.mrf.mxu0
    %v2755 = vadd.f32 0.0, %v2754
    %2756 = vmatmul.f32.gmra.mxu0 %v2607
    %v2757 = vpop.f32.mrf.mxu0
    %v2758 = vadd.f32 0.0, %v2757
    %2759 = vmatmul.f32.gmra.mxu0 %v2610
    %v2760 = vpop.f32.mrf.mxu0
    %v2761 = vadd.f32 0.0, %v2760
    %2762 = vmatmul.f32.gmra.mxu0 %v2613
    %v2763 = vpop.f32.mrf.mxu0
    %v2764 = vadd.f32 0.0, %v2763
    %2765 = vmatmul.f32.gmra.mxu0 %v2616
    %v2766 = vpop.f32.mrf.mxu0
    %v2767 = vadd.f32 0.0, %v2766
    %2768 = vdwg.mxu0
    %2769 = vmatpush.msra.mxu0 0.0
    %2770 = vmatpush.msra.mxu0 0.0
    %2771 = vmatpush.msra.mxu0 0.0
    %2772 = vmatpush.msra.mxu0 0.0
    %2773 = vmatpush.msra.mxu0 0.0
    %2774 = vmatpush.msra.mxu0 0.0
    %2775 = vmatpush.msra.mxu0 0.0
    %2776 = vmatpush.msra.mxu0 0.0
    %2777 = vmatpush.msra.mxu0 0.0
    %2778 = vmatpush.msra.mxu0 0.0
    %2779 = vmatpush.msra.mxu0 %v2701
    %2780 = vmatpush.msra.mxu0 %v2699
    %2781 = vmatpush.msra.mxu0 %v2697
    %2782 = vmatpush.msra.mxu0 %v2695
    %2783 = vmatpush.msra.mxu0 %v2693
    %2784 = vmatpush.msra.mxu0 %v2691
    %2785 = vmatmul.f32.gmra.mxu0 %v2705
    %v2786 = vpop.f32.mrf.mxu0
    %v2787 = vadd.f32 %v2746, %v2786
    %2788 = vmatmul.f32.gmra.mxu0 %v2708
    %v2789 = vpop.f32.mrf.mxu0
    %v2790 = vadd.f32 %v2749, %v2789
    %2791 = vmatmul.f32.gmra.mxu0 %v2711
    %v2792 = vpop.f32.mrf.mxu0
    %v2793 = vadd.f32 %v2752, %v2792
    %2794 = vmatmul.f32.gmra.mxu0 %v2714
    %v2795 = vpop.f32.mrf.mxu0
    %v2796 = vadd.f32 %v2755, %v2795
    %2797 = vmatmul.f32.gmra.mxu0 %v2717
    %v2798 = vpop.f32.mrf.mxu0
    %v2799 = vadd.f32 %v2758, %v2798
    %2800 = vmatmul.f32.gmra.mxu0 %v2720
    %v2801 = vpop.f32.mrf.mxu0
    %v2802 = vadd.f32 %v2761, %v2801
    %2803 = vmatmul.f32.gmra.mxu0 %v2723
    %v2804 = vpop.f32.mrf.mxu0
    %v2805 = vadd.f32 %v2764, %v2804
    %2806 = vmatmul.f32.gmra.mxu0 %v2726
    %v2807 = vpop.f32.mrf.mxu0
    %v2808 = vadd.f32 %v2767, %v2807
    %2809 = vdwg.mxu0
    %2810 = vmatpush.msra.mxu0 %v2690
    %2811 = vmatpush.msra.mxu0 %v2688
    %2812 = vmatpush.msra.mxu0 %v2686
    %2813 = vmatpush.msra.mxu0 %v2684
    %2814 = vmatpush.msra.mxu0 %v2682
    %2815 = vmatpush.msra.mxu0 %v2680
    %2816 = vmatpush.msra.mxu0 %v2678
    %2817 = vmatpush.msra.mxu0 %v2676
    %2818 = vmatpush.msra.mxu0 %v2674
    %2819 = vmatpush.msra.mxu0 %v2672
    %2820 = vmatpush.msra.mxu0 %v2670
    %2821 = vmatpush.msra.mxu0 %v2668
    %2822 = vmatpush.msra.mxu0 %v2666
    %2823 = vmatpush.msra.mxu0 %v2664
    %2824 = vmatpush.msra.mxu0 %v2662
    %2825 = vmatpush.msra.mxu0 %v2660
    %2826 = vmatmul.f32.gmra.mxu0 %v2595
    %v2827 = vpop.f32.mrf.mxu0
    %v2828 = vadd.f32 0.0, %v2827
    %2829 = vmatmul.f32.gmra.mxu0 %v2598
    %v2830 = vpop.f32.mrf.mxu0
    %v2831 = vadd.f32 0.0, %v2830
    %2832 = vmatmul.f32.gmra.mxu0 %v2601
    %v2833 = vpop.f32.mrf.mxu0
    %v2834 = vadd.f32 0.0, %v2833
    %2835 = vmatmul.f32.gmra.mxu0 %v2604
    %v2836 = vpop.f32.mrf.mxu0
    %v2837 = vadd.f32 0.0, %v2836
    %2838 = vmatmul.f32.gmra.mxu0 %v2607
    %v2839 = vpop.f32.mrf.mxu0
    %v2840 = vadd.f32 0.0, %v2839
    %2841 = vmatmul.f32.gmra.mxu0 %v2610
    %v2842 = vpop.f32.mrf.mxu0
    %v2843 = vadd.f32 0.0, %v2842
    %2844 = vmatmul.f32.gmra.mxu0 %v2613
    %v2845 = vpop.f32.mrf.mxu0
    %v2846 = vadd.f32 0.0, %v2845
    %2847 = vmatmul.f32.gmra.mxu0 %v2616
    %v2848 = vpop.f32.mrf.mxu0
    %v2849 = vadd.f32 0.0, %v2848
    %2850 = vdwg.mxu0
    %2851 = vmatpush.msra.mxu0 0.0
    %2852 = vmatpush.msra.mxu0 0.0
    %2853 = vmatpush.msra.mxu0 0.0
    %2854 = vmatpush.msra.mxu0 0.0
    %2855 = vmatpush.msra.mxu0 0.0
    %2856 = vmatpush.msra.mxu0 0.0
    %2857 = vmatpush.msra.mxu0 0.0
    %2858 = vmatpush.msra.mxu0 0.0
    %2859 = vmatpush.msra.mxu0 0.0
    %2860 = vmatpush.msra.mxu0 0.0
    %2861 = vmatpush.msra.mxu0 %v2702
    %2862 = vmatpush.msra.mxu0 %v2700
    %2863 = vmatpush.msra.mxu0 %v2698
    %2864 = vmatpush.msra.mxu0 %v2696
    %2865 = vmatpush.msra.mxu0 %v2694
    %2866 = vmatpush.msra.mxu0 %v2692
    %2867 = vmatmul.f32.gmra.mxu0 %v2705
    %v2868 = vpop.f32.mrf.mxu0
    %v2869 = vadd.f32 %v2828, %v2868
    %2870 = vmatmul.f32.gmra.mxu0 %v2708
    %v2871 = vpop.f32.mrf.mxu0
    %v2872 = vadd.f32 %v2831, %v2871
    %2873 = vmatmul.f32.gmra.mxu0 %v2711
    %v2874 = vpop.f32.mrf.mxu0
    %v2875 = vadd.f32 %v2834, %v2874
    %2876 = vmatmul.f32.gmra.mxu0 %v2714
    %v2877 = vpop.f32.mrf.mxu0
    %v2878 = vadd.f32 %v2837, %v2877
    %2879 = vmatmul.f32.gmra.mxu0 %v2717
    %v2880 = vpop.f32.mrf.mxu0
    %v2881 = vadd.f32 %v2840, %v2880
    %2882 = vmatmul.f32.gmra.mxu0 %v2720
    %v2883 = vpop.f32.mrf.mxu0
    %v2884 = vadd.f32 %v2843, %v2883
    %2885 = vmatmul.f32.gmra.mxu0 %v2723
    %v2886 = vpop.f32.mrf.mxu0
    %v2887 = vadd.f32 %v2846, %v2886
    %2888 = vmatmul.f32.gmra.mxu0 %v2726
    %v2889 = vpop.f32.mrf.mxu0
    %v2890 = vadd.f32 %v2849, %v2889
    %2891 = vdwg.mxu0
    %v2892 = vmax.f32 %v2787, %v2869
    %v2893 = vmax.f32 %v2790, %v2872
    %v2894 = vmax.f32 %v2793, %v2875
    %v2895 = vmax.f32 %v2796, %v2878
    %v2896 = vmax.f32 %v2799, %v2881
    %v2897 = vmax.f32 %v2802, %v2884
    %v2898 = vmax.f32 %v2805, %v2887
    %v2899 = vmax.f32 %v2808, %v2890
    %v2900 = vld [vmem:[%s10] sm:$0xff]
    %v2901 = vld [vmem:[%s10 + $0x8] sm:$0xff]
    %v2902 = vld [vmem:[%s10 + $0x10] sm:$0xff]
    %v2903 = vld [vmem:[%s10 + $0x18] sm:$0xff]
    %v2904 = vld [vmem:[%s10 + $0x20] sm:$0xff]
    %v2905 = vld [vmem:[%s10 + $0x28] sm:$0xff]
    %v2906 = vld [vmem:[%s10 + $0x30] sm:$0xff]
    %v2907 = vld [vmem:[%s10 + $0x38] sm:$0xff]
    %2909 = vset.pattern.permute.xlu0 0
    %2910 = vperm.xlu0 %2909, %v2900
    %v2911 = vpop.permute.xlu0 %2910
    %2914 = vset.pattern.permute.xlu0 0
    %2915 = vperm.xlu0 %2914, %v2901
    %v2916 = vpop.permute.xlu0 %2915
    %2919 = vset.pattern.permute.xlu0 0
    %2920 = vperm.xlu0 %2919, %v2902
    %v2921 = vpop.permute.xlu0 %2920
    %2924 = vset.pattern.permute.xlu0 0
    %2925 = vperm.xlu0 %2924, %v2903
    %v2926 = vpop.permute.xlu0 %2925
    %2929 = vset.pattern.permute.xlu0 0
    %2930 = vperm.xlu0 %2929, %v2904
    %v2931 = vpop.permute.xlu0 %2930
    %2934 = vset.pattern.permute.xlu0 0
    %2935 = vperm.xlu0 %2934, %v2905
    %v2936 = vpop.permute.xlu0 %2935
    %2939 = vset.pattern.permute.xlu0 0
    %2940 = vperm.xlu0 %2939, %v2906
    %v2941 = vpop.permute.xlu0 %2940
    %2944 = vset.pattern.permute.xlu0 0
    %2945 = vperm.xlu0 %2944, %v2907
    %v2946 = vpop.permute.xlu0 %2945
    %v2948 = vmul.f32 %v2892, %v2911
    %v2949 = vmul.f32 %v2893, %v2916
    %v2950 = vmul.f32 %v2894, %v2921
    %v2951 = vmul.f32 %v2895, %v2926
    %v2952 = vmul.f32 %v2896, %v2931
    %v2953 = vmul.f32 %v2897, %v2936
    %v2954 = vmul.f32 %v2898, %v2941
    %v2955 = vmul.f32 %v2899, %v2946
    %2956 = vset.pattern.permute.xlu0 1
    %2957 = vperm.xlu0 %2956, %v2900
    %v2958 = vpop.permute.xlu0 %2957
    %2960 = vset.pattern.permute.xlu0 1
    %2961 = vperm.xlu0 %2960, %v2901
    %v2962 = vpop.permute.xlu0 %2961
    %2964 = vset.pattern.permute.xlu0 1
    %2965 = vperm.xlu0 %2964, %v2902
    %v2966 = vpop.permute.xlu0 %2965
    %2968 = vset.pattern.permute.xlu0 1
    %2969 = vperm.xlu0 %2968, %v2903
    %v2970 = vpop.permute.xlu0 %2969
    %2972 = vset.pattern.permute.xlu0 1
    %2973 = vperm.xlu0 %2972, %v2904
    %v2974 = vpop.permute.xlu0 %2973
    %2976 = vset.pattern.permute.xlu0 1
    %2977 = vperm.xlu0 %2976, %v2905
    %v2978 = vpop.permute.xlu0 %2977
    %2980 = vset.pattern.permute.xlu0 1
    %2981 = vperm.xlu0 %2980, %v2906
    %v2982 = vpop.permute.xlu0 %2981
    %2984 = vset.pattern.permute.xlu0 1
    %2985 = vperm.xlu0 %2984, %v2907
    %v2986 = vpop.permute.xlu0 %2985
    %v2988 = vmul.f32 %v2892, %v2958
    %v2989 = vmul.f32 %v2893, %v2962
    %v2990 = vmul.f32 %v2894, %v2966
    %v2991 = vmul.f32 %v2895, %v2970
    %v2992 = vmul.f32 %v2896, %v2974
    %v2993 = vmul.f32 %v2897, %v2978
    %v2994 = vmul.f32 %v2898, %v2982
    %v2995 = vmul.f32 %v2899, %v2986
    %2996 = vset.pattern.permute.xlu0 2
    %2997 = vperm.xlu0 %2996, %v2900
    %v2998 = vpop.permute.xlu0 %2997
    %3000 = vset.pattern.permute.xlu0 2
    %3001 = vperm.xlu0 %3000, %v2901
    %v3002 = vpop.permute.xlu0 %3001
    %3004 = vset.pattern.permute.xlu0 2
    %3005 = vperm.xlu0 %3004, %v2902
    %v3006 = vpop.permute.xlu0 %3005
    %3008 = vset.pattern.permute.xlu0 2
    %3009 = vperm.xlu0 %3008, %v2903
    %v3010 = vpop.permute.xlu0 %3009
    %3012 = vset.pattern.permute.xlu0 2
    %3013 = vperm.xlu0 %3012, %v2904
    %v3014 = vpop.permute.xlu0 %3013
    %3016 = vset.pattern.permute.xlu0 2
    %3017 = vperm.xlu0 %3016, %v2905
    %v3018 = vpop.permute.xlu0 %3017
    %3020 = vset.pattern.permute.xlu0 2
    %3021 = vperm.xlu0 %3020, %v2906
    %v3022 = vpop.permute.xlu0 %3021
    %3024 = vset.pattern.permute.xlu0 2
    %3025 = vperm.xlu0 %3024, %v2907
    %v3026 = vpop.permute.xlu0 %3025
    %v3028 = vmul.f32 %v2892, %v2998
    %v3029 = vmul.f32 %v2893, %v3002
    %v3030 = vmul.f32 %v2894, %v3006
    %v3031 = vmul.f32 %v2895, %v3010
    %v3032 = vmul.f32 %v2896, %v3014
    %v3033 = vmul.f32 %v2897, %v3018
    %v3034 = vmul.f32 %v2898, %v3022
    %v3035 = vmul.f32 %v2899, %v3026
    %3036 = vset.pattern.permute.xlu0 3
    %3037 = vperm.xlu0 %3036, %v2900
    %v3038 = vpop.permute.xlu0 %3037
    %3040 = vset.pattern.permute.xlu0 3
    %3041 = vperm.xlu0 %3040, %v2901
    %v3042 = vpop.permute.xlu0 %3041
    %3044 = vset.pattern.permute.xlu0 3
    %3045 = vperm.xlu0 %3044, %v2902
    %v3046 = vpop.permute.xlu0 %3045
    %3048 = vset.pattern.permute.xlu0 3
    %3049 = vperm.xlu0 %3048, %v2903
    %v3050 = vpop.permute.xlu0 %3049
    %3052 = vset.pattern.permute.xlu0 3
    %3053 = vperm.xlu0 %3052, %v2904
    %v3054 = vpop.permute.xlu0 %3053
    %3056 = vset.pattern.permute.xlu0 3
    %3057 = vperm.xlu0 %3056, %v2905
    %v3058 = vpop.permute.xlu0 %3057
    %3060 = vset.pattern.permute.xlu0 3
    %3061 = vperm.xlu0 %3060, %v2906
    %v3062 = vpop.permute.xlu0 %3061
    %3064 = vset.pattern.permute.xlu0 3
    %3065 = vperm.xlu0 %3064, %v2907
    %v3066 = vpop.permute.xlu0 %3065
    %v3068 = vmul.f32 %v2892, %v3038
    %v3069 = vmul.f32 %v2893, %v3042
    %v3070 = vmul.f32 %v2894, %v3046
    %v3071 = vmul.f32 %v2895, %v3050
    %v3072 = vmul.f32 %v2896, %v3054
    %v3073 = vmul.f32 %v2897, %v3058
    %v3074 = vmul.f32 %v2898, %v3062
    %v3075 = vmul.f32 %v2899, %v3066
    %3076 = vset.pattern.permute.xlu0 4
    %3077 = vperm.xlu0 %3076, %v2900
    %v3078 = vpop.permute.xlu0 %3077
    %3080 = vset.pattern.permute.xlu0 4
    %3081 = vperm.xlu0 %3080, %v2901
    %v3082 = vpop.permute.xlu0 %3081
    %3084 = vset.pattern.permute.xlu0 4
    %3085 = vperm.xlu0 %3084, %v2902
    %v3086 = vpop.permute.xlu0 %3085
    %3088 = vset.pattern.permute.xlu0 4
    %3089 = vperm.xlu0 %3088, %v2903
    %v3090 = vpop.permute.xlu0 %3089
    %3092 = vset.pattern.permute.xlu0 4
    %3093 = vperm.xlu0 %3092, %v2904
    %v3094 = vpop.permute.xlu0 %3093
    %3096 = vset.pattern.permute.xlu0 4
    %3097 = vperm.xlu0 %3096, %v2905
    %v3098 = vpop.permute.xlu0 %3097
    %3100 = vset.pattern.permute.xlu0 4
    %3101 = vperm.xlu0 %3100, %v2906
    %v3102 = vpop.permute.xlu0 %3101
    %3104 = vset.pattern.permute.xlu0 4
    %3105 = vperm.xlu0 %3104, %v2907
    %v3106 = vpop.permute.xlu0 %3105
    %v3108 = vmul.f32 %v2892, %v3078
    %v3109 = vmul.f32 %v2893, %v3082
    %v3110 = vmul.f32 %v2894, %v3086
    %v3111 = vmul.f32 %v2895, %v3090
    %v3112 = vmul.f32 %v2896, %v3094
    %v3113 = vmul.f32 %v2897, %v3098
    %v3114 = vmul.f32 %v2898, %v3102
    %v3115 = vmul.f32 %v2899, %v3106
    %3124 = vrot.lane.b32.xlu0 %v2988, 80
    %v3125 = vpop.permute.xlu0 %3124
    %3126 = vrot.lane.b32.xlu0 %v2989, 80
    %v3127 = vpop.permute.xlu0 %3126
    %3128 = vrot.lane.b32.xlu0 %v2990, 80
    %v3129 = vpop.permute.xlu0 %3128
    %3130 = vrot.lane.b32.xlu0 %v2991, 80
    %v3131 = vpop.permute.xlu0 %3130
    %3132 = vrot.lane.b32.xlu0 %v2992, 80
    %v3133 = vpop.permute.xlu0 %3132
    %3134 = vrot.lane.b32.xlu0 %v2993, 80
    %v3135 = vpop.permute.xlu0 %3134
    %3136 = vrot.lane.b32.xlu0 %v2994, 80
    %v3137 = vpop.permute.xlu0 %3136
    %3138 = vrot.lane.b32.xlu0 %v2995, 80
    %v3139 = vpop.permute.xlu0 %3138
    %3156 = vrot.lane.b32.xlu0 %v3028, 32
    %v3157 = vpop.permute.xlu0 %3156
    %3158 = vrot.lane.b32.xlu0 %v3029, 32
    %v3159 = vpop.permute.xlu0 %3158
    %3160 = vrot.lane.b32.xlu0 %v3030, 32
    %v3161 = vpop.permute.xlu0 %3160
    %3162 = vrot.lane.b32.xlu0 %v3031, 32
    %v3163 = vpop.permute.xlu0 %3162
    %3164 = vrot.lane.b32.xlu0 %v3032, 32
    %v3165 = vpop.permute.xlu0 %3164
    %3166 = vrot.lane.b32.xlu0 %v3033, 32
    %v3167 = vpop.permute.xlu0 %3166
    %3168 = vrot.lane.b32.xlu0 %v3034, 32
    %v3169 = vpop.permute.xlu0 %3168
    %3170 = vrot.lane.b32.xlu0 %v3035, 32
    %v3171 = vpop.permute.xlu0 %3170
    %3188 = vrot.lane.b32.xlu0 %v3068, 112
    %v3189 = vpop.permute.xlu0 %3188
    %3190 = vrot.lane.b32.xlu0 %v3069, 112
    %v3191 = vpop.permute.xlu0 %3190
    %3192 = vrot.lane.b32.xlu0 %v3070, 112
    %v3193 = vpop.permute.xlu0 %3192
    %3194 = vrot.lane.b32.xlu0 %v3071, 112
    %v3195 = vpop.permute.xlu0 %3194
    %3196 = vrot.lane.b32.xlu0 %v3072, 112
    %v3197 = vpop.permute.xlu0 %3196
    %3198 = vrot.lane.b32.xlu0 %v3073, 112
    %v3199 = vpop.permute.xlu0 %3198
    %3200 = vrot.lane.b32.xlu0 %v3074, 112
    %v3201 = vpop.permute.xlu0 %3200
    %3202 = vrot.lane.b32.xlu0 %v3075, 112
    %v3203 = vpop.permute.xlu0 %3202
    %3220 = vrot.lane.b32.xlu0 %v3108, 64
    %v3221 = vpop.permute.xlu0 %3220
    %3222 = vrot.lane.b32.xlu0 %v3109, 64
    %v3223 = vpop.permute.xlu0 %3222
    %3224 = vrot.lane.b32.xlu0 %v3110, 64
    %v3225 = vpop.permute.xlu0 %3224
    %3226 = vrot.lane.b32.xlu0 %v3111, 64
    %v3227 = vpop.permute.xlu0 %3226
    %3228 = vrot.lane.b32.xlu0 %v3112, 64
    %v3229 = vpop.permute.xlu0 %3228
    %3230 = vrot.lane.b32.xlu0 %v3113, 64
    %v3231 = vpop.permute.xlu0 %3230
    %3232 = vrot.lane.b32.xlu0 %v3114, 64
    %v3233 = vpop.permute.xlu0 %3232
    %3234 = vrot.lane.b32.xlu0 %v3115, 64
    %v3235 = vpop.permute.xlu0 %3234
    %vm3244 = vcmask 654336
    %v3245 = vsel %vm3244, %v2948, %v3125
    %v3246 = vsel %vm3244, %v2949, %v3127
    %v3247 = vsel %vm3244, %v2950, %v3129
    %v3248 = vsel %vm3244, %v2951, %v3131
    %v3249 = vsel %vm3244, %v2952, %v3133
    %v3250 = vsel %vm3244, %v2953, %v3135
    %v3251 = vsel %vm3244, %v2954, %v3137
    %v3252 = vsel %vm3244, %v2955, %v3139
    %vm3253 = vcmask 261120
    %v3254 = vsel %vm3253, %v3125, %v3157
    %v3255 = vsel %vm3253, %v3127, %v3159
    %v3256 = vsel %vm3253, %v3129, %v3161
    %v3257 = vsel %vm3253, %v3131, %v3163
    %v3258 = vsel %vm3253, %v3133, %v3165
    %v3259 = vsel %vm3253, %v3135, %v3167
    %v3260 = vsel %vm3253, %v3137, %v3169
    %v3261 = vsel %vm3253, %v3139, %v3171
    %vm3262 = vcmask 916480
    %v3263 = vsel %vm3262, %v3254, %v3189
    %v3264 = vsel %vm3262, %v3255, %v3191
    %v3265 = vsel %vm3262, %v3256, %v3193
    %v3266 = vsel %vm3262, %v3257, %v3195
    %v3267 = vsel %vm3262, %v3258, %v3197
    %v3268 = vsel %vm3262, %v3259, %v3199
    %v3269 = vsel %vm3262, %v3260, %v3201
    %v3270 = vsel %vm3262, %v3261, %v3203
    %vm3271 = vcmask 523264
    %v3272 = vsel %vm3271, %v3189, %v3221
    %v3273 = vsel %vm3271, %v3191, %v3223
    %v3274 = vsel %vm3271, %v3193, %v3225
    %v3275 = vsel %vm3271, %v3195, %v3227
    %v3276 = vsel %vm3271, %v3197, %v3229
    %v3277 = vsel %vm3271, %v3199, %v3231
    %v3278 = vsel %vm3271, %v3201, %v3233
    %v3279 = vsel %vm3271, %v3203, %v3235
    %v3280 = vld [vmem:[%s9] sm:$0xff]
    %v3282 = vsel %vm3271, %v3280, 0
    %3284 = vmatpush.msra.mxu0 0.0
    %3285 = vmatpush.msra.mxu0 0.0
    %3286 = vmatpush.msra.mxu0 0.0
    %3287 = vmatpush.msra.mxu0 0.0
    %3288 = vmatpush.msra.mxu0 0.0
    %3289 = vmatpush.msra.mxu0 0.0
    %3290 = vmatpush.msra.mxu0 0.0
    %3291 = vmatpush.msra.mxu0 0.0
    %3292 = vmatpush.msra.mxu0 %v3252
    %3293 = vmatpush.msra.mxu0 %v3251
    %3294 = vmatpush.msra.mxu0 %v3250
    %3295 = vmatpush.msra.mxu0 %v3249
    %3296 = vmatpush.msra.mxu0 %v3248
    %3297 = vmatpush.msra.mxu0 %v3247
    %3298 = vmatpush.msra.mxu0 %v3246
    %3299 = vmatpush.msra.mxu0 %v3245
    %3300 = vmatmul.f32.gmra.mxu0 %v3282
    %v3301 = vpop.f32.mrf.mxu0
    %v3302 = vadd.f32 0.0, %v3301
    %3303 = vdwg.mxu0
    %3304 = vmatpush.msra.mxu0 0.0
    %3305 = vmatpush.msra.mxu0 0.0
    %3306 = vmatpush.msra.mxu0 0.0
    %3307 = vmatpush.msra.mxu0 0.0
    %3308 = vmatpush.msra.mxu0 0.0
    %3309 = vmatpush.msra.mxu0 0.0
    %3310 = vmatpush.msra.mxu0 0.0
    %3311 = vmatpush.msra.mxu0 0.0
    %3312 = vmatpush.msra.mxu0 %v3270
    %3313 = vmatpush.msra.mxu0 %v3269
    %3314 = vmatpush.msra.mxu0 %v3268
    %3315 = vmatpush.msra.mxu0 %v3267
    %3316 = vmatpush.msra.mxu0 %v3266
    %3317 = vmatpush.msra.mxu0 %v3265
    %3318 = vmatpush.msra.mxu0 %v3264
    %3319 = vmatpush.msra.mxu0 %v3263
    %3320 = vmatmul.f32.gmra.mxu0 %v3282
    %v3321 = vpop.f32.mrf.mxu0
    %v3322 = vadd.f32 0.0, %v3321
    %3323 = vdwg.mxu0
    %3324 = vmatpush.msra.mxu0 0.0
    %3325 = vmatpush.msra.mxu0 0.0
    %3326 = vmatpush.msra.mxu0 0.0
    %3327 = vmatpush.msra.mxu0 0.0
    %3328 = vmatpush.msra.mxu0 0.0
    %3329 = vmatpush.msra.mxu0 0.0
    %3330 = vmatpush.msra.mxu0 0.0
    %3331 = vmatpush.msra.mxu0 0.0
    %3332 = vmatpush.msra.mxu0 %v3279
    %3333 = vmatpush.msra.mxu0 %v3278
    %3334 = vmatpush.msra.mxu0 %v3277
    %3335 = vmatpush.msra.mxu0 %v3276
    %3336 = vmatpush.msra.mxu0 %v3275
    %3337 = vmatpush.msra.mxu0 %v3274
    %3338 = vmatpush.msra.mxu0 %v3273
    %3339 = vmatpush.msra.mxu0 %v3272
    %3340 = vmatmul.f32.gmra.mxu0 %v3282
    %v3341 = vpop.f32.mrf.mxu0
    %v3342 = vadd.f32 0.0, %v3341
    %3343 = vdwg.mxu0
    %3344 = vmatpush.msra.mxu0 0.0
    %3345 = vmatpush.msra.mxu0 0.0
    %3346 = vmatpush.msra.mxu0 0.0
    %3347 = vmatpush.msra.mxu0 0.0
    %3348 = vmatpush.msra.mxu0 0.0
    %3349 = vmatpush.msra.mxu0 0.0
    %3350 = vmatpush.msra.mxu0 0.0
    %3351 = vmatpush.msra.mxu0 0.0
    %3352 = vmatpush.msra.mxu0 %v3235
    %3353 = vmatpush.msra.mxu0 %v3233
    %3354 = vmatpush.msra.mxu0 %v3231
    %3355 = vmatpush.msra.mxu0 %v3229
    %3356 = vmatpush.msra.mxu0 %v3227
    %3357 = vmatpush.msra.mxu0 %v3225
    %3358 = vmatpush.msra.mxu0 %v3223
    %3359 = vmatpush.msra.mxu0 %v3221
    %3360 = vmatmul.f32.gmra.mxu0 %v3282
    %v3361 = vpop.f32.mrf.mxu0
    %v3362 = vadd.f32 0.0, %v3361
    %3363 = vdwg.mxu0
    %v3364 = vld [vmem:[%s11] sm:$0xff]
    %v3365 = vld [vmem:[%s11 + $0x8] sm:$0xff]
    %v3366 = vld [vmem:[%s11 + $0x10] sm:$0xff]
    %v3367 = vld [vmem:[%s11 + $0x18] sm:$0xff]
    %v3368 = vld [vmem:[%s11 + $0x20] sm:$0xff]
    %v3369 = vld [vmem:[%s11 + $0x28] sm:$0xff]
    %v3370 = vld [vmem:[%s11 + $0x30] sm:$0xff]
    %v3371 = vld [vmem:[%s11 + $0x38] sm:$0xff]
    %v3372 = vld [vmem:[%s11 + $0x40] sm:$0xff]
    %v3373 = vld [vmem:[%s11 + $0x48] sm:$0xff]
    %v3374 = vld [vmem:[%s11 + $0x50] sm:$0xff]
    %v3375 = vld [vmem:[%s11 + $0x58] sm:$0xff]
    %v3376 = vld [vmem:[%s11 + $0x60] sm:$0xff]
    %v3377 = vld [vmem:[%s11 + $0x68] sm:$0xff]
    %v3378 = vld [vmem:[%s11 + $0x70] sm:$0xff]
    %v3379 = vld [vmem:[%s11 + $0x78] sm:$0xff]
    %v3380 = vld [vmem:[%s11 + $0x80] sm:$0xff]
    %v3381 = vld [vmem:[%s11 + $0x88] sm:$0xff]
    %v3382 = vld [vmem:[%s11 + $0x90] sm:$0xff]
    %v3383 = vld [vmem:[%s11 + $0x98] sm:$0xff]
    %v3384 = vld [vmem:[%s11 + $0xa0] sm:$0xff]
    %v3385 = vld [vmem:[%s11 + $0xa8] sm:$0xff]
    %v3386 = vld [vmem:[%s11 + $0xb0] sm:$0xff]
    %v3387 = vld [vmem:[%s11 + $0xb8] sm:$0xff]
    %v3388 = vld [vmem:[%s11 + $0xc0] sm:$0xff]
    %v3389 = vld [vmem:[%s11 + $0xc8] sm:$0xff]
    %v3390 = vld [vmem:[%s11 + $0xd0] sm:$0xff]
    %v3391 = vld [vmem:[%s11 + $0xd8] sm:$0xff]
    %v3392 = vld [vmem:[%s11 + $0xe0] sm:$0xff]
    %v3393 = vld [vmem:[%s11 + $0xe8] sm:$0xff]
    %v3394 = vld [vmem:[%s11 + $0xf0] sm:$0xff]
    %v3395 = vld [vmem:[%s11 + $0xf8] sm:$0xff]
    %v3396 = vld [vmem:[%s11 + $0x100] sm:$0xff]
    %v3397 = vld [vmem:[%s11 + $0x108] sm:$0xff]
    %v3398 = vld [vmem:[%s11 + $0x110] sm:$0xff]
    %v3399 = vld [vmem:[%s11 + $0x118] sm:$0xff]
    %v3400 = vld [vmem:[%s11 + $0x120] sm:$0xff]
    %v3401 = vld [vmem:[%s11 + $0x128] sm:$0xff]
    %v3402 = vld [vmem:[%s11 + $0x130] sm:$0xff]
    %v3403 = vld [vmem:[%s11 + $0x138] sm:$0xff]
    %v3404 = vld [vmem:[%s11 + $0x140] sm:$0xff]
    %v3405 = vld [vmem:[%s11 + $0x148] sm:$0xff]
    %v3406 = vld [vmem:[%s11 + $0x150] sm:$0xff]
    %v3407 = vld [vmem:[%s11 + $0x158] sm:$0xff]
    %v3408 = vld [vmem:[%s11 + $0x160] sm:$0xff]
    %v3409 = vld [vmem:[%s11 + $0x168] sm:$0xff]
    %v3410 = vld [vmem:[%s11 + $0x170] sm:$0xff]
    %v3411 = vld [vmem:[%s11 + $0x178] sm:$0xff]
    %v3412 = vld [vmem:[%s11 + $0x180] sm:$0xff]
    %v3413 = vld [vmem:[%s11 + $0x188] sm:$0xff]
    %v3414 = vld [vmem:[%s12] sm:$0x1]
    %v3416 = vperm.slane %v3414, 0
    %vm3418 = vcmask 130048
    %v3420 = vsel %vm3418, %v3362, 0
    %3422 = vmatpush.msra.mxu0 %v3379
    %3423 = vmatpush.msra.mxu0 %v3378
    %3424 = vmatpush.msra.mxu0 %v3377
    %3425 = vmatpush.msra.mxu0 %v3376
    %3426 = vmatpush.msra.mxu0 %v3375
    %3427 = vmatpush.msra.mxu0 %v3374
    %3428 = vmatpush.msra.mxu0 %v3373
    %3429 = vmatpush.msra.mxu0 %v3372
    %3430 = vmatpush.msra.mxu0 %v3371
    %3431 = vmatpush.msra.mxu0 %v3370
    %3432 = vmatpush.msra.mxu0 %v3369
    %3433 = vmatpush.msra.mxu0 %v3368
    %3434 = vmatpush.msra.mxu0 %v3367
    %3435 = vmatpush.msra.mxu0 %v3366
    %3436 = vmatpush.msra.mxu0 %v3365
    %3437 = vmatpush.msra.mxu0 %v3364
    %3438 = vmatmul.f32.gmra.mxu0 %v3302
    %v3439 = vpop.f32.mrf.mxu0
    %v3440 = vadd.f32 %v3416, %v3439
    %3441 = vdwg.mxu0
    %3442 = vmatpush.msra.mxu0 %v3395
    %3443 = vmatpush.msra.mxu0 %v3394
    %3444 = vmatpush.msra.mxu0 %v3393
    %3445 = vmatpush.msra.mxu0 %v3392
    %3446 = vmatpush.msra.mxu0 %v3391
    %3447 = vmatpush.msra.mxu0 %v3390
    %3448 = vmatpush.msra.mxu0 %v3389
    %3449 = vmatpush.msra.mxu0 %v3388
    %3450 = vmatpush.msra.mxu0 %v3387
    %3451 = vmatpush.msra.mxu0 %v3386
    %3452 = vmatpush.msra.mxu0 %v3385
    %3453 = vmatpush.msra.mxu0 %v3384
    %3454 = vmatpush.msra.mxu0 %v3383
    %3455 = vmatpush.msra.mxu0 %v3382
    %3456 = vmatpush.msra.mxu0 %v3381
    %3457 = vmatpush.msra.mxu0 %v3380
    %3458 = vmatmul.f32.gmra.mxu0 %v3322
    %v3459 = vpop.f32.mrf.mxu0
    %v3460 = vadd.f32 %v3440, %v3459
    %3461 = vdwg.mxu0
    %3462 = vmatpush.msra.mxu0 %v3411
    %3463 = vmatpush.msra.mxu0 %v3410
    %3464 = vmatpush.msra.mxu0 %v3409
    %3465 = vmatpush.msra.mxu0 %v3408
    %3466 = vmatpush.msra.mxu0 %v3407
    %3467 = vmatpush.msra.mxu0 %v3406
    %3468 = vmatpush.msra.mxu0 %v3405
    %3469 = vmatpush.msra.mxu0 %v3404
    %3470 = vmatpush.msra.mxu0 %v3403
    %3471 = vmatpush.msra.mxu0 %v3402
    %3472 = vmatpush.msra.mxu0 %v3401
    %3473 = vmatpush.msra.mxu0 %v3400
    %3474 = vmatpush.msra.mxu0 %v3399
    %3475 = vmatpush.msra.mxu0 %v3398
    %3476 = vmatpush.msra.mxu0 %v3397
    %3477 = vmatpush.msra.mxu0 %v3396
    %3478 = vmatmul.f32.gmra.mxu0 %v3342
    %v3479 = vpop.f32.mrf.mxu0
    %v3480 = vadd.f32 %v3460, %v3479
    %3481 = vdwg.mxu0
    %3482 = vmatpush.msra.mxu0 0.0
    %3483 = vmatpush.msra.mxu0 0.0
    %3484 = vmatpush.msra.mxu0 0.0
    %3485 = vmatpush.msra.mxu0 0.0
    %3486 = vmatpush.msra.mxu0 0.0
    %3487 = vmatpush.msra.mxu0 0.0
    %3488 = vmatpush.msra.mxu0 0.0
    %3489 = vmatpush.msra.mxu0 0.0
    %3490 = vmatpush.msra.mxu0 0.0
    %3491 = vmatpush.msra.mxu0 0.0
    %3492 = vmatpush.msra.mxu0 0.0
    %3493 = vmatpush.msra.mxu0 0.0
    %3494 = vmatpush.msra.mxu0 0.0
    %3495 = vmatpush.msra.mxu0 0.0
    %3496 = vmatpush.msra.mxu0 %v3413
    %3497 = vmatpush.msra.mxu0 %v3412
    %3498 = vmatmul.f32.gmra.mxu0 %v3420
    %v3499 = vpop.f32.mrf.mxu0
    %v3500 = vadd.f32 %v3480, %v3499
    %3501 = vdwg.mxu0
    %v3502 = vmax.f32 %v3500, 0.0
    %v3503 = vld [vmem:[#allocation2] sm:$0xff]
    %v3504 = vld [vmem:[#allocation2 + $0x8] sm:$0xff]
    %v3505 = vld [vmem:[#allocation2 + $0x10] sm:$0xff]
    %v3506 = vld [vmem:[#allocation2 + $0x18] sm:$0xff]
    %v3507 = vld [vmem:[#allocation2 + $0x20] sm:$0xff]
    %v3508 = vld [vmem:[#allocation2 + $0x28] sm:$0xff]
    %v3509 = vld [vmem:[#allocation2 + $0x30] sm:$0xff]
    %v3510 = vld [vmem:[#allocation2 + $0x38] sm:$0xff]
    %v3511 = vld [vmem:[#allocation2 + $0x40] sm:$0xff]
    %v3512 = vld [vmem:[#allocation2 + $0x48] sm:$0xff]
    %v3513 = vld [vmem:[#allocation2 + $0x50] sm:$0xff]
    %v3514 = vld [vmem:[#allocation2 + $0x58] sm:$0xff]
    %v3515 = vld [vmem:[#allocation2 + $0x60] sm:$0xff]
    %v3516 = vld [vmem:[#allocation2 + $0x68] sm:$0xff]
    %v3517 = vld [vmem:[#allocation2 + $0x70] sm:$0xff]
    %v3518 = vld [vmem:[#allocation2 + $0x78] sm:$0xff]
    %v3519 = vld [vmem:[#allocation2 + $0x80] sm:$0xff]
    %v3520 = vld [vmem:[#allocation2 + $0x88] sm:$0xff]
    %v3521 = vld [vmem:[#allocation2 + $0x90] sm:$0xff]
    %v3522 = vld [vmem:[#allocation2 + $0x98] sm:$0xff]
    %v3523 = vld [vmem:[#allocation2 + $0xa0] sm:$0xff]
    %v3524 = vld [vmem:[#allocation2 + $0xa8] sm:$0xff]
    %v3525 = vld [vmem:[#allocation2 + $0xb0] sm:$0xff]
    %v3526 = vld [vmem:[#allocation2 + $0xb8] sm:$0xff]
    %v3527 = vld [vmem:[#allocation2 + $0xc0] sm:$0xff]
    %v3528 = vld [vmem:[#allocation2 + $0xc8] sm:$0xff]
    %v3529 = vld [vmem:[#allocation2 + $0xd0] sm:$0xff]
    %v3530 = vld [vmem:[#allocation2 + $0xd8] sm:$0xff]
    %v3531 = vld [vmem:[#allocation2 + $0xe0] sm:$0xff]
    %v3532 = vld [vmem:[#allocation2 + $0xe8] sm:$0xff]
    %v3533 = vld [vmem:[%s14] sm:$0x3]
    %v3535 = vperm.slane %v3533, 0
    %v3536 = vperm.slane %v3533, 1
    %vm3539 = vcmask 982016
    %v3541 = vsel %vm3539, %v3502, 0
    %3543 = vmatpush.msra.mxu0 0.0
    %3544 = vmatpush.msra.mxu0 %v3531
    %3545 = vmatpush.msra.mxu0 %v3529
    %3546 = vmatpush.msra.mxu0 %v3527
    %3547 = vmatpush.msra.mxu0 %v3525
    %3548 = vmatpush.msra.mxu0 %v3523
    %3549 = vmatpush.msra.mxu0 %v3521
    %3550 = vmatpush.msra.mxu0 %v3519
    %3551 = vmatpush.msra.mxu0 %v3517
    %3552 = vmatpush.msra.mxu0 %v3515
    %3553 = vmatpush.msra.mxu0 %v3513
    %3554 = vmatpush.msra.mxu0 %v3511
    %3555 = vmatpush.msra.mxu0 %v3509
    %3556 = vmatpush.msra.mxu0 %v3507
    %3557 = vmatpush.msra.mxu0 %v3505
    %3558 = vmatpush.msra.mxu0 %v3503
    %3559 = vmatmul.f32.gmra.mxu0 %v3541
    %v3560 = vpop.f32.mrf.mxu0
    %v3561 = vadd.f32 %v3535, %v3560
    %3562 = vdwg.mxu0
    %3563 = vmatpush.msra.mxu0 0.0
    %3564 = vmatpush.msra.mxu0 %v3532
    %3565 = vmatpush.msra.mxu0 %v3530
    %3566 = vmatpush.msra.mxu0 %v3528
    %3567 = vmatpush.msra.mxu0 %v3526
    %3568 = vmatpush.msra.mxu0 %v3524
    %3569 = vmatpush.msra.mxu0 %v3522
    %3570 = vmatpush.msra.mxu0 %v3520
    %3571 = vmatpush.msra.mxu0 %v3518
    %3572 = vmatpush.msra.mxu0 %v3516
    %3573 = vmatpush.msra.mxu0 %v3514
    %3574 = vmatpush.msra.mxu0 %v3512
    %3575 = vmatpush.msra.mxu0 %v3510
    %3576 = vmatpush.msra.mxu0 %v3508
    %3577 = vmatpush.msra.mxu0 %v3506
    %3578 = vmatpush.msra.mxu0 %v3504
    %3579 = vmatmul.f32.gmra.mxu0 %v3541
    %v3580 = vpop.f32.mrf.mxu0
    %v3581 = vadd.f32 %v3536, %v3580
    %3582 = vdwg.mxu0
    %v3583 = vmax.f32 %v3561, 0.0
    %v3584 = vmax.f32 %v3581, 0.0
    %v3585 = vld [vmem:[%s15] sm:$0xff]
    %v3586 = vld [vmem:[%s15 + $0x8] sm:$0xff]
    %v3587 = vld [vmem:[%s15 + $0x10] sm:$0xff]
    %v3588 = vld [vmem:[%s15 + $0x18] sm:$0xff]
    %v3589 = vld [vmem:[%s15 + $0x20] sm:$0xff]
    %v3590 = vld [vmem:[%s15 + $0x28] sm:$0xff]
    %v3591 = vld [vmem:[%s15 + $0x30] sm:$0xff]
    %v3592 = vld [vmem:[%s15 + $0x38] sm:$0xff]
    %v3593 = vld [vmem:[%s15 + $0x40] sm:$0xff]
    %v3594 = vld [vmem:[%s15 + $0x48] sm:$0xff]
    %v3595 = vld [vmem:[%s15 + $0x50] sm:$0xff]
    %v3596 = vld [vmem:[%s15 + $0x58] sm:$0xff]
    %v3597 = vld [vmem:[%s15 + $0x60] sm:$0xff]
    %v3598 = vld [vmem:[%s15 + $0x68] sm:$0xff]
    %v3599 = vld [vmem:[%s15 + $0x70] sm:$0xff]
    %v3600 = vld [vmem:[%s15 + $0x78] sm:$0xff]
    %v3601 = vld [vmem:[%s15 + $0x80] sm:$0xff]
    %v3602 = vld [vmem:[%s15 + $0x88] sm:$0xff]
    %v3603 = vld [vmem:[%s15 + $0x90] sm:$0xff]
    %v3604 = vld [vmem:[%s15 + $0x98] sm:$0xff]
    %v3605 = vld [vmem:[%s15 + $0xa0] sm:$0xff]
    %v3606 = vld [vmem:[%s15 + $0xa8] sm:$0xff]
    %v3607 = vld [vmem:[%s15 + $0xb0] sm:$0xff]
    %v3608 = vld [vmem:[%s15 + $0xb8] sm:$0xff]
    %v3609 = vld [vmem:[%s15 + $0xc0] sm:$0xff]
    %v3610 = vld [vmem:[%s15 + $0xc8] sm:$0xff]
    %v3611 = vld [vmem:[%s15 + $0xd0] sm:$0xff]
    %v3612 = vld [vmem:[%s15 + $0xd8] sm:$0xff]
    %v3613 = vld [vmem:[%s15 + $0xe0] sm:$0xff]
    %v3614 = vld [vmem:[%s15 + $0xe8] sm:$0xff]
    %v3615 = vld [vmem:[%s16] sm:$0x1]
    %v3617 = vperm.slane %v3615, 0
    %v3620 = vsel %vm3262, %v3584, 0
    %3622 = vmatpush.msra.mxu0 %v3600
    %3623 = vmatpush.msra.mxu0 %v3599
    %3624 = vmatpush.msra.mxu0 %v3598
    %3625 = vmatpush.msra.mxu0 %v3597
    %3626 = vmatpush.msra.mxu0 %v3596
    %3627 = vmatpush.msra.mxu0 %v3595
    %3628 = vmatpush.msra.mxu0 %v3594
    %3629 = vmatpush.msra.mxu0 %v3593
    %3630 = vmatpush.msra.mxu0 %v3592
    %3631 = vmatpush.msra.mxu0 %v3591
    %3632 = vmatpush.msra.mxu0 %v3590
    %3633 = vmatpush.msra.mxu0 %v3589
    %3634 = vmatpush.msra.mxu0 %v3588
    %3635 = vmatpush.msra.mxu0 %v3587
    %3636 = vmatpush.msra.mxu0 %v3586
    %3637 = vmatpush.msra.mxu0 %v3585
    %3638 = vmatmul.f32.gmra.mxu0 %v3583
    %v3639 = vpop.f32.mrf.mxu0
    %v3640 = vadd.f32 %v3617, %v3639
    %3641 = vdwg.mxu0
    %3642 = vmatpush.msra.mxu0 0.0
    %3643 = vmatpush.msra.mxu0 0.0
    %3644 = vmatpush.msra.mxu0 %v3614
    %3645 = vmatpush.msra.mxu0 %v3613
    %3646 = vmatpush.msra.mxu0 %v3612
    %3647 = vmatpush.msra.mxu0 %v3611
    %3648 = vmatpush.msra.mxu0 %v3610
    %3649 = vmatpush.msra.mxu0 %v3609
    %3650 = vmatpush.msra.mxu0 %v3608
    %3651 = vmatpush.msra.mxu0 %v3607
    %3652 = vmatpush.msra.mxu0 %v3606
    %3653 = vmatpush.msra.mxu0 %v3605
    %3654 = vmatpush.msra.mxu0 %v3604
    %3655 = vmatpush.msra.mxu0 %v3603
    %3656 = vmatpush.msra.mxu0 %v3602
    %3657 = vmatpush.msra.mxu0 %v3601
    %3658 = vmatmul.f32.gmra.mxu0 %v3620
    %v3659 = vpop.f32.mrf.mxu0
    %v3660 = vadd.f32 %v3640, %v3659
    %3661 = vdwg.mxu0
    %vm3662 = vcmask 80896
    %v3663 = vsel %vm3662, %v3660, -inf
    %3664 = vmax.xlane.f32.xlu0 %v3663
    %v3665 = vpop.xlane.xlu0 %3664
    %v3666 = vsub.f32 %v3660, %v3665
    %v3667 = vmul.f32 %v3666, 1.442695
    %v3668 = vpow.pop %v3667
    %v3669 = vsel %vm3662, %v3668, 0.0
    %3670 = vadd.xlane.f32.xlu0 %v3669
    %v3671 = vpop.xlane.xlu0 %3670
    %v3672 = vlog2.pop %v3671
    %v3673 = vmul.f32 %v3672, 0.6931472
    %v3674 = vsub.f32 %v3666, %v3673
    %3675 = vst.msk [vmem:[%s17] sm:$0xff] %vm3662, %v3674
    // Predicated region
    $region74: #{forward.1} parent=1 // pred_check
      _
    $region75: #{forward.1} parent=1 // pred_check_branch
      %3677 = sbr.rel (0) target = $region77
    $region76: #{forward.1} parent=1 // pred_region
      _
    $region77: #{forward.1} parent=1 // pred_fallthru
      _
    // Predicated region
    $region78: #{forward.1} parent=1 // pred_check
      _
    $region79: #{forward.1} parent=1 // pred_check_branch
      %3679 = sbr.rel (0) target = $region81
    $region80: #{forward.1} parent=1 // pred_region
      _
    $region81: #{forward.1} parent=1 // pred_fallthru
      _
    %3680 = vsyncpa [#allocation3], 1

</llo_original>
